<compile_context>
chip_gen: v6e
topology: v6e:2x2x1
jax: 0.10.0
libtpu: 0.0.40
codegen_flags: <defaults>
</compile_context>

<pallas_src>
import math

import jax
import jax.numpy as jnp
from jax.experimental import pallas as pl
from jax.experimental.pallas import tpu as pltpu


# ---------------------------------------------------------------------------
# Kernel
# ---------------------------------------------------------------------------
def _upsample_conv_kernel(x_ref, top_ref, bot_ref, w_ref, b_ref, o_ref, slab_ref):
    """One (batch, Cout-tile, row-band) grid step.

    x_ref:    (1, th, W, C)     band of the input image (bf16, NHWC)
    top_ref:  (1, 1, W, C)      row just above the band (clamped; masked when i==0)
    bot_ref:  (1, 1, W, C)      row just below the band (clamped; masked at last band)
    w_ref:    (4, 4*C, TN)      per-phase packed 2x2 kernels (bf16)
    b_ref:    (1, TN)           bias (f32)
    o_ref:    (1, 4, th*W, TN)  phase-separated output band (bf16), p = 2*a + b
    slab_ref: (th+2, W+2, C)    VMEM scratch: band + 1-px zero border
    """
    th, W, C = x_ref.shape[1], x_ref.shape[2], x_ref.shape[3]
    i = pl.program_id(2)
    n_i = pl.num_programs(2)

    # ---- assemble the bordered band slab in VMEM (no HBM pad pass) ---------
    zcol = jnp.zeros((th + 2, 1, C), dtype=slab_ref.dtype)
    slab_ref[:, 0:1, :] = zcol                           # left zero border
    slab_ref[:, W + 1:W + 2, :] = zcol                   # right zero border
    slab_ref[1:th + 1, 1:W + 1, :] = x_ref[0]            # band body
    top = top_ref[0, 0]                                  # (W, C)
    bot = bot_ref[0, 0]
    top = jnp.where(i > 0, top, jnp.zeros_like(top))          # top image border
    bot = jnp.where(i < n_i - 1, bot, jnp.zeros_like(bot))    # bottom image border
    slab_ref[0, 1:W + 1, :] = top
    slab_ref[th + 1, 1:W + 1, :] = bot

    bias = b_ref[...].astype(jnp.float32)                # (1, TN), broadcasts

    # ---- 4 output phases: one K = 4*C matmul each ---------------------------
    for a in (0, 1):            # output row phase
        for b in (0, 1):        # output col phase
            # Concat the 4 collapsed taps along channels (tap order r,c =
            # 00,01,10,11 — must match the weight packing in _phase_weights).
            op = jnp.concatenate(
                [slab_ref[a + 0:a + 0 + th, b + 0:b + 0 + W, :],
                 slab_ref[a + 0:a + 0 + th, b + 1:b + 1 + W, :],
                 slab_ref[a + 1:a + 1 + th, b + 0:b + 0 + W, :],
                 slab_ref[a + 1:a + 1 + th, b + 1:b + 1 + W, :]],
                axis=-1).reshape(th * W, 4 * C)
            acc = jnp.dot(op, w_ref[a * 2 + b],
                          preferred_element_type=jnp.float32)
            o_ref[0, a * 2 + b] = (acc + bias).astype(o_ref.dtype)


# ---------------------------------------------------------------------------
# Weight packing: ConvTranspose2d(3,s=1,p=1) on a 2x-nearest-upsampled image
# collapses per output phase into a 2x2 conv on the original image.
# ---------------------------------------------------------------------------
def _phase_weights(weight_t, compute_dtype):
    """weight_t: (Cin, Cout, 3, 3) torch ConvTranspose2d layout.

    Returns (4, 4*Cin, Cout): phase p = 2*a + b, K packed tap-major (r,c) then
    channel, matching the in-kernel concat order.  Sums are done in f32.
    """
    Cin, Cout = weight_t.shape[0], weight_t.shape[1]
    # ConvTranspose2d(s=1,p=1) == SAME conv with flipped, channel-swapped weight:
    #   Wc[kh, kw, ci, co] = weight_t[ci, co, 2 - kh, 2 - kw]
    wc = jnp.transpose(weight_t, (2, 3, 0, 1))[::-1, ::-1]      # (3, 3, Cin, Cout)

    def collapse(w, phase, axis):
        w = jnp.moveaxis(w, axis, 0)
        if phase == 0:      # output index 2i+0 sees source rows/cols (i-1, i)
            w = jnp.stack([w[0], w[1] + w[2]])
        else:               # output index 2i+1 sees source rows/cols (i, i+1)
            w = jnp.stack([w[0] + w[1], w[2]])
        return jnp.moveaxis(w, 0, axis)

    phases = []
    for a in (0, 1):
        for b in (0, 1):
            e = collapse(collapse(wc, a, 0), b, 1)               # (2, 2, Cin, Cout)
            phases.append(e.reshape(4 * Cin, Cout))              # (r, c, ci) row-major
    return jnp.stack(phases, axis=0).astype(compute_dtype)       # (4, 4*Cin, Cout)


# ---------------------------------------------------------------------------
# Tiling heuristics
# ---------------------------------------------------------------------------
def _pick_cout_tile(Cout):
    pref = 256
    try:
        kind = jax.devices()[0].device_kind.lower()
        if "v5" in kind or "v4" in kind or "v3" in kind:
            pref = 128          # 128-wide MXU: 256 lanes only doubles VMEM/VALU work
    except Exception:
        pass
    if Cout % pref == 0:
        return pref
    if Cout % 128 == 0:
        return 128
    return Cout                  # TODO(synk): small-channel (<128) lane-dense path


def _pick_band_rows(H, W, C, tn, budget=8 * 2 ** 20):
    """Largest row band (dividing H) whose per-step VMEM footprint fits `budget`."""
    def est(th):
        return (2 * th * W * C * 2                # input band, double-buffered bf16
                + 2 * 4 * th * W * tn * 2         # bf16 output block, double-buffered
                + (th + 2) * (W + 2) * C * 2      # band slab scratch
                + 2 * th * W * 4 * C * 2          # per-phase concat operand (transient)
                + th * W * tn * 4                 # f32 matmul accumulator
                + 2 * 16 * C * tn * 2             # weight slab, double-buffered
                + 4 * W * C * 2)                  # halo rows
    if est(H) <= budget:
        return H
    for th in (64, 32, 16, 8, 4, 2, 1):
        if H % th == 0 and est(th) <= budget:
            return th
    return 1


# ---------------------------------------------------------------------------
# Forward wrapper
# ---------------------------------------------------------------------------
def upsample_forward(x_nchw, weight_t, bias, *, compute_dtype=jnp.bfloat16,
                     out_dtype=None, band_rows=None):
    """Forward pass of Upsample. x_nchw: (N, C, H, W); weight_t: (Cin, Cout, 3, 3)."""
    N, C, H, W = x_nchw.shape
    Cin, Cout, KH, KW = weight_t.shape
    assert Cin == C and KH == 3 and KW == 3
    out_dtype = x_nchw.dtype if out_dtype is None else out_dtype

    # Single wrapper HBM pass: NCHW -> NHWC + bf16 cast.  No materialized pad —
    # the 1-px zero border is synthesized in-kernel.
    # TODO(synk): keep activations NHWC end-to-end in the surrounding model to
    # drop this transpose and the final NCHW transpose.
    x_nhwc = jnp.transpose(x_nchw, (0, 2, 3, 1)).astype(compute_dtype)

    w4 = _phase_weights(weight_t, compute_dtype)       # (4, 4*Cin, Cout)
    b_row = bias.reshape(1, Cout).astype(jnp.float32)

    tn = _pick_cout_tile(Cout)
    n_j = Cout // tn
    th = band_rows if band_rows is not None else _pick_band_rows(H, W, C, tn)
    assert H % th == 0, (H, th)
    n_i = H // th

    # Grid: batch / Cout tile / row band.  All axes independent ("parallel");
    # the band axis is innermost so the weight tile stays resident across it.
    grid = (N, n_j, n_i)

    out = pl.pallas_call(
        _upsample_conv_kernel,
        out_shape=jax.ShapeDtypeStruct((N, 4, H * W, Cout), compute_dtype),
        grid_spec=pltpu.PrefetchScalarGridSpec(
            num_scalar_prefetch=0,
            grid=grid,
            in_specs=[
                # band body
                pl.BlockSpec((1, th, W, C), lambda n, j, i: (n, i, 0, 0)),
                # halo row above (clamped at the image top; masked in-kernel)
                pl.BlockSpec((1, 1, W, C),
                             lambda n, j, i: (n, jnp.maximum(i * th - 1, 0), 0, 0)),
                # halo row below (clamped at the image bottom; masked in-kernel)
                pl.BlockSpec((1, 1, W, C),
                             lambda n, j, i: (n, jnp.minimum(i * th + th, H - 1), 0, 0)),
                # packed per-phase weights, resident across the band loop
                pl.BlockSpec((4, 4 * C, tn), lambda n, j, i: (0, 0, j)),
                # bias
                pl.BlockSpec((1, tn), lambda n, j, i: (0, j)),
            ],
            out_specs=pl.BlockSpec((1, 4, th * W, tn), lambda n, j, i: (n, 0, i, j)),
            scratch_shapes=[pltpu.VMEM((th + 2, W + 2, C), compute_dtype)],
        ),
        compiler_params=pltpu.CompilerParams(
            dimension_semantics=("parallel", "parallel", "parallel"),
        ),
    )(x_nhwc, x_nhwc, x_nhwc, w4, b_row)

    # Pixel-shuffle the 4 phases and return NCHW; the upcast to out_dtype fuses
    # into this single transpose pass.
    out = out.reshape(N, 2, 2, H, W, Cout)              # (n, a, b, i, j, co)
    out = jnp.transpose(out, (0, 5, 3, 1, 4, 2))        # (n, co, i, a, j, b)
    return out.reshape(N, Cout, 2 * H, 2 * W).astype(out_dtype)


# ---------------------------------------------------------------------------
# Init + reference + demo
# ---------------------------------------------------------------------------
def init_params(key, in_channels, dtype=jnp.float32):
    """Deterministic ConvTranspose2d-style init (kaiming-uniform-ish bounds)."""
    k_w, k_b = jax.random.split(key)
    bound = 1.0 / math.sqrt(in_channels * 3 * 3)
    weight = jax.random.uniform(
        k_w, (in_channels, in_channels, 3, 3), minval=-bound, maxval=bound, dtype=dtype
    )  # (in, out, kH, kW) — torch ConvTranspose2d layout
    bias = jax.random.uniform(
        k_b, (in_channels,), minval=-bound, maxval=bound, dtype=dtype
    )
    return weight, bias


def _reference(x, weight, bias):
    """Pure-XLA f32 reference: nearest-2x upsample, then ConvTranspose2d(3,s=1,p=1)."""
    x_up = jnp.repeat(jnp.repeat(x, 2, axis=2), 2, axis=3)
    w_conv = jnp.transpose(weight, (1, 0, 2, 3))[:, :, ::-1, ::-1]
    return jax.lax.conv_general_dilated(
        x_up, w_conv, window_strides=(1, 1), padding=((1, 1), (1, 1)),
        dimension_numbers=("NCHW", "OIHW", "NCHW"),
    ) + bias.reshape(1, -1, 1, 1)


if __name__ == "__main__":
    key = jax.random.PRNGKey(0)
    k_x, k_p, k_x2 = jax.random.split(key, 3)

    # Config 1: small demo shape, single row band (th == H).
    N, C, H, W = 2, 4, 16, 16
    x = jax.random.normal(k_x, (N, C, H, W), dtype=jnp.float32)
    weight, bias = init_params(k_p, C)

    out = jax.block_until_ready(upsample_forward(x, weight, bias))
    ref = _reference(x, weight, bias)
    assert out.shape == ref.shape == (N, C, 2 * H, 2 * W), (out.shape, ref.shape)
    err = float(jnp.max(jnp.abs(out - ref)))
    # bf16 operands/output (f32 accumulation) vs f32 reference.
    assert jnp.allclose(out, ref, atol=8e-2, rtol=8e-2), err

    # Config 2: forced row-band tiling (exercises halo rows + border masking).
    N2, C2, H2, W2 = 1, 4, 32, 16
    x2 = jax.random.normal(k_x2, (N2, C2, H2, W2), dtype=jnp.float32)
    out2 = jax.block_until_ready(upsample_forward(x2, weight, bias, band_rows=8))
    ref2 = _reference(x2, weight, bias)
    assert out2.shape == ref2.shape == (N2, C2, 2 * H2, 2 * W2), (out2.shape, ref2.shape)
    err2 = float(jnp.max(jnp.abs(out2 - ref2)))
    assert jnp.allclose(out2, ref2, atol=8e-2, rtol=8e-2), err2

    print("KERNEL_OK")
</pallas_src>

<mosaic_0001>
module attributes {stable_mosaic.version = 11 : i64} {
  func.func @_upsample_conv_kernel(%arg0: i32, %arg1: i32, %arg2: i32, %arg3: memref<1x16x16x4xbf16, #tpu.memory_space<vmem>>, %arg4: memref<1x1x16x4xbf16, #tpu.memory_space<vmem>>, %arg5: memref<1x1x16x4xbf16, #tpu.memory_space<vmem>>, %arg6: memref<4x16x4xbf16, #tpu.memory_space<vmem>>, %arg7: memref<1x4xf32, #tpu.memory_space<vmem>>, %arg8: memref<1x4x256x4xbf16, #tpu.memory_space<vmem>>, %arg9: memref<18x18x4xbf16, #tpu.memory_space<vmem>>) attributes {dimension_semantics = [#tpu.dimension_semantics<parallel>, #tpu.dimension_semantics<parallel>, #tpu.dimension_semantics<parallel>], iteration_bounds = array<i64: 2, 1, 1>, scalar_prefetch = 0 : i64, scratch_operands = 1 : i64, tpu.core_type = #tpu.core_type<tc>, window_params = [{transform_indices = @transform_0, window_bounds = array<i64: 1, 16, 16, 4>}, {transform_indices = @transform_1, window_bounds = array<i64: 1, 1, 16, 4>}, {transform_indices = @transform_2, window_bounds = array<i64: 1, 1, 16, 4>}, {transform_indices = @transform_3, window_bounds = array<i64: 4, 16, 4>}, {transform_indices = @transform_4, window_bounds = array<i64: 1, 4>}, {transform_indices = @transform_5, window_bounds = array<i64: 1, 4, 256, 4>}]} {
    %cst = arith.constant 0.000000e+00 : bf16
    %0 = vector.broadcast %cst : bf16 to vector<18x1x4xbf16>
    %c0 = arith.constant 0 : index
    %c0_0 = arith.constant 0 : index
    %c0_1 = arith.constant 0 : index
    %1 = vector.load %arg9[%c0, %c0_0, %c0_1] : memref<18x18x4xbf16, #tpu.memory_space<vmem>>, vector<18x1x4xbf16>
    tpu.vector_store %arg9[%c0, %c0_0, %c0_1], %0 {strides = array<i32>} : memref<18x18x4xbf16, #tpu.memory_space<vmem>>, vector<18x1x4xbf16>,
    %c0_2 = arith.constant 0 : index
    %c17 = arith.constant 17 : index
    %c0_3 = arith.constant 0 : index
    %2 = vector.load %arg9[%c0_2, %c17, %c0_3] : memref<18x18x4xbf16, #tpu.memory_space<vmem>>, vector<18x1x4xbf16>
    tpu.vector_store %arg9[%c0_2, %c17, %c0_3], %0 {strides = array<i32>} : memref<18x18x4xbf16, #tpu.memory_space<vmem>>, vector<18x1x4xbf16>,
    %c0_4 = arith.constant 0 : index
    %c0_5 = arith.constant 0 : index
    %c0_6 = arith.constant 0 : index
    %c0_7 = arith.constant 0 : index
    %3 = vector.load %arg3[%c0_4, %c0_5, %c0_6, %c0_7] : memref<1x16x16x4xbf16, #tpu.memory_space<vmem>>, vector<1x16x16x4xbf16>
    %4 = vector.shape_cast %3 : vector<1x16x16x4xbf16> to vector<16x16x4xbf16>
    %c1 = arith.constant 1 : index
    %c1_8 = arith.constant 1 : index
    %c0_9 = arith.constant 0 : index
    %5 = vector.load %arg9[%c1, %c1_8, %c0_9] : memref<18x18x4xbf16, #tpu.memory_space<vmem>>, vector<16x16x4xbf16>
    tpu.vector_store %arg9[%c1, %c1_8, %c0_9], %4 {strides = array<i32>} : memref<18x18x4xbf16, #tpu.memory_space<vmem>>, vector<16x16x4xbf16>,
    %c0_10 = arith.constant 0 : index
    %c0_11 = arith.constant 0 : index
    %c0_12 = arith.constant 0 : index
    %c0_13 = arith.constant 0 : index
    %6 = vector.load %arg4[%c0_10, %c0_11, %c0_12, %c0_13] : memref<1x1x16x4xbf16, #tpu.memory_space<vmem>>, vector<1x1x16x4xbf16>
    %7 = vector.shape_cast %6 : vector<1x1x16x4xbf16> to vector<16x4xbf16>
    %c0_14 = arith.constant 0 : index
    %c0_15 = arith.constant 0 : index
    %c0_16 = arith.constant 0 : index
    %c0_17 = arith.constant 0 : index
    %8 = vector.load %arg5[%c0_14, %c0_15, %c0_16, %c0_17] : memref<1x1x16x4xbf16, #tpu.memory_space<vmem>>, vector<1x1x16x4xbf16>
    %9 = vector.shape_cast %8 : vector<1x1x16x4xbf16> to vector<16x4xbf16>
    %c0_i32 = arith.constant 0 : i32
    %10 = arith.cmpi sgt, %arg2, %c0_i32 : i32
    %cst_18 = arith.constant 0.000000e+00 : bf16
    %11 = vector.broadcast %cst_18 : bf16 to vector<16x4xbf16>
    %12 = arith.select %10, %7, %11 : vector<16x4xbf16>
    %c0_i32_19 = arith.constant 0 : i32
    %13 = arith.cmpi slt, %arg2, %c0_i32_19 : i32
    %cst_20 = arith.constant 0.000000e+00 : bf16
    %14 = vector.broadcast %cst_20 : bf16 to vector<16x4xbf16>
    %15 = arith.select %13, %9, %14 : vector<16x4xbf16>
    %c0_21 = arith.constant 0 : index
    %c1_22 = arith.constant 1 : index
    %c0_23 = arith.constant 0 : index
    %16 = vector.load %arg9[%c0_21, %c1_22, %c0_23] : memref<18x18x4xbf16, #tpu.memory_space<vmem>>, vector<1x16x4xbf16>
    %17 = vector.shape_cast %16 : vector<1x16x4xbf16> to vector<16x4xbf16>
    %18 = vector.shape_cast %12 : vector<16x4xbf16> to vector<1x16x4xbf16>
    tpu.vector_store %arg9[%c0_21, %c1_22, %c0_23], %18 {strides = array<i32>} : memref<18x18x4xbf16, #tpu.memory_space<vmem>>, vector<1x16x4xbf16>,
    %c17_24 = arith.constant 17 : index
    %c1_25 = arith.constant 1 : index
    %c0_26 = arith.constant 0 : index
    %19 = vector.load %arg9[%c17_24, %c1_25, %c0_26] : memref<18x18x4xbf16, #tpu.memory_space<vmem>>, vector<1x16x4xbf16>
    %20 = vector.shape_cast %19 : vector<1x16x4xbf16> to vector<16x4xbf16>
    %21 = vector.shape_cast %15 : vector<16x4xbf16> to vector<1x16x4xbf16>
    tpu.vector_store %arg9[%c17_24, %c1_25, %c0_26], %21 {strides = array<i32>} : memref<18x18x4xbf16, #tpu.memory_space<vmem>>, vector<1x16x4xbf16>,
    %c0_27 = arith.constant 0 : index
    %c0_28 = arith.constant 0 : index
    %22 = vector.load %arg7[%c0_27, %c0_28] : memref<1x4xf32, #tpu.memory_space<vmem>>, vector<1x4xf32>
    %c0_29 = arith.constant 0 : index
    %c0_30 = arith.constant 0 : index
    %c0_31 = arith.constant 0 : index
    %23 = vector.load %arg9[%c0_29, %c0_30, %c0_31] : memref<18x18x4xbf16, #tpu.memory_space<vmem>>, vector<16x16x4xbf16>
    %c0_32 = arith.constant 0 : index
    %c1_33 = arith.constant 1 : index
    %c0_34 = arith.constant 0 : index
    %24 = vector.load %arg9[%c0_32, %c1_33, %c0_34] : memref<18x18x4xbf16, #tpu.memory_space<vmem>>, vector<16x16x4xbf16>
    %c1_35 = arith.constant 1 : index
    %c0_36 = arith.constant 0 : index
    %c0_37 = arith.constant 0 : index
    %25 = vector.load %arg9[%c1_35, %c0_36, %c0_37] : memref<18x18x4xbf16, #tpu.memory_space<vmem>>, vector<16x16x4xbf16>
    %c1_38 = arith.constant 1 : index
    %c1_39 = arith.constant 1 : index
    %c0_40 = arith.constant 0 : index
    %26 = vector.load %arg9[%c1_38, %c1_39, %c0_40] : memref<18x18x4xbf16, #tpu.memory_space<vmem>>, vector<16x16x4xbf16>
    %27 = tpu.concatenate %23, %24, %25, %26 in 2 : vector<16x16x4xbf16>, vector<16x16x4xbf16>, vector<16x16x4xbf16>, vector<16x16x4xbf16> -> vector<16x16x16xbf16>
    %28 = vector.shape_cast %27 : vector<16x16x16xbf16> to vector<256x16xbf16>
    %c0_41 = arith.constant 0 : index
    %c0_42 = arith.constant 0 : index
    %c0_43 = arith.constant 0 : index
    %29 = vector.load %arg6[%c0_41, %c0_42, %c0_43] : memref<4x16x4xbf16, #tpu.memory_space<vmem>>, vector<1x16x4xbf16>
    %30 = vector.shape_cast %29 : vector<1x16x4xbf16> to vector<16x4xbf16>
    %cst_44 = arith.constant dense<0.000000e+00> : vector<256x4xf32>
    %31 = tpu.matmul %28, %30, %cst_44 {dimension_numbers = #tpu.dot_dimension_numbers<[1], [0], [0], [1], [0, 0, 1, 1], [], []>} : vector<256x16xbf16>, vector<16x4xbf16>, vector<256x4xf32> -> vector<256x4xf32>
    %32 = vector.broadcast %22 : vector<1x4xf32> to vector<256x4xf32>
    %33 = arith.addf %31, %32 : vector<256x4xf32>
    %34 = arith.truncf %33 : vector<256x4xf32> to vector<256x4xbf16>
    %c0_45 = arith.constant 0 : index
    %c0_46 = arith.constant 0 : index
    %c0_47 = arith.constant 0 : index
    %c0_48 = arith.constant 0 : index
    %35 = vector.load %arg8[%c0_45, %c0_46, %c0_47, %c0_48] : memref<1x4x256x4xbf16, #tpu.memory_space<vmem>>, vector<1x1x256x4xbf16>
    %36 = vector.shape_cast %35 : vector<1x1x256x4xbf16> to vector<256x4xbf16>
    %37 = vector.shape_cast %34 : vector<256x4xbf16> to vector<1x1x256x4xbf16>
    tpu.vector_store %arg8[%c0_45, %c0_46, %c0_47, %c0_48], %37 {strides = array<i32>} : memref<1x4x256x4xbf16, #tpu.memory_space<vmem>>, vector<1x1x256x4xbf16>,
    %c0_49 = arith.constant 0 : index
    %c1_50 = arith.constant 1 : index
    %c0_51 = arith.constant 0 : index
    %38 = vector.load %arg9[%c0_49, %c1_50, %c0_51] : memref<18x18x4xbf16, #tpu.memory_space<vmem>>, vector<16x16x4xbf16>
    %c0_52 = arith.constant 0 : index
    %c2 = arith.constant 2 : index
    %c0_53 = arith.constant 0 : index
    %39 = vector.load %arg9[%c0_52, %c2, %c0_53] : memref<18x18x4xbf16, #tpu.memory_space<vmem>>, vector<16x16x4xbf16>
    %c1_54 = arith.constant 1 : index
    %c1_55 = arith.constant 1 : index
    %c0_56 = arith.constant 0 : index
    %40 = vector.load %arg9[%c1_54, %c1_55, %c0_56] : memref<18x18x4xbf16, #tpu.memory_space<vmem>>, vector<16x16x4xbf16>
    %c1_57 = arith.constant 1 : index
    %c2_58 = arith.constant 2 : index
    %c0_59 = arith.constant 0 : index
    %41 = vector.load %arg9[%c1_57, %c2_58, %c0_59] : memref<18x18x4xbf16, #tpu.memory_space<vmem>>, vector<16x16x4xbf16>
    %42 = tpu.concatenate %38, %39, %40, %41 in 2 : vector<16x16x4xbf16>, vector<16x16x4xbf16>, vector<16x16x4xbf16>, vector<16x16x4xbf16> -> vector<16x16x16xbf16>
    %43 = vector.shape_cast %42 : vector<16x16x16xbf16> to vector<256x16xbf16>
    %c1_60 = arith.constant 1 : index
    %c0_61 = arith.constant 0 : index
    %c0_62 = arith.constant 0 : index
    %44 = vector.load %arg6[%c1_60, %c0_61, %c0_62] : memref<4x16x4xbf16, #tpu.memory_space<vmem>>, vector<1x16x4xbf16>
    %45 = vector.shape_cast %44 : vector<1x16x4xbf16> to vector<16x4xbf16>
    %cst_63 = arith.constant dense<0.000000e+00> : vector<256x4xf32>
    %46 = tpu.matmul %43, %45, %cst_63 {dimension_numbers = #tpu.dot_dimension_numbers<[1], [0], [0], [1], [0, 0, 1, 1], [], []>} : vector<256x16xbf16>, vector<16x4xbf16>, vector<256x4xf32> -> vector<256x4xf32>
    %47 = vector.broadcast %22 : vector<1x4xf32> to vector<256x4xf32>
    %48 = arith.addf %46, %47 : vector<256x4xf32>
    %49 = arith.truncf %48 : vector<256x4xf32> to vector<256x4xbf16>
    %c0_64 = arith.constant 0 : index
    %c1_65 = arith.constant 1 : index
    %c0_66 = arith.constant 0 : index
    %c0_67 = arith.constant 0 : index
    %50 = vector.load %arg8[%c0_64, %c1_65, %c0_66, %c0_67] : memref<1x4x256x4xbf16, #tpu.memory_space<vmem>>, vector<1x1x256x4xbf16>
    %51 = vector.shape_cast %50 : vector<1x1x256x4xbf16> to vector<256x4xbf16>
    %52 = vector.shape_cast %49 : vector<256x4xbf16> to vector<1x1x256x4xbf16>
    tpu.vector_store %arg8[%c0_64, %c1_65, %c0_66, %c0_67], %52 {strides = array<i32>} : memref<1x4x256x4xbf16, #tpu.memory_space<vmem>>, vector<1x1x256x4xbf16>,
    %c1_68 = arith.constant 1 : index
    %c0_69 = arith.constant 0 : index
    %c0_70 = arith.constant 0 : index
    %53 = vector.load %arg9[%c1_68, %c0_69, %c0_70] : memref<18x18x4xbf16, #tpu.memory_space<vmem>>, vector<16x16x4xbf16>
    %c1_71 = arith.constant 1 : index
    %c1_72 = arith.constant 1 : index
    %c0_73 = arith.constant 0 : index
    %54 = vector.load %arg9[%c1_71, %c1_72, %c0_73] : memref<18x18x4xbf16, #tpu.memory_space<vmem>>, vector<16x16x4xbf16>
    %c2_74 = arith.constant 2 : index
    %c0_75 = arith.constant 0 : index
    %c0_76 = arith.constant 0 : index
    %55 = vector.load %arg9[%c2_74, %c0_75, %c0_76] : memref<18x18x4xbf16, #tpu.memory_space<vmem>>, vector<16x16x4xbf16>
    %c2_77 = arith.constant 2 : index
    %c1_78 = arith.constant 1 : index
    %c0_79 = arith.constant 0 : index
    %56 = vector.load %arg9[%c2_77, %c1_78, %c0_79] : memref<18x18x4xbf16, #tpu.memory_space<vmem>>, vector<16x16x4xbf16>
    %57 = tpu.concatenate %53, %54, %55, %56 in 2 : vector<16x16x4xbf16>, vector<16x16x4xbf16>, vector<16x16x4xbf16>, vector<16x16x4xbf16> -> vector<16x16x16xbf16>
    %58 = vector.shape_cast %57 : vector<16x16x16xbf16> to vector<256x16xbf16>
    %c2_80 = arith.constant 2 : index
    %c0_81 = arith.constant 0 : index
    %c0_82 = arith.constant 0 : index
    %59 = vector.load %arg6[%c2_80, %c0_81, %c0_82] : memref<4x16x4xbf16, #tpu.memory_space<vmem>>, vector<1x16x4xbf16>
    %60 = vector.shape_cast %59 : vector<1x16x4xbf16> to vector<16x4xbf16>
    %cst_83 = arith.constant dense<0.000000e+00> : vector<256x4xf32>
    %61 = tpu.matmul %58, %60, %cst_83 {dimension_numbers = #tpu.dot_dimension_numbers<[1], [0], [0], [1], [0, 0, 1, 1], [], []>} : vector<256x16xbf16>, vector<16x4xbf16>, vector<256x4xf32> -> vector<256x4xf32>
    %62 = vector.broadcast %22 : vector<1x4xf32> to vector<256x4xf32>
    %63 = arith.addf %61, %62 : vector<256x4xf32>
    %64 = arith.truncf %63 : vector<256x4xf32> to vector<256x4xbf16>
    %c0_84 = arith.constant 0 : index
    %c2_85 = arith.constant 2 : index
    %c0_86 = arith.constant 0 : index
    %c0_87 = arith.constant 0 : index
    %65 = vector.load %arg8[%c0_84, %c2_85, %c0_86, %c0_87] : memref<1x4x256x4xbf16, #tpu.memory_space<vmem>>, vector<1x1x256x4xbf16>
    %66 = vector.shape_cast %65 : vector<1x1x256x4xbf16> to vector<256x4xbf16>
    %67 = vector.shape_cast %64 : vector<256x4xbf16> to vector<1x1x256x4xbf16>
    tpu.vector_store %arg8[%c0_84, %c2_85, %c0_86, %c0_87], %67 {strides = array<i32>} : memref<1x4x256x4xbf16, #tpu.memory_space<vmem>>, vector<1x1x256x4xbf16>,
    %c1_88 = arith.constant 1 : index
    %c1_89 = arith.constant 1 : index
    %c0_90 = arith.constant 0 : index
    %68 = vector.load %arg9[%c1_88, %c1_89, %c0_90] : memref<18x18x4xbf16, #tpu.memory_space<vmem>>, vector<16x16x4xbf16>
    %c1_91 = arith.constant 1 : index
    %c2_92 = arith.constant 2 : index
    %c0_93 = arith.constant 0 : index
    %69 = vector.load %arg9[%c1_91, %c2_92, %c0_93] : memref<18x18x4xbf16, #tpu.memory_space<vmem>>, vector<16x16x4xbf16>
    %c2_94 = arith.constant 2 : index
    %c1_95 = arith.constant 1 : index
    %c0_96 = arith.constant 0 : index
    %70 = vector.load %arg9[%c2_94, %c1_95, %c0_96] : memref<18x18x4xbf16, #tpu.memory_space<vmem>>, vector<16x16x4xbf16>
    %c2_97 = arith.constant 2 : index
    %c2_98 = arith.constant 2 : index
    %c0_99 = arith.constant 0 : index
    %71 = vector.load %arg9[%c2_97, %c2_98, %c0_99] : memref<18x18x4xbf16, #tpu.memory_space<vmem>>, vector<16x16x4xbf16>
    %72 = tpu.concatenate %68, %69, %70, %71 in 2 : vector<16x16x4xbf16>, vector<16x16x4xbf16>, vector<16x16x4xbf16>, vector<16x16x4xbf16> -> vector<16x16x16xbf16>
    %73 = vector.shape_cast %72 : vector<16x16x16xbf16> to vector<256x16xbf16>
    %c3 = arith.constant 3 : index
    %c0_100 = arith.constant 0 : index
    %c0_101 = arith.constant 0 : index
    %74 = vector.load %arg6[%c3, %c0_100, %c0_101] : memref<4x16x4xbf16, #tpu.memory_space<vmem>>, vector<1x16x4xbf16>
    %75 = vector.shape_cast %74 : vector<1x16x4xbf16> to vector<16x4xbf16>
    %cst_102 = arith.constant dense<0.000000e+00> : vector<256x4xf32>
    %76 = tpu.matmul %73, %75, %cst_102 {dimension_numbers = #tpu.dot_dimension_numbers<[1], [0], [0], [1], [0, 0, 1, 1], [], []>} : vector<256x16xbf16>, vector<16x4xbf16>, vector<256x4xf32> -> vector<256x4xf32>
    %77 = vector.broadcast %22 : vector<1x4xf32> to vector<256x4xf32>
    %78 = arith.addf %76, %77 : vector<256x4xf32>
    %79 = arith.truncf %78 : vector<256x4xf32> to vector<256x4xbf16>
    %c0_103 = arith.constant 0 : index
    %c3_104 = arith.constant 3 : index
    %c0_105 = arith.constant 0 : index
    %c0_106 = arith.constant 0 : index
    %80 = vector.load %arg8[%c0_103, %c3_104, %c0_105, %c0_106] : memref<1x4x256x4xbf16, #tpu.memory_space<vmem>>, vector<1x1x256x4xbf16>
    %81 = vector.shape_cast %80 : vector<1x1x256x4xbf16> to vector<256x4xbf16>
    %82 = vector.shape_cast %79 : vector<256x4xbf16> to vector<1x1x256x4xbf16>
    tpu.vector_store %arg8[%c0_103, %c3_104, %c0_105, %c0_106], %82 {strides = array<i32>} : memref<1x4x256x4xbf16, #tpu.memory_space<vmem>>, vector<1x1x256x4xbf16>,
    return
  }
  func.func @transform_0(%arg0: i32, %arg1: i32, %arg2: i32) -> (i32, i32, i32, i32) {
    %c0_i32 = arith.constant 0 : i32
    %c0_i32_0 = arith.constant 0 : i32
    %c0_i32_1 = arith.constant 0 : i32
    return %arg0, %arg2, %c0_i32, %c0_i32_0 : i32, i32, i32, i32
  }
  func.func @transform_1(%arg0: i32, %arg1: i32, %arg2: i32) -> (i32, i32, i32, i32) {
    %c16_i32 = arith.constant 16 : i32
    %0 = arith.muli %arg2, %c16_i32 : i32
    %c1_i32 = arith.constant 1 : i32
    %1 = arith.subi %0, %c1_i32 : i32
    %c0_i32 = arith.constant 0 : i32
    %2 = arith.maxsi %1, %c0_i32 : i32
    %c0_i32_0 = arith.constant 0 : i32
    %c0_i32_1 = arith.constant 0 : i32
    %c0_i32_2 = arith.constant 0 : i32
    return %arg0, %2, %c0_i32_0, %c0_i32_1 : i32, i32, i32, i32
  }
  func.func @transform_2(%arg0: i32, %arg1: i32, %arg2: i32) -> (i32, i32, i32, i32) {
    %c16_i32 = arith.constant 16 : i32
    %0 = arith.muli %arg2, %c16_i32 : i32
    %c16_i32_0 = arith.constant 16 : i32
    %1 = arith.addi %0, %c16_i32_0 : i32
    %c15_i32 = arith.constant 15 : i32
    %2 = arith.minsi %1, %c15_i32 : i32
    %c0_i32 = arith.constant 0 : i32
    %c0_i32_1 = arith.constant 0 : i32
    %c0_i32_2 = arith.constant 0 : i32
    return %arg0, %2, %c0_i32, %c0_i32_1 : i32, i32, i32, i32
  }
  func.func @transform_3(%arg0: i32, %arg1: i32, %arg2: i32) -> (i32, i32, i32) {
    %c0_i32 = arith.constant 0 : i32
    %c0_i32_0 = arith.constant 0 : i32
    %c0_i32_1 = arith.constant 0 : i32
    return %c0_i32, %c0_i32_0, %arg1 : i32, i32, i32
  }
  func.func @transform_4(%arg0: i32, %arg1: i32, %arg2: i32) -> (i32, i32) {
    %c0_i32 = arith.constant 0 : i32
    %c0_i32_0 = arith.constant 0 : i32
    return %c0_i32, %arg1 : i32, i32
  }
  func.func @transform_5(%arg0: i32, %arg1: i32, %arg2: i32) -> (i32, i32, i32, i32) {
    %c0_i32 = arith.constant 0 : i32
    %c0_i32_0 = arith.constant 0 : i32
    return %arg0, %c0_i32, %arg2, %arg1 : i32, i32, i32, i32
  }
}

</mosaic_0001>

<llo_original>
// kernel: tpu_custom_call.1
$region0: #{tpu_custom_call.1}
  #allocation0 [shape = 'u32[]', space=smem, size = 0x4, offset = 0x4, fixed_abs, tag = 'smem constant byte address 0x4 - core index']
  #allocation1 [shape = 'u32[144,128]{1,0:T(1,128)}', space=vmem, size = 0x12000, scoped, tag = 'internal scratch']
  #allocation2 [shape = 'bf16[18,18,4]{2,1,0:T(8,128)(2,1)}', space=vmem, size = 0x1b000, scoped, tag = 'scratch operand']
  %s0 = inlined_call_operand.vmem [shape: bf16[2,16,16,4], index: 0, kind: input, shape index: {}]
  %s1 = inlined_call_operand.vmem [shape: bf16[2,16,16,4], index: 1, kind: input, shape index: {}]
  %s2 = inlined_call_operand.vmem [shape: bf16[2,16,16,4], index: 2, kind: input, shape index: {}]
  %s3 = inlined_call_operand.vmem [shape: bf16[4,16,4], index: 3, kind: input, shape index: {}]
  %s4 = inlined_call_operand.vmem [shape: f32[1,4], index: 4, kind: input, shape index: {}]
  %s5 = inlined_call_operand.vmem [shape: bf16[2,4,256,4], index: 5, kind: output, shape index: {}]
  %s6 = sld [smem:[#allocation0]]
  $region53: #{tpu_custom_call.1} parent=0
    _
  %s8 = ssub.s32 1, %s6
  %s9 = scalar_select 0, %s8, %s6
  loop: start=0, step=1, limit=4
  $region2: #{tpu_custom_call.1} parent=0 // loop_pre_header
    _
  $region3: #{tpu_custom_call.1} parent=0 // loop_header
    %s11 = sphi 0, %s15
    %p12 = scmp.ge.s32.totalorder %s11, 4
    %s18 = sphi 0, %s37
    %s19 = sphi 0, %s33
    %s20 = sphi 0, %s29
    %s21 = sphi 0, %s18
    %s22 = sphi 0, %s19
    %s23 = sphi 0, %s20
    %s24 = sphi 0, %s21
    %s25 = sphi 0, %s22
    %s26 = sphi 0, %s23
    %s42 = sphi 0, %s44
    %s45 = sphi 0, %s42
    %s46 = sphi 0, %s45
    %s62 = sphi 0, %s46
    %s78 = sphi 0, %s80
    %s81 = sphi 0, %s78
    %s82 = sphi 0, %s81
    %s98 = sphi 0, %s82
    %s114 = sphi 0, %s116
    %s117 = sphi 0, %s114
    %s118 = sphi 0, %s117
    %s134 = sphi 0, %s118
    %s140 = sphi 0, %s142
    %s143 = sphi 0, %s140
    %s144 = sphi 0, %s143
    %s160 = sphi 0, %s144
    %s166 = sphi 0, %s168
    %s169 = sphi 0, %s166
    %s170 = sphi 0, %s169
    %s186 = sphi 0, %s170
    %s196 = sphi 0, %s198
    %s199 = sphi 0, %s196
    %s200 = sphi 0, %s199
    %s216 = sphi 0, %s200
  $region4: #{tpu_custom_call.1} parent=0 // loop_header_branch
    %14 = sbr.rel (%p12) target = $region8
  $region5: #{tpu_custom_call.1} parent=0 // loop_body
    %s16 = ssub.s32 %s11, 1
    %s17 = ssub.s32 %s11, 2
    %s27 = sadd.s32 1, %s20
    %p28 = scmp.ge.s32.totalorder %s27, 1
    %s29 = scalar_select %p28, 0, %s27
    %s30 = sadd.s32 1, %s19
    %s31 = scalar_select %p28, %s30, %s19
    %p32 = scmp.ge.s32.totalorder %s31, 1
    %s33 = scalar_select %p32, 0, %s31
    %s34 = sadd.s32 1, %s18
    %s35 = scalar_select %p32, %s34, %s18
    %p36 = scmp.ge.s32.totalorder %s35, 2
    %s37 = scalar_select %p36, 0, %s35
    %s38 = ssub.s32 %s18, %s37
    %s39 = ssub.s32 %s20, %s29
    %s40 = sor.u32 %s38, %s39
    %p41 = scmp.eq.s32.totalorder %s40, 0
    %s43 = sadd.s32 %s42, 1
    %s44 = scalar_select %p41, %s42, %s43
    %p47 = pneg %p41
    %p48 = scmp.eq.s32.totalorder %s11, 1
    %p49 = por %p47, %p48
    %p50 = scmp.ne.s32.totalorder %s42, %s45
    %p51 = scmp.eq.s32.totalorder %s11, 0
    %p52 = por %p50, %p51
    %p53 = scmp.ne.s32.totalorder %s42, %s45
    %p54 = scmp.eq.s32.totalorder %s16, 1
    %p55 = por %p53, %p54
    %p56 = scmp.ne.s32.totalorder %s45, %s46
    %p57 = scmp.eq.s32.totalorder %s16, 0
    %p58 = por %p56, %p57
    %p59 = scmp.ne.s32.totalorder %s45, %s46
    %p60 = scmp.eq.s32.totalorder %s17, 1
    %p61 = por %p59, %p60
    %p63 = scmp.ne.s32.totalorder %s46, %s62
    %p64 = scmp.eq.s32.totalorder %s17, 0
    %p65 = por %p63, %p64
    %s66 = smul.u32 %s20, 16
    %s67 = ssub.s32 %s66, 1
    %p68 = scmp.gt.s32.totalorder %s67, 0
    %s69 = scalar_select %p68, %s67, 0
    %s70 = smul.u32 %s29, 16
    %s71 = ssub.s32 %s70, 1
    %p72 = scmp.gt.s32.totalorder %s71, 0
    %s73 = scalar_select %p72, %s71, 0
    %s74 = ssub.s32 %s18, %s37
    %s75 = ssub.s32 %s69, %s73
    %s76 = sor.u32 %s74, %s75
    %p77 = scmp.eq.s32.totalorder %s76, 0
    %s79 = sadd.s32 %s78, 1
    %s80 = scalar_select %p77, %s78, %s79
    %p83 = pneg %p77
    %p84 = scmp.eq.s32.totalorder %s11, 1
    %p85 = por %p83, %p84
    %p86 = scmp.ne.s32.totalorder %s78, %s81
    %p87 = scmp.eq.s32.totalorder %s11, 0
    %p88 = por %p86, %p87
    %p89 = scmp.ne.s32.totalorder %s78, %s81
    %p90 = scmp.eq.s32.totalorder %s16, 1
    %p91 = por %p89, %p90
    %p92 = scmp.ne.s32.totalorder %s81, %s82
    %p93 = scmp.eq.s32.totalorder %s16, 0
    %p94 = por %p92, %p93
    %p95 = scmp.ne.s32.totalorder %s81, %s82
    %p96 = scmp.eq.s32.totalorder %s17, 1
    %p97 = por %p95, %p96
    %p99 = scmp.ne.s32.totalorder %s82, %s98
    %p100 = scmp.eq.s32.totalorder %s17, 0
    %p101 = por %p99, %p100
    %s102 = smul.u32 %s20, 16
    %s103 = sadd.s32 %s102, 16
    %p104 = scmp.lt.s32.totalorder %s103, 15
    %s105 = scalar_select %p104, %s103, 15
    %s106 = smul.u32 %s29, 16
    %s107 = sadd.s32 %s106, 16
    %p108 = scmp.lt.s32.totalorder %s107, 15
    %s109 = scalar_select %p108, %s107, 15
    %s110 = ssub.s32 %s18, %s37
    %s111 = ssub.s32 %s105, %s109
    %s112 = sor.u32 %s110, %s111
    %p113 = scmp.eq.s32.totalorder %s112, 0
    %s115 = sadd.s32 %s114, 1
    %s116 = scalar_select %p113, %s114, %s115
    %p119 = pneg %p113
    %p120 = scmp.eq.s32.totalorder %s11, 1
    %p121 = por %p119, %p120
    %p122 = scmp.ne.s32.totalorder %s114, %s117
    %p123 = scmp.eq.s32.totalorder %s11, 0
    %p124 = por %p122, %p123
    %p125 = scmp.ne.s32.totalorder %s114, %s117
    %p126 = scmp.eq.s32.totalorder %s16, 1
    %p127 = por %p125, %p126
    %p128 = scmp.ne.s32.totalorder %s117, %s118
    %p129 = scmp.eq.s32.totalorder %s16, 0
    %p130 = por %p128, %p129
    %p131 = scmp.ne.s32.totalorder %s117, %s118
    %p132 = scmp.eq.s32.totalorder %s17, 1
    %p133 = por %p131, %p132
    %p135 = scmp.ne.s32.totalorder %s118, %s134
    %p136 = scmp.eq.s32.totalorder %s17, 0
    %p137 = por %p135, %p136
    %s138 = ssub.s32 %s19, %s33
    %p139 = scmp.eq.s32.totalorder %s138, 0
    %s141 = sadd.s32 %s140, 1
    %s142 = scalar_select %p139, %s140, %s141
    %p145 = pneg %p139
    %p146 = scmp.eq.s32.totalorder %s11, 1
    %p147 = por %p145, %p146
    %p148 = scmp.ne.s32.totalorder %s140, %s143
    %p149 = scmp.eq.s32.totalorder %s11, 0
    %p150 = por %p148, %p149
    %p151 = scmp.ne.s32.totalorder %s140, %s143
    %p152 = scmp.eq.s32.totalorder %s16, 1
    %p153 = por %p151, %p152
    %p154 = scmp.ne.s32.totalorder %s143, %s144
    %p155 = scmp.eq.s32.totalorder %s16, 0
    %p156 = por %p154, %p155
    %p157 = scmp.ne.s32.totalorder %s143, %s144
    %p158 = scmp.eq.s32.totalorder %s17, 1
    %p159 = por %p157, %p158
    %p161 = scmp.ne.s32.totalorder %s144, %s160
    %p162 = scmp.eq.s32.totalorder %s17, 0
    %p163 = por %p161, %p162
    %s164 = ssub.s32 %s19, %s33
    %p165 = scmp.eq.s32.totalorder %s164, 0
    %s167 = sadd.s32 %s166, 1
    %s168 = scalar_select %p165, %s166, %s167
    %p171 = pneg %p165
    %p172 = scmp.eq.s32.totalorder %s11, 1
    %p173 = por %p171, %p172
    %p174 = scmp.ne.s32.totalorder %s166, %s169
    %p175 = scmp.eq.s32.totalorder %s11, 0
    %p176 = por %p174, %p175
    %p177 = scmp.ne.s32.totalorder %s166, %s169
    %p178 = scmp.eq.s32.totalorder %s16, 1
    %p179 = por %p177, %p178
    %p180 = scmp.ne.s32.totalorder %s169, %s170
    %p181 = scmp.eq.s32.totalorder %s16, 0
    %p182 = por %p180, %p181
    %p183 = scmp.ne.s32.totalorder %s169, %s170
    %p184 = scmp.eq.s32.totalorder %s17, 1
    %p185 = por %p183, %p184
    %p187 = scmp.ne.s32.totalorder %s170, %s186
    %p188 = scmp.eq.s32.totalorder %s17, 0
    %p189 = por %p187, %p188
    %s190 = ssub.s32 %s18, %s37
    %s191 = ssub.s32 %s20, %s29
    %s192 = sor.u32 %s190, %s191
    %s193 = ssub.s32 %s19, %s33
    %s194 = sor.u32 %s192, %s193
    %p195 = scmp.eq.s32.totalorder %s194, 0
    %s197 = sadd.s32 %s196, 1
    %s198 = scalar_select %p195, %s196, %s197
    %p201 = pneg %p195
    %p202 = scmp.eq.s32.totalorder %s11, 1
    %p203 = por %p201, %p202
    %p204 = scmp.ne.s32.totalorder %s196, %s199
    %p205 = scmp.eq.s32.totalorder %s11, 0
    %p206 = por %p204, %p205
    %p207 = scmp.ne.s32.totalorder %s196, %s199
    %p208 = scmp.eq.s32.totalorder %s16, 1
    %p209 = por %p207, %p208
    %p210 = scmp.ne.s32.totalorder %s199, %s200
    %p211 = scmp.eq.s32.totalorder %s16, 0
    %p212 = por %p210, %p211
    %p213 = scmp.ne.s32.totalorder %s199, %s200
    %p214 = scmp.eq.s32.totalorder %s17, 1
    %p215 = por %p213, %p214
    %p217 = scmp.ne.s32.totalorder %s200, %s216
    %p218 = scmp.eq.s32.totalorder %s17, 0
    %p219 = por %p217, %p218
    %p220 = scmp.le.s32.totalorder 1, %s11
    %p221 = scmp.lt.s32.totalorder %s11, 3
    %p222 = pnand %p220, %p221
    %p223 = pneg %p222
    // Predicated region
    $region9: #{tpu_custom_call.1} parent=5 // pred_check
      _
    $region10: #{tpu_custom_call.1} parent=5 // pred_check_branch
      %225 = sbr.rel (%p222) target = $region12
    $region11: #{tpu_custom_call.1} parent=5 // pred_region
      %s226 = ssub.s32 %s11, 1
      // Predicated region
      $region13: #{tpu_custom_call.1} parent=11 // pred_check
        %p227 = pneg %p156
      $region14: #{tpu_custom_call.1} parent=11 // pred_check_branch
        %229 = sbr.rel (%p227) target = $region16
      $region15: #{tpu_custom_call.1} parent=11 // pred_region
        %p230 = scmp.lt.s32.totalorder %s22, 0
        %s231 = scalar_select %p230, %s22, 0
        %s232 = smul.addr %s231, 4
        %s233 = scalar_lea.vmem %s3, %s232
      $region16: #{tpu_custom_call.1} parent=11 // pred_fallthru
        _
      // Predicated region
      $region17: #{tpu_custom_call.1} parent=11 // pred_check
        %p234 = pneg %p182
      $region18: #{tpu_custom_call.1} parent=11 // pred_check_branch
        %236 = sbr.rel (%p234) target = $region20
      $region19: #{tpu_custom_call.1} parent=11 // pred_region
        %p237 = scmp.lt.s32.totalorder %s22, 0
        %s238 = scalar_select %p237, %s22, 0
        %s239 = scalar_lea.vmem %s4, %s238
      $region20: #{tpu_custom_call.1} parent=11 // pred_fallthru
        _
    $region12: #{tpu_custom_call.1} parent=5 // pred_fallthru
      _
    %p240 = scmp.lt.s32.totalorder %s11, 2
    // Predicated region
    $region21: #{tpu_custom_call.1} parent=5 // pred_check
      %p241 = pneg %p240
    $region22: #{tpu_custom_call.1} parent=5 // pred_check_branch
      %243 = sbr.rel (%p241) target = $region24
    $region23: #{tpu_custom_call.1} parent=5 // pred_region
      // Predicated region
      $region25: #{tpu_custom_call.1} parent=23 // pred_check
        %p244 = pneg %p52
      $region26: #{tpu_custom_call.1} parent=23 // pred_check_branch
        %246 = sbr.rel (%p244) target = $region28
      $region27: #{tpu_custom_call.1} parent=23 // pred_region
        %s247 = smul.u32 16, %s20
        %p248 = scmp.lt.s32.totalorder %s18, 1
        %s249 = scalar_select %p248, %s18, 1
        %p250 = scmp.lt.s32.totalorder %s247, 15
        %s251 = scalar_select %p250, %s247, 15
        %s252 = smul.addr %s251, 2
        %s253 = smul.addr %s249, 32
        %s254 = sadd.s32 %s252, %s253
        %s255 = smul.addr %s254, 4
        %s256 = scalar_lea.vmem %s0, %s255
        %s257 = smul.u32 16, %s20
      $region28: #{tpu_custom_call.1} parent=23 // pred_fallthru
        _
      // Predicated region
      $region29: #{tpu_custom_call.1} parent=23 // pred_check
        %p258 = pneg %p88
      $region30: #{tpu_custom_call.1} parent=23 // pred_check_branch
        %260 = sbr.rel (%p258) target = $region32
      $region31: #{tpu_custom_call.1} parent=23 // pred_region
        %s261 = smul.u32 %s20, 16
        %s262 = ssub.s32 %s261, 1
        %p263 = scmp.gt.s32.totalorder %s262, 0
        %s264 = scalar_select %p263, %s262, 0
        %p265 = scmp.lt.s32.totalorder %s18, 1
        %s266 = scalar_select %p265, %s18, 1
        %p267 = scmp.lt.s32.totalorder %s264, 15
        %s268 = scalar_select %p267, %s264, 15
        %s269 = smul.addr %s268, 2
        %s270 = smul.addr %s266, 32
        %s271 = sadd.s32 %s269, %s270
        %s272 = smul.addr %s271, 4
        %s273 = scalar_lea.vmem %s1, %s272
        %s274 = smul.u32 %s20, 16
        %s275 = ssub.s32 %s274, 1
        %p276 = scmp.gt.s32.totalorder %s275, 0
        %s277 = scalar_select %p276, %s275, 0
      $region32: #{tpu_custom_call.1} parent=23 // pred_fallthru
        _
      // Predicated region
      $region33: #{tpu_custom_call.1} parent=23 // pred_check
        %p278 = pneg %p124
      $region34: #{tpu_custom_call.1} parent=23 // pred_check_branch
        %280 = sbr.rel (%p278) target = $region36
      $region35: #{tpu_custom_call.1} parent=23 // pred_region
        %s281 = smul.u32 %s20, 16
        %s282 = sadd.s32 %s281, 16
        %p283 = scmp.lt.s32.totalorder %s282, 15
        %s284 = scalar_select %p283, %s282, 15
        %p285 = scmp.lt.s32.totalorder %s18, 1
        %s286 = scalar_select %p285, %s18, 1
        %p287 = scmp.lt.s32.totalorder %s284, 15
        %s288 = scalar_select %p287, %s284, 15
        %s289 = smul.addr %s288, 2
        %s290 = smul.addr %s286, 32
        %s291 = sadd.s32 %s289, %s290
        %s292 = smul.addr %s291, 4
        %s293 = scalar_lea.vmem %s2, %s292
        %s294 = smul.u32 %s20, 16
        %s295 = sadd.s32 %s294, 16
        %p296 = scmp.lt.s32.totalorder %s295, 15
        %s297 = scalar_select %p296, %s295, 15
      $region36: #{tpu_custom_call.1} parent=23 // pred_fallthru
        _
    $region24: #{tpu_custom_call.1} parent=5 // pred_fallthru
      _
    %p298 = scmp.le.s32.totalorder 1, %s11
    %p299 = scmp.lt.s32.totalorder %s11, 3
    %p300 = pnand %p298, %p299
    %p301 = pneg %p300
    // Predicated region
    $region37: #{tpu_custom_call.1} parent=5 // pred_check
      _
    $region38: #{tpu_custom_call.1} parent=5 // pred_check_branch
      %303 = sbr.rel (%p300) target = $region40
    $region39: #{tpu_custom_call.1} parent=5 // pred_region
      %s304 = ssub.s32 %s11, 1
      %s305 = smul.u32 16, %s23
      %p306 = scmp.lt.s32.totalorder %s21, 1
      %s307 = scalar_select %p306, %s21, 1
      %p308 = scmp.lt.s32.totalorder %s305, 15
      %s309 = scalar_select %p308, %s305, 15
      %s310 = smul.addr %s309, 2
      %s311 = smul.addr %s307, 32
      %s312 = sadd.s32 %s310, %s311
      %s313 = smul.addr %s312, 4
      %s314 = scalar_lea.vmem %s0, %s313
      %p315 = pneg %p58
      %p316 = pneg %p55
      %s317 = smul.u32 %s23, 16
      %s318 = ssub.s32 %s317, 1
      %p319 = scmp.gt.s32.totalorder %s318, 0
      %s320 = scalar_select %p319, %s318, 0
      %p321 = scmp.lt.s32.totalorder %s21, 1
      %s322 = scalar_select %p321, %s21, 1
      %p323 = scmp.lt.s32.totalorder %s320, 15
      %s324 = scalar_select %p323, %s320, 15
      %s325 = smul.addr %s324, 2
      %s326 = smul.addr %s322, 32
      %s327 = sadd.s32 %s325, %s326
      %s328 = smul.addr %s327, 4
      %s329 = scalar_lea.vmem %s1, %s328
      %p330 = pneg %p94
      %p331 = pneg %p91
      %s332 = smul.u32 %s23, 16
      %s333 = sadd.s32 %s332, 16
      %p334 = scmp.lt.s32.totalorder %s333, 15
      %s335 = scalar_select %p334, %s333, 15
      %p336 = scmp.lt.s32.totalorder %s21, 1
      %s337 = scalar_select %p336, %s21, 1
      %p338 = scmp.lt.s32.totalorder %s335, 15
      %s339 = scalar_select %p338, %s335, 15
      %s340 = smul.addr %s339, 2
      %s341 = smul.addr %s337, 32
      %s342 = sadd.s32 %s340, %s341
      %s343 = smul.addr %s342, 4
      %s344 = scalar_lea.vmem %s2, %s343
      %p345 = pneg %p130
      %p346 = pneg %p127
      %p347 = scmp.lt.s32.totalorder %s22, 0
      %s348 = scalar_select %p347, %s22, 0
      %s349 = smul.addr %s348, 4
      %s350 = scalar_lea.vmem %s3, %s349
      %p351 = pneg %p156
      %p352 = pneg %p153
      %p353 = scmp.lt.s32.totalorder %s22, 0
      %s354 = scalar_select %p353, %s22, 0
      %s355 = scalar_lea.vmem %s4, %s354
      %p356 = pneg %p182
      %p357 = pneg %p179
      %p358 = pneg %p212
      %p359 = pneg %p209
      %s360 = smul.u32 32, %s23
      %p361 = scmp.lt.s32.totalorder %s21, 1
      %s362 = scalar_select %p361, %s21, 1
      %p363 = scmp.lt.s32.totalorder %s360, 31
      %s364 = scalar_select %p363, %s360, 31
      %p365 = scmp.lt.s32.totalorder %s22, 0
      %s366 = scalar_select %p365, %s22, 0
      %s367 = sadd.s32 %s366, %s364
      %s368 = smul.addr %s362, 128
      %s369 = sadd.s32 %s367, %s368
      %s370 = smul.addr %s369, 4
      %s371 = scalar_lea.vmem %s5, %s370
      %s372 = smul.u32 16, %s23
      %p373 = scmp.lt.s32.totalorder %s21, 1
      %s374 = scalar_select %p373, %s21, 1
      %p375 = scmp.lt.s32.totalorder %s372, 15
      %s376 = scalar_select %p375, %s372, 15
      %s377 = smul.addr %s376, 2
      %s378 = smul.addr %s374, 32
      %s379 = sadd.s32 %s377, %s378
      %s380 = smul.addr %s379, 4
      %s381 = scalar_lea.vmem %s0, %s380
      %s382 = smul.u32 16, %s23
      %s383 = smul.u32 %s23, 16
      %s384 = ssub.s32 %s383, 1
      %p385 = scmp.gt.s32.totalorder %s384, 0
      %s386 = scalar_select %p385, %s384, 0
      %p387 = scmp.lt.s32.totalorder %s21, 1
      %s388 = scalar_select %p387, %s21, 1
      %p389 = scmp.lt.s32.totalorder %s386, 15
      %s390 = scalar_select %p389, %s386, 15
      %s391 = smul.addr %s390, 2
      %s392 = smul.addr %s388, 32
      %s393 = sadd.s32 %s391, %s392
      %s394 = smul.addr %s393, 4
      %s395 = scalar_lea.vmem %s1, %s394
      %s396 = smul.u32 %s23, 16
      %s397 = ssub.s32 %s396, 1
      %p398 = scmp.gt.s32.totalorder %s397, 0
      %s399 = scalar_select %p398, %s397, 0
      %s400 = smul.u32 %s23, 16
      %s401 = sadd.s32 %s400, 16
      %p402 = scmp.lt.s32.totalorder %s401, 15
      %s403 = scalar_select %p402, %s401, 15
      %p404 = scmp.lt.s32.totalorder %s21, 1
      %s405 = scalar_select %p404, %s21, 1
      %p406 = scmp.lt.s32.totalorder %s403, 15
      %s407 = scalar_select %p406, %s403, 15
      %s408 = smul.addr %s407, 2
      %s409 = smul.addr %s405, 32
      %s410 = sadd.s32 %s408, %s409
      %s411 = smul.addr %s410, 4
      %s412 = scalar_lea.vmem %s2, %s411
      %s413 = smul.u32 %s23, 16
      %s414 = sadd.s32 %s413, 16
      %p415 = scmp.lt.s32.totalorder %s414, 15
      %s416 = scalar_select %p415, %s414, 15
      %p417 = scmp.lt.s32.totalorder %s22, 0
      %s418 = scalar_select %p417, %s22, 0
      %s419 = smul.addr %s418, 4
      %s420 = scalar_lea.vmem %s3, %s419
      %p421 = scmp.lt.s32.totalorder %s22, 0
      %s422 = scalar_select %p421, %s22, 0
      %s423 = scalar_lea.vmem %s4, %s422
      %s424 = smul.u32 32, %s23
      %p425 = scmp.lt.s32.totalorder %s21, 1
      %s426 = scalar_select %p425, %s21, 1
      %p427 = scmp.lt.s32.totalorder %s424, 31
      %s428 = scalar_select %p427, %s424, 31
      %p429 = scmp.lt.s32.totalorder %s22, 0
      %s430 = scalar_select %p429, %s22, 0
      %s431 = sadd.s32 %s430, %s428
      %s432 = smul.addr %s426, 128
      %s433 = sadd.s32 %s431, %s432
      %s434 = smul.addr %s433, 4
      %s435 = scalar_lea.vmem %s5, %s434
      %s436 = smul.u32 32, %s23
      %vm438 = vcmask 24576
      %vm439 = vsmask.f32 256
      %vm440 = vmand %vm438, %vm439
      %v441 = vld [vmem:[#allocation2] sm:$0x1]
      %v442 = vsel %vm440, 0, %v441
      %443 = vst [vmem:[#allocation2] sm:$0x1] %v442
      %v444 = vld [vmem:[#allocation2 + $0xc] sm:$0x1]
      %v445 = vsel %vm440, 0, %v444
      %446 = vst [vmem:[#allocation2 + $0xc] sm:$0x1] %v445
      %v447 = vld [vmem:[#allocation2 + $0x18] sm:$0x1]
      %v448 = vsel %vm440, 0, %v447
      %449 = vst [vmem:[#allocation2 + $0x18] sm:$0x1] %v448
      %v450 = vld [vmem:[#allocation2 + $0x24] sm:$0x1]
      %v451 = vsel %vm440, 0, %v450
      %452 = vst [vmem:[#allocation2 + $0x24] sm:$0x1] %v451
      %v453 = vld [vmem:[#allocation2 + $0x30] sm:$0x1]
      %v454 = vsel %vm440, 0, %v453
      %455 = vst [vmem:[#allocation2 + $0x30] sm:$0x1] %v454
      %v456 = vld [vmem:[#allocation2 + $0x3c] sm:$0x1]
      %v457 = vsel %vm440, 0, %v456
      %458 = vst [vmem:[#allocation2 + $0x3c] sm:$0x1] %v457
      %v459 = vld [vmem:[#allocation2 + $0x48] sm:$0x1]
      %v460 = vsel %vm440, 0, %v459
      %461 = vst [vmem:[#allocation2 + $0x48] sm:$0x1] %v460
      %v462 = vld [vmem:[#allocation2 + $0x54] sm:$0x1]
      %v463 = vsel %vm440, 0, %v462
      %464 = vst [vmem:[#allocation2 + $0x54] sm:$0x1] %v463
      %v465 = vld [vmem:[#allocation2 + $0x60] sm:$0x1]
      %v466 = vsel %vm440, 0, %v465
      %467 = vst [vmem:[#allocation2 + $0x60] sm:$0x1] %v466
      %v468 = vld [vmem:[#allocation2 + $0x6c] sm:$0x1]
      %v469 = vsel %vm440, 0, %v468
      %470 = vst [vmem:[#allocation2 + $0x6c] sm:$0x1] %v469
      %v471 = vld [vmem:[#allocation2 + $0x78] sm:$0x1]
      %v472 = vsel %vm440, 0, %v471
      %473 = vst [vmem:[#allocation2 + $0x78] sm:$0x1] %v472
      %v474 = vld [vmem:[#allocation2 + $0x84] sm:$0x1]
      %v475 = vsel %vm440, 0, %v474
      %476 = vst [vmem:[#allocation2 + $0x84] sm:$0x1] %v475
      %v477 = vld [vmem:[#allocation2 + $0x90] sm:$0x1]
      %v478 = vsel %vm440, 0, %v477
      %479 = vst [vmem:[#allocation2 + $0x90] sm:$0x1] %v478
      %v480 = vld [vmem:[#allocation2 + $0x9c] sm:$0x1]
      %v481 = vsel %vm440, 0, %v480
      %482 = vst [vmem:[#allocation2 + $0x9c] sm:$0x1] %v481
      %v483 = vld [vmem:[#allocation2 + $0xa8] sm:$0x1]
      %v484 = vsel %vm440, 0, %v483
      %485 = vst [vmem:[#allocation2 + $0xa8] sm:$0x1] %v484
      %v486 = vld [vmem:[#allocation2 + $0xb4] sm:$0x1]
      %v487 = vsel %vm440, 0, %v486
      %488 = vst [vmem:[#allocation2 + $0xb4] sm:$0x1] %v487
      %v489 = vld [vmem:[#allocation2 + $0xc0] sm:$0x1]
      %v490 = vsel %vm440, 0, %v489
      %491 = vst [vmem:[#allocation2 + $0xc0] sm:$0x1] %v490
      %v492 = vld [vmem:[#allocation2 + $0xcc] sm:$0x1]
      %v493 = vsel %vm440, 0, %v492
      %494 = vst [vmem:[#allocation2 + $0xcc] sm:$0x1] %v493
      %vm495 = vsmask.f32 7938
      %vm496 = vmand %vm438, %vm495
      %v497 = vld [vmem:[#allocation2 + $0x8] sm:$0x1]
      %v498 = vsel %vm496, 0, %v497
      %499 = vst [vmem:[#allocation2 + $0x8] sm:$0x1] %v498
      %v500 = vld [vmem:[#allocation2 + $0x14] sm:$0x1]
      %v501 = vsel %vm496, 0, %v500
      %502 = vst [vmem:[#allocation2 + $0x14] sm:$0x1] %v501
      %v503 = vld [vmem:[#allocation2 + $0x20] sm:$0x1]
      %v504 = vsel %vm496, 0, %v503
      %505 = vst [vmem:[#allocation2 + $0x20] sm:$0x1] %v504
      %v506 = vld [vmem:[#allocation2 + $0x2c] sm:$0x1]
      %v507 = vsel %vm496, 0, %v506
      %508 = vst [vmem:[#allocation2 + $0x2c] sm:$0x1] %v507
      %v509 = vld [vmem:[#allocation2 + $0x38] sm:$0x1]
      %v510 = vsel %vm496, 0, %v509
      %511 = vst [vmem:[#allocation2 + $0x38] sm:$0x1] %v510
      %v512 = vld [vmem:[#allocation2 + $0x44] sm:$0x1]
      %v513 = vsel %vm496, 0, %v512
      %514 = vst [vmem:[#allocation2 + $0x44] sm:$0x1] %v513
      %v515 = vld [vmem:[#allocation2 + $0x50] sm:$0x1]
      %v516 = vsel %vm496, 0, %v515
      %517 = vst [vmem:[#allocation2 + $0x50] sm:$0x1] %v516
      %v518 = vld [vmem:[#allocation2 + $0x5c] sm:$0x1]
      %v519 = vsel %vm496, 0, %v518
      %520 = vst [vmem:[#allocation2 + $0x5c] sm:$0x1] %v519
      %v521 = vld [vmem:[#allocation2 + $0x68] sm:$0x1]
      %v522 = vsel %vm496, 0, %v521
      %523 = vst [vmem:[#allocation2 + $0x68] sm:$0x1] %v522
      %v524 = vld [vmem:[#allocation2 + $0x74] sm:$0x1]
      %v525 = vsel %vm496, 0, %v524
      %526 = vst [vmem:[#allocation2 + $0x74] sm:$0x1] %v525
      %v527 = vld [vmem:[#allocation2 + $0x80] sm:$0x1]
      %v528 = vsel %vm496, 0, %v527
      %529 = vst [vmem:[#allocation2 + $0x80] sm:$0x1] %v528
      %v530 = vld [vmem:[#allocation2 + $0x8c] sm:$0x1]
      %v531 = vsel %vm496, 0, %v530
      %532 = vst [vmem:[#allocation2 + $0x8c] sm:$0x1] %v531
      %v533 = vld [vmem:[#allocation2 + $0x98] sm:$0x1]
      %v534 = vsel %vm496, 0, %v533
      %535 = vst [vmem:[#allocation2 + $0x98] sm:$0x1] %v534
      %v536 = vld [vmem:[#allocation2 + $0xa4] sm:$0x1]
      %v537 = vsel %vm496, 0, %v536
      %538 = vst [vmem:[#allocation2 + $0xa4] sm:$0x1] %v537
      %v539 = vld [vmem:[#allocation2 + $0xb0] sm:$0x1]
      %v540 = vsel %vm496, 0, %v539
      %541 = vst [vmem:[#allocation2 + $0xb0] sm:$0x1] %v540
      %v542 = vld [vmem:[#allocation2 + $0xbc] sm:$0x1]
      %v543 = vsel %vm496, 0, %v542
      %544 = vst [vmem:[#allocation2 + $0xbc] sm:$0x1] %v543
      %v545 = vld [vmem:[#allocation2 + $0xc8] sm:$0x1]
      %v546 = vsel %vm496, 0, %v545
      %547 = vst [vmem:[#allocation2 + $0xc8] sm:$0x1] %v546
      %v548 = vld [vmem:[#allocation2 + $0xd4] sm:$0x1]
      %v549 = vsel %vm496, 0, %v548
      %550 = vst [vmem:[#allocation2 + $0xd4] sm:$0x1] %v549
      %v551 = vld [vmem:[%s381] sm:$0xf]
      %v552 = vld [vmem:[%s381 + $0x4] sm:$0xf]
      %v553 = vld [vmem:[%s381 + $0x8] sm:$0xf]
      %v554 = vld [vmem:[%s381 + $0xc] sm:$0xf]
      %v555 = vld [vmem:[%s381 + $0x10] sm:$0xf]
      %v556 = vld [vmem:[%s381 + $0x14] sm:$0xf]
      %v557 = vld [vmem:[%s381 + $0x18] sm:$0xf]
      %v558 = vld [vmem:[%s381 + $0x1c] sm:$0xf]
      %v559 = vld [vmem:[%s381 + $0x20] sm:$0xf]
      %v560 = vld [vmem:[%s381 + $0x24] sm:$0xf]
      %v561 = vld [vmem:[%s381 + $0x28] sm:$0xf]
      %v562 = vld [vmem:[%s381 + $0x2c] sm:$0xf]
      %v563 = vld [vmem:[%s381 + $0x30] sm:$0xf]
      %v564 = vld [vmem:[%s381 + $0x34] sm:$0xf]
      %v565 = vld [vmem:[%s381 + $0x38] sm:$0xf]
      %v566 = vld [vmem:[%s381 + $0x3c] sm:$0xf]
      %v567 = vld [vmem:[%s381 + $0x40] sm:$0xf]
      %v568 = vld [vmem:[%s381 + $0x44] sm:$0xf]
      %v569 = vld [vmem:[%s381 + $0x48] sm:$0xf]
      %v570 = vld [vmem:[%s381 + $0x4c] sm:$0xf]
      %v571 = vld [vmem:[%s381 + $0x50] sm:$0xf]
      %v572 = vld [vmem:[%s381 + $0x54] sm:$0xf]
      %v573 = vld [vmem:[%s381 + $0x58] sm:$0xf]
      %v574 = vld [vmem:[%s381 + $0x5c] sm:$0xf]
      %v575 = vld [vmem:[%s381 + $0x60] sm:$0xf]
      %v576 = vld [vmem:[%s381 + $0x64] sm:$0xf]
      %v577 = vld [vmem:[%s381 + $0x68] sm:$0xf]
      %v578 = vld [vmem:[%s381 + $0x6c] sm:$0xf]
      %v579 = vld [vmem:[%s381 + $0x70] sm:$0xf]
      %v580 = vld [vmem:[%s381 + $0x74] sm:$0xf]
      %v581 = vld [vmem:[%s381 + $0x78] sm:$0xf]
      %v582 = vld [vmem:[%s381 + $0x7c] sm:$0xf]
      %vm583 = vsmask.f32 4368
      %vm584 = vmor %vm439, %vm583
      %v586 = vshrl.u32 %v551, 16
      %v588 = vrot.slane %v586, 7
      %v589 = vshll.u32 %v551, 16
      %v591 = vor.u32 %v588, %v589
      %v592 = vrot.slane %v588, 4
      %v594 = vshrl.u32 %v552, 16
      %v596 = vrot.slane %v594, 7
      %v597 = vshll.u32 %v552, 16
      %v599 = vor.u32 %v596, %v597
      %v600 = vsel %vm584, %v592, %v599
      %v601 = vrot.slane %v596, 4
      %v603 = vshrl.u32 %v553, 16
      %v605 = vrot.slane %v603, 7
      %v606 = vshll.u32 %v553, 16
      %v608 = vor.u32 %v605, %v606
      %v609 = vrot.slane %v605, 4
      %v611 = vshrl.u32 %v554, 16
      %v613 = vrot.slane %v611, 7
      %v614 = vshll.u32 %v554, 16
      %v616 = vor.u32 %v613, %v614
      %v617 = vsel %vm584, %v609, %v616
      %v618 = vrot.slane %v613, 4
      %v620 = vshrl.u32 %v555, 16
      %v622 = vrot.slane %v620, 7
      %v623 = vshll.u32 %v555, 16
      %v625 = vor.u32 %v622, %v623
      %v626 = vrot.slane %v622, 4
      %v628 = vshrl.u32 %v556, 16
      %v630 = vrot.slane %v628, 7
      %v631 = vshll.u32 %v556, 16
      %v633 = vor.u32 %v630, %v631
      %v634 = vsel %vm584, %v626, %v633
      %v635 = vrot.slane %v630, 4
      %v637 = vshrl.u32 %v557, 16
      %v639 = vrot.slane %v637, 7
      %v640 = vshll.u32 %v557, 16
      %v642 = vor.u32 %v639, %v640
      %v643 = vrot.slane %v639, 4
      %v645 = vshrl.u32 %v558, 16
      %v647 = vrot.slane %v645, 7
      %v648 = vshll.u32 %v558, 16
      %v650 = vor.u32 %v647, %v648
      %v651 = vsel %vm584, %v643, %v650
      %v652 = vrot.slane %v647, 4
      %v654 = vshrl.u32 %v559, 16
      %v656 = vrot.slane %v654, 7
      %v657 = vshll.u32 %v559, 16
      %v659 = vor.u32 %v656, %v657
      %v660 = vrot.slane %v656, 4
      %v662 = vshrl.u32 %v560, 16
      %v664 = vrot.slane %v662, 7
      %v665 = vshll.u32 %v560, 16
      %v667 = vor.u32 %v664, %v665
      %v668 = vsel %vm584, %v660, %v667
      %v669 = vrot.slane %v664, 4
      %v671 = vshrl.u32 %v561, 16
      %v673 = vrot.slane %v671, 7
      %v674 = vshll.u32 %v561, 16
      %v676 = vor.u32 %v673, %v674
      %v677 = vrot.slane %v673, 4
      %v679 = vshrl.u32 %v562, 16
      %v681 = vrot.slane %v679, 7
      %v682 = vshll.u32 %v562, 16
      %v684 = vor.u32 %v681, %v682
      %v685 = vsel %vm584, %v677, %v684
      %v686 = vrot.slane %v681, 4
      %v688 = vshrl.u32 %v563, 16
      %v690 = vrot.slane %v688, 7
      %v691 = vshll.u32 %v563, 16
      %v693 = vor.u32 %v690, %v691
      %v694 = vrot.slane %v690, 4
      %v696 = vshrl.u32 %v564, 16
      %v698 = vrot.slane %v696, 7
      %v699 = vshll.u32 %v564, 16
      %v701 = vor.u32 %v698, %v699
      %v702 = vsel %vm584, %v694, %v701
      %v703 = vrot.slane %v698, 4
      %v705 = vshrl.u32 %v565, 16
      %v707 = vrot.slane %v705, 7
      %v708 = vshll.u32 %v565, 16
      %v710 = vor.u32 %v707, %v708
      %v711 = vrot.slane %v707, 4
      %v713 = vshrl.u32 %v566, 16
      %v715 = vrot.slane %v713, 7
      %v716 = vshll.u32 %v566, 16
      %v718 = vor.u32 %v715, %v716
      %v719 = vsel %vm584, %v711, %v718
      %v720 = vrot.slane %v715, 4
      %v722 = vshrl.u32 %v567, 16
      %v724 = vrot.slane %v722, 7
      %v725 = vshll.u32 %v567, 16
      %v727 = vor.u32 %v724, %v725
      %v728 = vrot.slane %v724, 4
      %v730 = vshrl.u32 %v568, 16
      %v732 = vrot.slane %v730, 7
      %v733 = vshll.u32 %v568, 16
      %v735 = vor.u32 %v732, %v733
      %v736 = vsel %vm584, %v728, %v735
      %v737 = vrot.slane %v732, 4
      %v739 = vshrl.u32 %v569, 16
      %v741 = vrot.slane %v739, 7
      %v742 = vshll.u32 %v569, 16
      %v744 = vor.u32 %v741, %v742
      %v745 = vrot.slane %v741, 4
      %v747 = vshrl.u32 %v570, 16
      %v749 = vrot.slane %v747, 7
      %v750 = vshll.u32 %v570, 16
      %v752 = vor.u32 %v749, %v750
      %v753 = vsel %vm584, %v745, %v752
      %v754 = vrot.slane %v749, 4
      %v756 = vshrl.u32 %v571, 16
      %v758 = vrot.slane %v756, 7
      %v759 = vshll.u32 %v571, 16
      %v761 = vor.u32 %v758, %v759
      %v762 = vrot.slane %v758, 4
      %v764 = vshrl.u32 %v572, 16
      %v766 = vrot.slane %v764, 7
      %v767 = vshll.u32 %v572, 16
      %v769 = vor.u32 %v766, %v767
      %v770 = vsel %vm584, %v762, %v769
      %v771 = vrot.slane %v766, 4
      %v773 = vshrl.u32 %v573, 16
      %v775 = vrot.slane %v773, 7
      %v776 = vshll.u32 %v573, 16
      %v778 = vor.u32 %v775, %v776
      %v779 = vrot.slane %v775, 4
      %v781 = vshrl.u32 %v574, 16
      %v783 = vrot.slane %v781, 7
      %v784 = vshll.u32 %v574, 16
      %v786 = vor.u32 %v783, %v784
      %v787 = vsel %vm584, %v779, %v786
      %v788 = vrot.slane %v783, 4
      %v790 = vshrl.u32 %v575, 16
      %v792 = vrot.slane %v790, 7
      %v793 = vshll.u32 %v575, 16
      %v795 = vor.u32 %v792, %v793
      %v796 = vrot.slane %v792, 4
      %v798 = vshrl.u32 %v576, 16
      %v800 = vrot.slane %v798, 7
      %v801 = vshll.u32 %v576, 16
      %v803 = vor.u32 %v800, %v801
      %v804 = vsel %vm584, %v796, %v803
      %v805 = vrot.slane %v800, 4
      %v807 = vshrl.u32 %v577, 16
      %v809 = vrot.slane %v807, 7
      %v810 = vshll.u32 %v577, 16
      %v812 = vor.u32 %v809, %v810
      %v813 = vrot.slane %v809, 4
      %v815 = vshrl.u32 %v578, 16
      %v817 = vrot.slane %v815, 7
      %v818 = vshll.u32 %v578, 16
      %v820 = vor.u32 %v817, %v818
      %v821 = vsel %vm584, %v813, %v820
      %v822 = vrot.slane %v817, 4
      %v824 = vshrl.u32 %v579, 16
      %v826 = vrot.slane %v824, 7
      %v827 = vshll.u32 %v579, 16
      %v829 = vor.u32 %v826, %v827
      %v830 = vrot.slane %v826, 4
      %v832 = vshrl.u32 %v580, 16
      %v834 = vrot.slane %v832, 7
      %v835 = vshll.u32 %v580, 16
      %v837 = vor.u32 %v834, %v835
      %v838 = vsel %vm584, %v830, %v837
      %v839 = vrot.slane %v834, 4
      %v841 = vshrl.u32 %v581, 16
      %v843 = vrot.slane %v841, 7
      %v844 = vshll.u32 %v581, 16
      %v846 = vor.u32 %v843, %v844
      %v847 = vrot.slane %v843, 4
      %v849 = vshrl.u32 %v582, 16
      %v851 = vrot.slane %v849, 7
      %v852 = vshll.u32 %v582, 16
      %v854 = vor.u32 %v851, %v852
      %v855 = vsel %vm584, %v847, %v854
      %v856 = vrot.slane %v851, 4
      %s905 = scalar_lea.vmem [#allocation2], 12
      %vm906 = vcmask 27648
      %vm907 = vmand %vm906, %vm495
      %v908 = vld [vmem:[%s905] sm:$0xf]
      %v909 = vsel %vm907, %v591, %v908
      %910 = vst [vmem:[%s905] sm:$0xf] %v909
      %vm911 = vcmask 27648
      %912 = vst.msk [vmem:[%s905 + $0x4] sm:$0xf] %vm911, %v600
      %v913 = vld [vmem:[%s905 + $0x8] sm:$0x1]
      %v914 = vsel %vm440, %v601, %v913
      %915 = vst [vmem:[%s905 + $0x8] sm:$0x1] %v914
      %v916 = vld [vmem:[%s905 + $0xc] sm:$0xf]
      %v917 = vsel %vm907, %v608, %v916
      %918 = vst [vmem:[%s905 + $0xc] sm:$0xf] %v917
      %919 = vst.msk [vmem:[%s905 + $0x10] sm:$0xf] %vm911, %v617
      %v920 = vld [vmem:[%s905 + $0x14] sm:$0x1]
      %v921 = vsel %vm440, %v618, %v920
      %922 = vst [vmem:[%s905 + $0x14] sm:$0x1] %v921
      %v923 = vld [vmem:[%s905 + $0x18] sm:$0xf]
      %v924 = vsel %vm907, %v625, %v923
      %925 = vst [vmem:[%s905 + $0x18] sm:$0xf] %v924
      %926 = vst.msk [vmem:[%s905 + $0x1c] sm:$0xf] %vm911, %v634
      %v927 = vld [vmem:[%s905 + $0x20] sm:$0x1]
      %v928 = vsel %vm440, %v635, %v927
      %929 = vst [vmem:[%s905 + $0x20] sm:$0x1] %v928
      %v930 = vld [vmem:[%s905 + $0x24] sm:$0xf]
      %v931 = vsel %vm907, %v642, %v930
      %932 = vst [vmem:[%s905 + $0x24] sm:$0xf] %v931
      %933 = vst.msk [vmem:[%s905 + $0x28] sm:$0xf] %vm911, %v651
      %v934 = vld [vmem:[%s905 + $0x2c] sm:$0x1]
      %v935 = vsel %vm440, %v652, %v934
      %936 = vst [vmem:[%s905 + $0x2c] sm:$0x1] %v935
      %v937 = vld [vmem:[%s905 + $0x30] sm:$0xf]
      %v938 = vsel %vm907, %v659, %v937
      %939 = vst [vmem:[%s905 + $0x30] sm:$0xf] %v938
      %940 = vst.msk [vmem:[%s905 + $0x34] sm:$0xf] %vm911, %v668
      %v941 = vld [vmem:[%s905 + $0x38] sm:$0x1]
      %v942 = vsel %vm440, %v669, %v941
      %943 = vst [vmem:[%s905 + $0x38] sm:$0x1] %v942
      %v944 = vld [vmem:[%s905 + $0x3c] sm:$0xf]
      %v945 = vsel %vm907, %v676, %v944
      %946 = vst [vmem:[%s905 + $0x3c] sm:$0xf] %v945
      %947 = vst.msk [vmem:[%s905 + $0x40] sm:$0xf] %vm911, %v685
      %v948 = vld [vmem:[%s905 + $0x44] sm:$0x1]
      %v949 = vsel %vm440, %v686, %v948
      %950 = vst [vmem:[%s905 + $0x44] sm:$0x1] %v949
      %v951 = vld [vmem:[%s905 + $0x48] sm:$0xf]
      %v952 = vsel %vm907, %v693, %v951
      %953 = vst [vmem:[%s905 + $0x48] sm:$0xf] %v952
      %954 = vst.msk [vmem:[%s905 + $0x4c] sm:$0xf] %vm911, %v702
      %v955 = vld [vmem:[%s905 + $0x50] sm:$0x1]
      %v956 = vsel %vm440, %v703, %v955
      %957 = vst [vmem:[%s905 + $0x50] sm:$0x1] %v956
      %v958 = vld [vmem:[%s905 + $0x54] sm:$0xf]
      %v959 = vsel %vm907, %v710, %v958
      %960 = vst [vmem:[%s905 + $0x54] sm:$0xf] %v959
      %961 = vst.msk [vmem:[%s905 + $0x58] sm:$0xf] %vm911, %v719
      %v962 = vld [vmem:[%s905 + $0x5c] sm:$0x1]
      %v963 = vsel %vm440, %v720, %v962
      %964 = vst [vmem:[%s905 + $0x5c] sm:$0x1] %v963
      %v965 = vld [vmem:[%s905 + $0x60] sm:$0xf]
      %v966 = vsel %vm907, %v727, %v965
      %967 = vst [vmem:[%s905 + $0x60] sm:$0xf] %v966
      %968 = vst.msk [vmem:[%s905 + $0x64] sm:$0xf] %vm911, %v736
      %v969 = vld [vmem:[%s905 + $0x68] sm:$0x1]
      %v970 = vsel %vm440, %v737, %v969
      %971 = vst [vmem:[%s905 + $0x68] sm:$0x1] %v970
      %v972 = vld [vmem:[%s905 + $0x6c] sm:$0xf]
      %v973 = vsel %vm907, %v744, %v972
      %974 = vst [vmem:[%s905 + $0x6c] sm:$0xf] %v973
      %975 = vst.msk [vmem:[%s905 + $0x70] sm:$0xf] %vm911, %v753
      %v976 = vld [vmem:[%s905 + $0x74] sm:$0x1]
      %v977 = vsel %vm440, %v754, %v976
      %978 = vst [vmem:[%s905 + $0x74] sm:$0x1] %v977
      %v979 = vld [vmem:[%s905 + $0x78] sm:$0xf]
      %v980 = vsel %vm907, %v761, %v979
      %981 = vst [vmem:[%s905 + $0x78] sm:$0xf] %v980
      %982 = vst.msk [vmem:[%s905 + $0x7c] sm:$0xf] %vm911, %v770
      %v983 = vld [vmem:[%s905 + $0x80] sm:$0x1]
      %v984 = vsel %vm440, %v771, %v983
      %985 = vst [vmem:[%s905 + $0x80] sm:$0x1] %v984
      %v986 = vld [vmem:[%s905 + $0x84] sm:$0xf]
      %v987 = vsel %vm907, %v778, %v986
      %988 = vst [vmem:[%s905 + $0x84] sm:$0xf] %v987
      %989 = vst.msk [vmem:[%s905 + $0x88] sm:$0xf] %vm911, %v787
      %v990 = vld [vmem:[%s905 + $0x8c] sm:$0x1]
      %v991 = vsel %vm440, %v788, %v990
      %992 = vst [vmem:[%s905 + $0x8c] sm:$0x1] %v991
      %v993 = vld [vmem:[%s905 + $0x90] sm:$0xf]
      %v994 = vsel %vm907, %v795, %v993
      %995 = vst [vmem:[%s905 + $0x90] sm:$0xf] %v994
      %996 = vst.msk [vmem:[%s905 + $0x94] sm:$0xf] %vm911, %v804
      %v997 = vld [vmem:[%s905 + $0x98] sm:$0x1]
      %v998 = vsel %vm440, %v805, %v997
      %999 = vst [vmem:[%s905 + $0x98] sm:$0x1] %v998
      %v1000 = vld [vmem:[%s905 + $0x9c] sm:$0xf]
      %v1001 = vsel %vm907, %v812, %v1000
      %1002 = vst [vmem:[%s905 + $0x9c] sm:$0xf] %v1001
      %1003 = vst.msk [vmem:[%s905 + $0xa0] sm:$0xf] %vm911, %v821
      %v1004 = vld [vmem:[%s905 + $0xa4] sm:$0x1]
      %v1005 = vsel %vm440, %v822, %v1004
      %1006 = vst [vmem:[%s905 + $0xa4] sm:$0x1] %v1005
      %v1007 = vld [vmem:[%s905 + $0xa8] sm:$0xf]
      %v1008 = vsel %vm907, %v829, %v1007
      %1009 = vst [vmem:[%s905 + $0xa8] sm:$0xf] %v1008
      %1010 = vst.msk [vmem:[%s905 + $0xac] sm:$0xf] %vm911, %v838
      %v1011 = vld [vmem:[%s905 + $0xb0] sm:$0x1]
      %v1012 = vsel %vm440, %v839, %v1011
      %1013 = vst [vmem:[%s905 + $0xb0] sm:$0x1] %v1012
      %v1014 = vld [vmem:[%s905 + $0xb4] sm:$0xf]
      %v1015 = vsel %vm907, %v846, %v1014
      %1016 = vst [vmem:[%s905 + $0xb4] sm:$0xf] %v1015
      %1017 = vst.msk [vmem:[%s905 + $0xb8] sm:$0xf] %vm911, %v855
      %v1018 = vld [vmem:[%s905 + $0xbc] sm:$0x1]
      %v1019 = vsel %vm440, %v856, %v1018
      %1020 = vst [vmem:[%s905 + $0xbc] sm:$0x1] %v1019
      %v1021 = vld [vmem:[%s395] sm:$0xf]
      %v1022 = vld [vmem:[%s395 + $0x4] sm:$0xf]
      %v1023 = vld [vmem:[%s412] sm:$0xf]
      %v1024 = vld [vmem:[%s412 + $0x4] sm:$0xf]
      %p1025 = scmp.gt.s32.totalorder %s23, 0
      %s1026 = scalar_select %p1025, 1, 0
      %v1027 = vstv %s1026
      %vm1028 = vcmp.eq.s32.totalorder %v1027, 1
      %v1029 = vsel %vm1028, %v1021, 0
      %v1030 = vsel %vm1028, %v1022, 0
      %p1031 = scmp.lt.s32.totalorder %s23, 0
      %s1032 = scalar_select %p1031, 1, 0
      %v1033 = vstv %s1032
      %vm1034 = vcmp.eq.s32.totalorder %v1033, 1
      %v1035 = vsel %vm1034, %v1023, 0
      %v1036 = vsel %vm1034, %v1024, 0
      %v1038 = vshrl.u32 %v1029, 16
      %v1040 = vrot.slane %v1038, 7
      %v1041 = vshll.u32 %v1029, 16
      %v1043 = vor.u32 %v1040, %v1041
      %v1044 = vrot.slane %v1040, 4
      %v1046 = vshrl.u32 %v1030, 16
      %v1048 = vrot.slane %v1046, 7
      %v1049 = vshll.u32 %v1030, 16
      %v1051 = vor.u32 %v1048, %v1049
      %v1052 = vsel %vm584, %v1044, %v1051
      %v1053 = vrot.slane %v1048, 4
      %v1057 = vld [vmem:[#allocation2] sm:$0xf]
      %v1058 = vsel %vm907, %v1043, %v1057
      %1059 = vst [vmem:[#allocation2] sm:$0xf] %v1058
      %1060 = vst.msk [vmem:[#allocation2 + $0x4] sm:$0xf] %vm911, %v1052
      %v1061 = vld [vmem:[#allocation2 + $0x8] sm:$0x1]
      %v1062 = vsel %vm440, %v1053, %v1061
      %1063 = vst [vmem:[#allocation2 + $0x8] sm:$0x1] %v1062
      %v1065 = vshrl.u32 %v1035, 16
      %v1067 = vrot.slane %v1065, 7
      %v1068 = vshll.u32 %v1035, 16
      %v1070 = vor.u32 %v1067, %v1068
      %v1071 = vrot.slane %v1067, 4
      %v1073 = vshrl.u32 %v1036, 16
      %v1075 = vrot.slane %v1073, 7
      %v1076 = vshll.u32 %v1036, 16
      %v1078 = vor.u32 %v1075, %v1076
      %v1079 = vsel %vm584, %v1071, %v1078
      %v1080 = vrot.slane %v1075, 4
      %s1084 = scalar_lea.vmem [#allocation2], 204
      %v1085 = vld [vmem:[%s1084] sm:$0xf]
      %v1086 = vsel %vm907, %v1070, %v1085
      %1087 = vst [vmem:[%s1084] sm:$0xf] %v1086
      %1088 = vst.msk [vmem:[%s1084 + $0x4] sm:$0xf] %vm911, %v1079
      %v1089 = vld [vmem:[%s1084 + $0x8] sm:$0x1]
      %v1090 = vsel %vm440, %v1080, %v1089
      %1091 = vst [vmem:[%s1084 + $0x8] sm:$0x1] %v1090
      %v1092 = vld [vmem:[%s423] sm:$0x1]
      %v1093 = vld [vmem:[#allocation2] sm:$0xf]
      %v1094 = vld [vmem:[#allocation2 + $0x4] sm:$0xf]
      %v1095 = vld [vmem:[#allocation2 + $0xc] sm:$0xf]
      %v1096 = vld [vmem:[#allocation2 + $0x10] sm:$0xf]
      %v1097 = vld [vmem:[#allocation2 + $0x18] sm:$0xf]
      %v1098 = vld [vmem:[#allocation2 + $0x1c] sm:$0xf]
      %v1099 = vld [vmem:[#allocation2 + $0x24] sm:$0xf]
      %v1100 = vld [vmem:[#allocation2 + $0x28] sm:$0xf]
      %v1101 = vld [vmem:[#allocation2 + $0x30] sm:$0xf]
      %v1102 = vld [vmem:[#allocation2 + $0x34] sm:$0xf]
      %v1103 = vld [vmem:[#allocation2 + $0x3c] sm:$0xf]
      %v1104 = vld [vmem:[#allocation2 + $0x40] sm:$0xf]
      %v1105 = vld [vmem:[#allocation2 + $0x48] sm:$0xf]
      %v1106 = vld [vmem:[#allocation2 + $0x4c] sm:$0xf]
      %v1107 = vld [vmem:[#allocation2 + $0x54] sm:$0xf]
      %v1108 = vld [vmem:[#allocation2 + $0x58] sm:$0xf]
      %v1109 = vld [vmem:[#allocation2 + $0x60] sm:$0xf]
      %v1110 = vld [vmem:[#allocation2 + $0x64] sm:$0xf]
      %v1111 = vld [vmem:[#allocation2 + $0x6c] sm:$0xf]
      %v1112 = vld [vmem:[#allocation2 + $0x70] sm:$0xf]
      %v1113 = vld [vmem:[#allocation2 + $0x78] sm:$0xf]
      %v1114 = vld [vmem:[#allocation2 + $0x7c] sm:$0xf]
      %v1115 = vld [vmem:[#allocation2 + $0x84] sm:$0xf]
      %v1116 = vld [vmem:[#allocation2 + $0x88] sm:$0xf]
      %v1117 = vld [vmem:[#allocation2 + $0x90] sm:$0xf]
      %v1118 = vld [vmem:[#allocation2 + $0x94] sm:$0xf]
      %v1119 = vld [vmem:[#allocation2 + $0x9c] sm:$0xf]
      %v1120 = vld [vmem:[#allocation2 + $0xa0] sm:$0xf]
      %v1121 = vld [vmem:[#allocation2 + $0xa8] sm:$0xf]
      %v1122 = vld [vmem:[#allocation2 + $0xac] sm:$0xf]
      %v1123 = vld [vmem:[#allocation2 + $0xb4] sm:$0xf]
      %v1124 = vld [vmem:[#allocation2 + $0xb8] sm:$0xf]
      %v1125 = vld [vmem:[#allocation2 + $0x8] sm:$0x1]
      %v1126 = vld [vmem:[#allocation2 + $0x14] sm:$0x1]
      %v1127 = vld [vmem:[#allocation2 + $0x20] sm:$0x1]
      %v1128 = vld [vmem:[#allocation2 + $0x2c] sm:$0x1]
      %v1129 = vld [vmem:[#allocation2 + $0x38] sm:$0x1]
      %v1130 = vld [vmem:[#allocation2 + $0x44] sm:$0x1]
      %v1131 = vld [vmem:[#allocation2 + $0x50] sm:$0x1]
      %v1132 = vld [vmem:[#allocation2 + $0x5c] sm:$0x1]
      %v1133 = vld [vmem:[#allocation2 + $0x68] sm:$0x1]
      %v1134 = vld [vmem:[#allocation2 + $0x74] sm:$0x1]
      %v1135 = vld [vmem:[#allocation2 + $0x80] sm:$0x1]
      %v1136 = vld [vmem:[#allocation2 + $0x8c] sm:$0x1]
      %v1137 = vld [vmem:[#allocation2 + $0x98] sm:$0x1]
      %v1138 = vld [vmem:[#allocation2 + $0xa4] sm:$0x1]
      %v1139 = vld [vmem:[#allocation2 + $0xb0] sm:$0x1]
      %v1140 = vld [vmem:[#allocation2 + $0xbc] sm:$0x1]
      %v1141 = vld [vmem:[%s905] sm:$0xf]
      %v1142 = vld [vmem:[%s905 + $0x4] sm:$0xf]
      %v1143 = vld [vmem:[%s905 + $0xc] sm:$0xf]
      %v1144 = vld [vmem:[%s905 + $0x10] sm:$0xf]
      %v1145 = vld [vmem:[%s905 + $0x18] sm:$0xf]
      %v1146 = vld [vmem:[%s905 + $0x1c] sm:$0xf]
      %v1147 = vld [vmem:[%s905 + $0x24] sm:$0xf]
      %v1148 = vld [vmem:[%s905 + $0x28] sm:$0xf]
      %v1149 = vld [vmem:[%s905 + $0x30] sm:$0xf]
      %v1150 = vld [vmem:[%s905 + $0x34] sm:$0xf]
      %v1151 = vld [vmem:[%s905 + $0x3c] sm:$0xf]
      %v1152 = vld [vmem:[%s905 + $0x40] sm:$0xf]
      %v1153 = vld [vmem:[%s905 + $0x48] sm:$0xf]
      %v1154 = vld [vmem:[%s905 + $0x4c] sm:$0xf]
      %v1155 = vld [vmem:[%s905 + $0x54] sm:$0xf]
      %v1156 = vld [vmem:[%s905 + $0x58] sm:$0xf]
      %v1157 = vld [vmem:[%s905 + $0x60] sm:$0xf]
      %v1158 = vld [vmem:[%s905 + $0x64] sm:$0xf]
      %v1159 = vld [vmem:[%s905 + $0x6c] sm:$0xf]
      %v1160 = vld [vmem:[%s905 + $0x70] sm:$0xf]
      %v1161 = vld [vmem:[%s905 + $0x78] sm:$0xf]
      %v1162 = vld [vmem:[%s905 + $0x7c] sm:$0xf]
      %v1163 = vld [vmem:[%s905 + $0x84] sm:$0xf]
      %v1164 = vld [vmem:[%s905 + $0x88] sm:$0xf]
      %v1165 = vld [vmem:[%s905 + $0x90] sm:$0xf]
      %v1166 = vld [vmem:[%s905 + $0x94] sm:$0xf]
      %v1167 = vld [vmem:[%s905 + $0x9c] sm:$0xf]
      %v1168 = vld [vmem:[%s905 + $0xa0] sm:$0xf]
      %v1169 = vld [vmem:[%s905 + $0xa8] sm:$0xf]
      %v1170 = vld [vmem:[%s905 + $0xac] sm:$0xf]
      %v1171 = vld [vmem:[%s905 + $0xb4] sm:$0xf]
      %v1172 = vld [vmem:[%s905 + $0xb8] sm:$0xf]
      %v1173 = vld [vmem:[%s905 + $0x8] sm:$0x1]
      %v1174 = vld [vmem:[%s905 + $0x14] sm:$0x1]
      %v1175 = vld [vmem:[%s905 + $0x20] sm:$0x1]
      %v1176 = vld [vmem:[%s905 + $0x2c] sm:$0x1]
      %v1177 = vld [vmem:[%s905 + $0x38] sm:$0x1]
      %v1178 = vld [vmem:[%s905 + $0x44] sm:$0x1]
      %v1179 = vld [vmem:[%s905 + $0x50] sm:$0x1]
      %v1180 = vld [vmem:[%s905 + $0x5c] sm:$0x1]
      %v1181 = vld [vmem:[%s905 + $0x68] sm:$0x1]
      %v1182 = vld [vmem:[%s905 + $0x74] sm:$0x1]
      %v1183 = vld [vmem:[%s905 + $0x80] sm:$0x1]
      %v1184 = vld [vmem:[%s905 + $0x8c] sm:$0x1]
      %v1185 = vld [vmem:[%s905 + $0x98] sm:$0x1]
      %v1186 = vld [vmem:[%s905 + $0xa4] sm:$0x1]
      %v1187 = vld [vmem:[%s905 + $0xb0] sm:$0x1]
      %v1188 = vld [vmem:[%s905 + $0xbc] sm:$0x1]
      %v1221 = vunpack.c.l.b16 %v1093
      %v1222 = vunpack.c.l.b16 %v1094
      %v1223 = vunpack.c.l.b16 %v1095
      %v1224 = vunpack.c.l.b16 %v1096
      %v1225 = vunpack.c.l.b16 %v1097
      %v1226 = vunpack.c.l.b16 %v1098
      %v1227 = vunpack.c.l.b16 %v1099
      %v1228 = vunpack.c.l.b16 %v1100
      %v1229 = vunpack.c.l.b16 %v1101
      %v1230 = vunpack.c.l.b16 %v1102
      %v1231 = vunpack.c.l.b16 %v1103
      %v1232 = vunpack.c.l.b16 %v1104
      %v1233 = vunpack.c.l.b16 %v1105
      %v1234 = vunpack.c.l.b16 %v1106
      %v1235 = vunpack.c.l.b16 %v1107
      %v1236 = vunpack.c.l.b16 %v1108
      %v1237 = vunpack.c.l.b16 %v1109
      %v1238 = vunpack.c.l.b16 %v1110
      %v1239 = vunpack.c.l.b16 %v1111
      %v1240 = vunpack.c.l.b16 %v1112
      %v1241 = vunpack.c.l.b16 %v1113
      %v1242 = vunpack.c.l.b16 %v1114
      %v1243 = vunpack.c.l.b16 %v1115
      %v1244 = vunpack.c.l.b16 %v1116
      %v1245 = vunpack.c.l.b16 %v1117
      %v1246 = vunpack.c.l.b16 %v1118
      %v1247 = vunpack.c.l.b16 %v1119
      %v1248 = vunpack.c.l.b16 %v1120
      %v1249 = vunpack.c.l.b16 %v1121
      %v1250 = vunpack.c.l.b16 %v1122
      %v1251 = vunpack.c.l.b16 %v1123
      %v1252 = vunpack.c.l.b16 %v1124
      %v1253 = vpack.c.b16 %v1222, %v1221
      %v1254 = vpack.c.b16 %v1224, %v1223
      %v1255 = vpack.c.b16 %v1226, %v1225
      %v1256 = vpack.c.b16 %v1228, %v1227
      %v1257 = vpack.c.b16 %v1230, %v1229
      %v1258 = vpack.c.b16 %v1232, %v1231
      %v1259 = vpack.c.b16 %v1234, %v1233
      %v1260 = vpack.c.b16 %v1236, %v1235
      %v1261 = vpack.c.b16 %v1238, %v1237
      %v1262 = vpack.c.b16 %v1240, %v1239
      %v1263 = vpack.c.b16 %v1242, %v1241
      %v1264 = vpack.c.b16 %v1244, %v1243
      %v1265 = vpack.c.b16 %v1246, %v1245
      %v1266 = vpack.c.b16 %v1248, %v1247
      %v1267 = vpack.c.b16 %v1250, %v1249
      %v1268 = vpack.c.b16 %v1252, %v1251
      %v1285 = vunpack.c.l.b16 %v1125
      %v1286 = vunpack.c.l.b16 %v1126
      %v1287 = vunpack.c.l.b16 %v1127
      %v1288 = vunpack.c.l.b16 %v1128
      %v1289 = vunpack.c.l.b16 %v1129
      %v1290 = vunpack.c.l.b16 %v1130
      %v1291 = vunpack.c.l.b16 %v1131
      %v1292 = vunpack.c.l.b16 %v1132
      %v1293 = vunpack.c.l.b16 %v1133
      %v1294 = vunpack.c.l.b16 %v1134
      %v1295 = vunpack.c.l.b16 %v1135
      %v1296 = vunpack.c.l.b16 %v1136
      %v1297 = vunpack.c.l.b16 %v1137
      %v1298 = vunpack.c.l.b16 %v1138
      %v1299 = vunpack.c.l.b16 %v1139
      %v1300 = vunpack.c.l.b16 %v1140
      %v1301 = vpack.c.b16 %v1285, %v1285
      %v1302 = vpack.c.b16 %v1286, %v1286
      %v1303 = vpack.c.b16 %v1287, %v1287
      %v1304 = vpack.c.b16 %v1288, %v1288
      %v1305 = vpack.c.b16 %v1289, %v1289
      %v1306 = vpack.c.b16 %v1290, %v1290
      %v1307 = vpack.c.b16 %v1291, %v1291
      %v1308 = vpack.c.b16 %v1292, %v1292
      %v1309 = vpack.c.b16 %v1293, %v1293
      %v1310 = vpack.c.b16 %v1294, %v1294
      %v1311 = vpack.c.b16 %v1295, %v1295
      %v1312 = vpack.c.b16 %v1296, %v1296
      %v1313 = vpack.c.b16 %v1297, %v1297
      %v1314 = vpack.c.b16 %v1298, %v1298
      %v1315 = vpack.c.b16 %v1299, %v1299
      %v1316 = vpack.c.b16 %v1300, %v1300
      %vm1317 = vsmask.f32 7424
      %v1319 = vshrl.u32 %v1253, 16
      %v1321 = vshll.u32 %v1253, 16
      %v1323 = vrot.slane %v1321, 1
      %v1324 = vor.u32 %v1319, %v1323
      %v1326 = vshll.u32 %v1301, 16
      %v1328 = vrot.slane %v1326, 1
      %v1329 = vsel %vm1317, %v1324, %v1328
      %v1331 = vshrl.u32 %v1254, 16
      %v1333 = vshll.u32 %v1254, 16
      %v1335 = vrot.slane %v1333, 1
      %v1336 = vor.u32 %v1331, %v1335
      %v1338 = vshll.u32 %v1302, 16
      %v1340 = vrot.slane %v1338, 1
      %v1341 = vsel %vm1317, %v1336, %v1340
      %v1343 = vshrl.u32 %v1255, 16
      %v1345 = vshll.u32 %v1255, 16
      %v1347 = vrot.slane %v1345, 1
      %v1348 = vor.u32 %v1343, %v1347
      %v1350 = vshll.u32 %v1303, 16
      %v1352 = vrot.slane %v1350, 1
      %v1353 = vsel %vm1317, %v1348, %v1352
      %v1355 = vshrl.u32 %v1256, 16
      %v1357 = vshll.u32 %v1256, 16
      %v1359 = vrot.slane %v1357, 1
      %v1360 = vor.u32 %v1355, %v1359
      %v1362 = vshll.u32 %v1304, 16
      %v1364 = vrot.slane %v1362, 1
      %v1365 = vsel %vm1317, %v1360, %v1364
      %v1367 = vshrl.u32 %v1257, 16
      %v1369 = vshll.u32 %v1257, 16
      %v1371 = vrot.slane %v1369, 1
      %v1372 = vor.u32 %v1367, %v1371
      %v1374 = vshll.u32 %v1305, 16
      %v1376 = vrot.slane %v1374, 1
      %v1377 = vsel %vm1317, %v1372, %v1376
      %v1379 = vshrl.u32 %v1258, 16
      %v1381 = vshll.u32 %v1258, 16
      %v1383 = vrot.slane %v1381, 1
      %v1384 = vor.u32 %v1379, %v1383
      %v1386 = vshll.u32 %v1306, 16
      %v1388 = vrot.slane %v1386, 1
      %v1389 = vsel %vm1317, %v1384, %v1388
      %v1391 = vshrl.u32 %v1259, 16
      %v1393 = vshll.u32 %v1259, 16
      %v1395 = vrot.slane %v1393, 1
      %v1396 = vor.u32 %v1391, %v1395
      %v1398 = vshll.u32 %v1307, 16
      %v1400 = vrot.slane %v1398, 1
      %v1401 = vsel %vm1317, %v1396, %v1400
      %v1403 = vshrl.u32 %v1260, 16
      %v1405 = vshll.u32 %v1260, 16
      %v1407 = vrot.slane %v1405, 1
      %v1408 = vor.u32 %v1403, %v1407
      %v1410 = vshll.u32 %v1308, 16
      %v1412 = vrot.slane %v1410, 1
      %v1413 = vsel %vm1317, %v1408, %v1412
      %v1415 = vshrl.u32 %v1261, 16
      %v1417 = vshll.u32 %v1261, 16
      %v1419 = vrot.slane %v1417, 1
      %v1420 = vor.u32 %v1415, %v1419
      %v1422 = vshll.u32 %v1309, 16
      %v1424 = vrot.slane %v1422, 1
      %v1425 = vsel %vm1317, %v1420, %v1424
      %v1427 = vshrl.u32 %v1262, 16
      %v1429 = vshll.u32 %v1262, 16
      %v1431 = vrot.slane %v1429, 1
      %v1432 = vor.u32 %v1427, %v1431
      %v1434 = vshll.u32 %v1310, 16
      %v1436 = vrot.slane %v1434, 1
      %v1437 = vsel %vm1317, %v1432, %v1436
      %v1439 = vshrl.u32 %v1263, 16
      %v1441 = vshll.u32 %v1263, 16
      %v1443 = vrot.slane %v1441, 1
      %v1444 = vor.u32 %v1439, %v1443
      %v1446 = vshll.u32 %v1311, 16
      %v1448 = vrot.slane %v1446, 1
      %v1449 = vsel %vm1317, %v1444, %v1448
      %v1451 = vshrl.u32 %v1264, 16
      %v1453 = vshll.u32 %v1264, 16
      %v1455 = vrot.slane %v1453, 1
      %v1456 = vor.u32 %v1451, %v1455
      %v1458 = vshll.u32 %v1312, 16
      %v1460 = vrot.slane %v1458, 1
      %v1461 = vsel %vm1317, %v1456, %v1460
      %v1463 = vshrl.u32 %v1265, 16
      %v1465 = vshll.u32 %v1265, 16
      %v1467 = vrot.slane %v1465, 1
      %v1468 = vor.u32 %v1463, %v1467
      %v1470 = vshll.u32 %v1313, 16
      %v1472 = vrot.slane %v1470, 1
      %v1473 = vsel %vm1317, %v1468, %v1472
      %v1475 = vshrl.u32 %v1266, 16
      %v1477 = vshll.u32 %v1266, 16
      %v1479 = vrot.slane %v1477, 1
      %v1480 = vor.u32 %v1475, %v1479
      %v1482 = vshll.u32 %v1314, 16
      %v1484 = vrot.slane %v1482, 1
      %v1485 = vsel %vm1317, %v1480, %v1484
      %v1487 = vshrl.u32 %v1267, 16
      %v1489 = vshll.u32 %v1267, 16
      %v1491 = vrot.slane %v1489, 1
      %v1492 = vor.u32 %v1487, %v1491
      %v1494 = vshll.u32 %v1315, 16
      %v1496 = vrot.slane %v1494, 1
      %v1497 = vsel %vm1317, %v1492, %v1496
      %v1499 = vshrl.u32 %v1268, 16
      %v1501 = vshll.u32 %v1268, 16
      %v1503 = vrot.slane %v1501, 1
      %v1504 = vor.u32 %v1499, %v1503
      %v1506 = vshll.u32 %v1316, 16
      %v1508 = vrot.slane %v1506, 1
      %v1509 = vsel %vm1317, %v1504, %v1508
      %1510 = vrot.lane.b32.xlu0 %v1329, 4
      %v1511 = vpop.permute.xlu0 %1510
      %1512 = vrot.lane.b32.xlu0 %v1341, 4
      %v1513 = vpop.permute.xlu0 %1512
      %1514 = vrot.lane.b32.xlu0 %v1353, 4
      %v1515 = vpop.permute.xlu0 %1514
      %1516 = vrot.lane.b32.xlu0 %v1365, 4
      %v1517 = vpop.permute.xlu0 %1516
      %1518 = vrot.lane.b32.xlu0 %v1377, 4
      %v1519 = vpop.permute.xlu0 %1518
      %1520 = vrot.lane.b32.xlu0 %v1389, 4
      %v1521 = vpop.permute.xlu0 %1520
      %1522 = vrot.lane.b32.xlu0 %v1401, 4
      %v1523 = vpop.permute.xlu0 %1522
      %1524 = vrot.lane.b32.xlu0 %v1413, 4
      %v1525 = vpop.permute.xlu0 %1524
      %1526 = vrot.lane.b32.xlu0 %v1425, 4
      %v1527 = vpop.permute.xlu0 %1526
      %1528 = vrot.lane.b32.xlu0 %v1437, 4
      %v1529 = vpop.permute.xlu0 %1528
      %1530 = vrot.lane.b32.xlu0 %v1449, 4
      %v1531 = vpop.permute.xlu0 %1530
      %1532 = vrot.lane.b32.xlu0 %v1461, 4
      %v1533 = vpop.permute.xlu0 %1532
      %1534 = vrot.lane.b32.xlu0 %v1473, 4
      %v1535 = vpop.permute.xlu0 %1534
      %1536 = vrot.lane.b32.xlu0 %v1485, 4
      %v1537 = vpop.permute.xlu0 %1536
      %1538 = vrot.lane.b32.xlu0 %v1497, 4
      %v1539 = vpop.permute.xlu0 %1538
      %1540 = vrot.lane.b32.xlu0 %v1509, 4
      %v1541 = vpop.permute.xlu0 %1540
      %v1574 = vunpack.c.l.b16 %v1141
      %v1575 = vunpack.c.l.b16 %v1142
      %v1576 = vunpack.c.l.b16 %v1143
      %v1577 = vunpack.c.l.b16 %v1144
      %v1578 = vunpack.c.l.b16 %v1145
      %v1579 = vunpack.c.l.b16 %v1146
      %v1580 = vunpack.c.l.b16 %v1147
      %v1581 = vunpack.c.l.b16 %v1148
      %v1582 = vunpack.c.l.b16 %v1149
      %v1583 = vunpack.c.l.b16 %v1150
      %v1584 = vunpack.c.l.b16 %v1151
      %v1585 = vunpack.c.l.b16 %v1152
      %v1586 = vunpack.c.l.b16 %v1153
      %v1587 = vunpack.c.l.b16 %v1154
      %v1588 = vunpack.c.l.b16 %v1155
      %v1589 = vunpack.c.l.b16 %v1156
      %v1590 = vunpack.c.l.b16 %v1157
      %v1591 = vunpack.c.l.b16 %v1158
      %v1592 = vunpack.c.l.b16 %v1159
      %v1593 = vunpack.c.l.b16 %v1160
      %v1594 = vunpack.c.l.b16 %v1161
      %v1595 = vunpack.c.l.b16 %v1162
      %v1596 = vunpack.c.l.b16 %v1163
      %v1597 = vunpack.c.l.b16 %v1164
      %v1598 = vunpack.c.l.b16 %v1165
      %v1599 = vunpack.c.l.b16 %v1166
      %v1600 = vunpack.c.l.b16 %v1167
      %v1601 = vunpack.c.l.b16 %v1168
      %v1602 = vunpack.c.l.b16 %v1169
      %v1603 = vunpack.c.l.b16 %v1170
      %v1604 = vunpack.c.l.b16 %v1171
      %v1605 = vunpack.c.l.b16 %v1172
      %v1606 = vpack.c.b16 %v1575, %v1574
      %v1607 = vpack.c.b16 %v1577, %v1576
      %v1608 = vpack.c.b16 %v1579, %v1578
      %v1609 = vpack.c.b16 %v1581, %v1580
      %v1610 = vpack.c.b16 %v1583, %v1582
      %v1611 = vpack.c.b16 %v1585, %v1584
      %v1612 = vpack.c.b16 %v1587, %v1586
      %v1613 = vpack.c.b16 %v1589, %v1588
      %v1614 = vpack.c.b16 %v1591, %v1590
      %v1615 = vpack.c.b16 %v1593, %v1592
      %v1616 = vpack.c.b16 %v1595, %v1594
      %v1617 = vpack.c.b16 %v1597, %v1596
      %v1618 = vpack.c.b16 %v1599, %v1598
      %v1619 = vpack.c.b16 %v1601, %v1600
      %v1620 = vpack.c.b16 %v1603, %v1602
      %v1621 = vpack.c.b16 %v1605, %v1604
      %1622 = vrot.lane.b32.xlu0 %v1606, 8
      %v1623 = vpop.permute.xlu0 %1622
      %1624 = vrot.lane.b32.xlu0 %v1607, 8
      %v1625 = vpop.permute.xlu0 %1624
      %1626 = vrot.lane.b32.xlu0 %v1608, 8
      %v1627 = vpop.permute.xlu0 %1626
      %1628 = vrot.lane.b32.xlu0 %v1609, 8
      %v1629 = vpop.permute.xlu0 %1628
      %1630 = vrot.lane.b32.xlu0 %v1610, 8
      %v1631 = vpop.permute.xlu0 %1630
      %1632 = vrot.lane.b32.xlu0 %v1611, 8
      %v1633 = vpop.permute.xlu0 %1632
      %1634 = vrot.lane.b32.xlu0 %v1612, 8
      %v1635 = vpop.permute.xlu0 %1634
      %1636 = vrot.lane.b32.xlu0 %v1613, 8
      %v1637 = vpop.permute.xlu0 %1636
      %1638 = vrot.lane.b32.xlu0 %v1614, 8
      %v1639 = vpop.permute.xlu0 %1638
      %1640 = vrot.lane.b32.xlu0 %v1615, 8
      %v1641 = vpop.permute.xlu0 %1640
      %1642 = vrot.lane.b32.xlu0 %v1616, 8
      %v1643 = vpop.permute.xlu0 %1642
      %1644 = vrot.lane.b32.xlu0 %v1617, 8
      %v1645 = vpop.permute.xlu0 %1644
      %1646 = vrot.lane.b32.xlu0 %v1618, 8
      %v1647 = vpop.permute.xlu0 %1646
      %1648 = vrot.lane.b32.xlu0 %v1619, 8
      %v1649 = vpop.permute.xlu0 %1648
      %1650 = vrot.lane.b32.xlu0 %v1620, 8
      %v1651 = vpop.permute.xlu0 %1650
      %1652 = vrot.lane.b32.xlu0 %v1621, 8
      %v1653 = vpop.permute.xlu0 %1652
      %v1670 = vunpack.c.l.b16 %v1173
      %v1671 = vunpack.c.l.b16 %v1174
      %v1672 = vunpack.c.l.b16 %v1175
      %v1673 = vunpack.c.l.b16 %v1176
      %v1674 = vunpack.c.l.b16 %v1177
      %v1675 = vunpack.c.l.b16 %v1178
      %v1676 = vunpack.c.l.b16 %v1179
      %v1677 = vunpack.c.l.b16 %v1180
      %v1678 = vunpack.c.l.b16 %v1181
      %v1679 = vunpack.c.l.b16 %v1182
      %v1680 = vunpack.c.l.b16 %v1183
      %v1681 = vunpack.c.l.b16 %v1184
      %v1682 = vunpack.c.l.b16 %v1185
      %v1683 = vunpack.c.l.b16 %v1186
      %v1684 = vunpack.c.l.b16 %v1187
      %v1685 = vunpack.c.l.b16 %v1188
      %v1686 = vpack.c.b16 %v1670, %v1670
      %v1687 = vpack.c.b16 %v1671, %v1671
      %v1688 = vpack.c.b16 %v1672, %v1672
      %v1689 = vpack.c.b16 %v1673, %v1673
      %v1690 = vpack.c.b16 %v1674, %v1674
      %v1691 = vpack.c.b16 %v1675, %v1675
      %v1692 = vpack.c.b16 %v1676, %v1676
      %v1693 = vpack.c.b16 %v1677, %v1677
      %v1694 = vpack.c.b16 %v1678, %v1678
      %v1695 = vpack.c.b16 %v1679, %v1679
      %v1696 = vpack.c.b16 %v1680, %v1680
      %v1697 = vpack.c.b16 %v1681, %v1681
      %v1698 = vpack.c.b16 %v1682, %v1682
      %v1699 = vpack.c.b16 %v1683, %v1683
      %v1700 = vpack.c.b16 %v1684, %v1684
      %v1701 = vpack.c.b16 %v1685, %v1685
      %v1703 = vshrl.u32 %v1606, 16
      %v1705 = vshll.u32 %v1606, 16
      %v1707 = vrot.slane %v1705, 1
      %v1708 = vor.u32 %v1703, %v1707
      %v1710 = vshll.u32 %v1686, 16
      %v1712 = vrot.slane %v1710, 1
      %v1713 = vsel %vm1317, %v1708, %v1712
      %v1715 = vshrl.u32 %v1607, 16
      %v1717 = vshll.u32 %v1607, 16
      %v1719 = vrot.slane %v1717, 1
      %v1720 = vor.u32 %v1715, %v1719
      %v1722 = vshll.u32 %v1687, 16
      %v1724 = vrot.slane %v1722, 1
      %v1725 = vsel %vm1317, %v1720, %v1724
      %v1727 = vshrl.u32 %v1608, 16
      %v1729 = vshll.u32 %v1608, 16
      %v1731 = vrot.slane %v1729, 1
      %v1732 = vor.u32 %v1727, %v1731
      %v1734 = vshll.u32 %v1688, 16
      %v1736 = vrot.slane %v1734, 1
      %v1737 = vsel %vm1317, %v1732, %v1736
      %v1739 = vshrl.u32 %v1609, 16
      %v1741 = vshll.u32 %v1609, 16
      %v1743 = vrot.slane %v1741, 1
      %v1744 = vor.u32 %v1739, %v1743
      %v1746 = vshll.u32 %v1689, 16
      %v1748 = vrot.slane %v1746, 1
      %v1749 = vsel %vm1317, %v1744, %v1748
      %v1751 = vshrl.u32 %v1610, 16
      %v1753 = vshll.u32 %v1610, 16
      %v1755 = vrot.slane %v1753, 1
      %v1756 = vor.u32 %v1751, %v1755
      %v1758 = vshll.u32 %v1690, 16
      %v1760 = vrot.slane %v1758, 1
      %v1761 = vsel %vm1317, %v1756, %v1760
      %v1763 = vshrl.u32 %v1611, 16
      %v1765 = vshll.u32 %v1611, 16
      %v1767 = vrot.slane %v1765, 1
      %v1768 = vor.u32 %v1763, %v1767
      %v1770 = vshll.u32 %v1691, 16
      %v1772 = vrot.slane %v1770, 1
      %v1773 = vsel %vm1317, %v1768, %v1772
      %v1775 = vshrl.u32 %v1612, 16
      %v1777 = vshll.u32 %v1612, 16
      %v1779 = vrot.slane %v1777, 1
      %v1780 = vor.u32 %v1775, %v1779
      %v1782 = vshll.u32 %v1692, 16
      %v1784 = vrot.slane %v1782, 1
      %v1785 = vsel %vm1317, %v1780, %v1784
      %v1787 = vshrl.u32 %v1613, 16
      %v1789 = vshll.u32 %v1613, 16
      %v1791 = vrot.slane %v1789, 1
      %v1792 = vor.u32 %v1787, %v1791
      %v1794 = vshll.u32 %v1693, 16
      %v1796 = vrot.slane %v1794, 1
      %v1797 = vsel %vm1317, %v1792, %v1796
      %v1799 = vshrl.u32 %v1614, 16
      %v1801 = vshll.u32 %v1614, 16
      %v1803 = vrot.slane %v1801, 1
      %v1804 = vor.u32 %v1799, %v1803
      %v1806 = vshll.u32 %v1694, 16
      %v1808 = vrot.slane %v1806, 1
      %v1809 = vsel %vm1317, %v1804, %v1808
      %v1811 = vshrl.u32 %v1615, 16
      %v1813 = vshll.u32 %v1615, 16
      %v1815 = vrot.slane %v1813, 1
      %v1816 = vor.u32 %v1811, %v1815
      %v1818 = vshll.u32 %v1695, 16
      %v1820 = vrot.slane %v1818, 1
      %v1821 = vsel %vm1317, %v1816, %v1820
      %v1823 = vshrl.u32 %v1616, 16
      %v1825 = vshll.u32 %v1616, 16
      %v1827 = vrot.slane %v1825, 1
      %v1828 = vor.u32 %v1823, %v1827
      %v1830 = vshll.u32 %v1696, 16
      %v1832 = vrot.slane %v1830, 1
      %v1833 = vsel %vm1317, %v1828, %v1832
      %v1835 = vshrl.u32 %v1617, 16
      %v1837 = vshll.u32 %v1617, 16
      %v1839 = vrot.slane %v1837, 1
      %v1840 = vor.u32 %v1835, %v1839
      %v1842 = vshll.u32 %v1697, 16
      %v1844 = vrot.slane %v1842, 1
      %v1845 = vsel %vm1317, %v1840, %v1844
      %v1847 = vshrl.u32 %v1618, 16
      %v1849 = vshll.u32 %v1618, 16
      %v1851 = vrot.slane %v1849, 1
      %v1852 = vor.u32 %v1847, %v1851
      %v1854 = vshll.u32 %v1698, 16
      %v1856 = vrot.slane %v1854, 1
      %v1857 = vsel %vm1317, %v1852, %v1856
      %v1859 = vshrl.u32 %v1619, 16
      %v1861 = vshll.u32 %v1619, 16
      %v1863 = vrot.slane %v1861, 1
      %v1864 = vor.u32 %v1859, %v1863
      %v1866 = vshll.u32 %v1699, 16
      %v1868 = vrot.slane %v1866, 1
      %v1869 = vsel %vm1317, %v1864, %v1868
      %v1871 = vshrl.u32 %v1620, 16
      %v1873 = vshll.u32 %v1620, 16
      %v1875 = vrot.slane %v1873, 1
      %v1876 = vor.u32 %v1871, %v1875
      %v1878 = vshll.u32 %v1700, 16
      %v1880 = vrot.slane %v1878, 1
      %v1881 = vsel %vm1317, %v1876, %v1880
      %v1883 = vshrl.u32 %v1621, 16
      %v1885 = vshll.u32 %v1621, 16
      %v1887 = vrot.slane %v1885, 1
      %v1888 = vor.u32 %v1883, %v1887
      %v1890 = vshll.u32 %v1701, 16
      %v1892 = vrot.slane %v1890, 1
      %v1893 = vsel %vm1317, %v1888, %v1892
      %1894 = vrot.lane.b32.xlu0 %v1713, 12
      %v1895 = vpop.permute.xlu0 %1894
      %1896 = vrot.lane.b32.xlu0 %v1725, 12
      %v1897 = vpop.permute.xlu0 %1896
      %1898 = vrot.lane.b32.xlu0 %v1737, 12
      %v1899 = vpop.permute.xlu0 %1898
      %1900 = vrot.lane.b32.xlu0 %v1749, 12
      %v1901 = vpop.permute.xlu0 %1900
      %1902 = vrot.lane.b32.xlu0 %v1761, 12
      %v1903 = vpop.permute.xlu0 %1902
      %1904 = vrot.lane.b32.xlu0 %v1773, 12
      %v1905 = vpop.permute.xlu0 %1904
      %1906 = vrot.lane.b32.xlu0 %v1785, 12
      %v1907 = vpop.permute.xlu0 %1906
      %1908 = vrot.lane.b32.xlu0 %v1797, 12
      %v1909 = vpop.permute.xlu0 %1908
      %1910 = vrot.lane.b32.xlu0 %v1809, 12
      %v1911 = vpop.permute.xlu0 %1910
      %1912 = vrot.lane.b32.xlu0 %v1821, 12
      %v1913 = vpop.permute.xlu0 %1912
      %1914 = vrot.lane.b32.xlu0 %v1833, 12
      %v1915 = vpop.permute.xlu0 %1914
      %1916 = vrot.lane.b32.xlu0 %v1845, 12
      %v1917 = vpop.permute.xlu0 %1916
      %1918 = vrot.lane.b32.xlu0 %v1857, 12
      %v1919 = vpop.permute.xlu0 %1918
      %1920 = vrot.lane.b32.xlu0 %v1869, 12
      %v1921 = vpop.permute.xlu0 %1920
      %1922 = vrot.lane.b32.xlu0 %v1881, 12
      %v1923 = vpop.permute.xlu0 %1922
      %1924 = vrot.lane.b32.xlu0 %v1893, 12
      %v1925 = vpop.permute.xlu0 %1924
      %vm1926 = vcmask 31744
      %v1928 = vsel %vm1926, %v1253, %v1511
      %v1930 = vsel %vm1926, %v1254, %v1513
      %v1932 = vsel %vm1926, %v1255, %v1515
      %v1934 = vsel %vm1926, %v1256, %v1517
      %v1936 = vsel %vm1926, %v1257, %v1519
      %v1938 = vsel %vm1926, %v1258, %v1521
      %v1940 = vsel %vm1926, %v1259, %v1523
      %v1942 = vsel %vm1926, %v1260, %v1525
      %v1944 = vsel %vm1926, %v1261, %v1527
      %v1946 = vsel %vm1926, %v1262, %v1529
      %v1948 = vsel %vm1926, %v1263, %v1531
      %v1950 = vsel %vm1926, %v1264, %v1533
      %v1952 = vsel %vm1926, %v1265, %v1535
      %v1954 = vsel %vm1926, %v1266, %v1537
      %v1956 = vsel %vm1926, %v1267, %v1539
      %v1958 = vsel %vm1926, %v1268, %v1541
      %vm1959 = vcmask 64512
      %v1961 = vsel %vm1959, %v1928, %v1623
      %v1963 = vsel %vm1959, %v1930, %v1625
      %v1965 = vsel %vm1959, %v1932, %v1627
      %v1967 = vsel %vm1959, %v1934, %v1629
      %v1969 = vsel %vm1959, %v1936, %v1631
      %v1971 = vsel %vm1959, %v1938, %v1633
      %v1973 = vsel %vm1959, %v1940, %v1635
      %v1975 = vsel %vm1959, %v1942, %v1637
      %v1977 = vsel %vm1959, %v1944, %v1639
      %v1979 = vsel %vm1959, %v1946, %v1641
      %v1981 = vsel %vm1959, %v1948, %v1643
      %v1983 = vsel %vm1959, %v1950, %v1645
      %v1985 = vsel %vm1959, %v1952, %v1647
      %v1987 = vsel %vm1959, %v1954, %v1649
      %v1989 = vsel %vm1959, %v1956, %v1651
      %v1991 = vsel %vm1959, %v1958, %v1653
      %vm1992 = vcmask 97280
      %v1994 = vsel %vm1992, %v1961, %v1895
      %v1996 = vsel %vm1992, %v1963, %v1897
      %v1998 = vsel %vm1992, %v1965, %v1899
      %v2000 = vsel %vm1992, %v1967, %v1901
      %v2002 = vsel %vm1992, %v1969, %v1903
      %v2004 = vsel %vm1992, %v1971, %v1905
      %v2006 = vsel %vm1992, %v1973, %v1907
      %v2008 = vsel %vm1992, %v1975, %v1909
      %v2010 = vsel %vm1992, %v1977, %v1911
      %v2012 = vsel %vm1992, %v1979, %v1913
      %v2014 = vsel %vm1992, %v1981, %v1915
      %v2016 = vsel %vm1992, %v1983, %v1917
      %v2018 = vsel %vm1992, %v1985, %v1919
      %v2020 = vsel %vm1992, %v1987, %v1921
      %v2022 = vsel %vm1992, %v1989, %v1923
      %v2024 = vsel %vm1992, %v1991, %v1925
      %v2025 = vld [vmem:[%s420] sm:$0xf]
      %v2026 = vld [vmem:[%s420 + $0x4] sm:$0xf]
      %v2028 = vlaneseq
      %v2029 = vshrl.u32 %v2028, 7
      %v2030 = vsub.s32 0, %v2029
      %v2031 = vrot.slane %v1092, %v2030
      %v2035 = vunpack.c.l.b16 %v2025
      %v2036 = vunpack.c.l.b16 %v2026
      %v2037 = vpack.c.b16 %v2036, %v2035
      %vm2039 = vcmask 130048
      %v2040 = vsel %vm2039, %v1994, 0
      %v2042 = vsel %vm2039, %v1996, 0
      %v2044 = vsel %vm2039, %v1998, 0
      %v2046 = vsel %vm2039, %v2000, 0
      %v2048 = vsel %vm2039, %v2002, 0
      %v2050 = vsel %vm2039, %v2004, 0
      %v2052 = vsel %vm2039, %v2006, 0
      %v2054 = vsel %vm2039, %v2008, 0
      %v2056 = vsel %vm2039, %v2010, 0
      %v2058 = vsel %vm2039, %v2012, 0
      %v2060 = vsel %vm2039, %v2014, 0
      %v2062 = vsel %vm2039, %v2016, 0
      %v2064 = vsel %vm2039, %v2018, 0
      %v2066 = vsel %vm2039, %v2020, 0
      %v2068 = vsel %vm2039, %v2022, 0
      %v2070 = vsel %vm2039, %v2024, 0
      %2072 = vmatprep.subr.bf16.mxu0 0
      %2073 = vmatpush1.bf16.msra.mxu0 0
      %2074 = vmatprep.subr.bf16.mxu0 0
      %2075 = vmatpush1.bf16.msra.mxu0 0
      %2076 = vmatprep.subr.bf16.mxu0 0
      %2077 = vmatpush1.bf16.msra.mxu0 0
      %2078 = vmatprep.subr.bf16.mxu0 0
      %2079 = vmatpush1.bf16.msra.mxu0 0
      %2080 = vmatprep.subr.bf16.mxu0 0
      %2081 = vmatpush1.bf16.msra.mxu0 0
      %2082 = vmatprep.subr.bf16.mxu0 0
      %2083 = vmatpush1.bf16.msra.mxu0 0
      %2084 = vmatprep.subr.bf16.mxu0 0
      %2085 = vmatpush1.bf16.msra.mxu0 0
      %2086 = vmatprep.subr.bf16.mxu0 0
      %2087 = vmatpush1.bf16.msra.mxu0 %v2037
      %2088 = vmatprep.subr.bf16.mxu0 0
      %2089 = vmatpush2.bf16.msra.mxu0 0
      %2090 = vmatprep.subr.bf16.mxu0 0
      %2091 = vmatpush2.bf16.msra.mxu0 0
      %2092 = vmatprep.subr.bf16.mxu0 0
      %2093 = vmatpush2.bf16.msra.mxu0 0
      %2094 = vmatprep.subr.bf16.mxu0 0
      %2095 = vmatpush2.bf16.msra.mxu0 0
      %2096 = vmatprep.subr.bf16.mxu0 0
      %2097 = vmatpush2.bf16.msra.mxu0 0
      %2098 = vmatprep.subr.bf16.mxu0 0
      %2099 = vmatpush2.bf16.msra.mxu0 0
      %2100 = vmatprep.subr.bf16.mxu0 0
      %2101 = vmatpush2.bf16.msra.mxu0 0
      %2102 = vmatprep.subr.bf16.mxu0 0
      %2103 = vmatpush2.bf16.msra.mxu0 0
      %2104 = vmatprep.mubr.bf16.mxu0 0
      %2105 = vmatmul.mubr.bf16.gmra.mxu0 %v2040
      %v2106 = vpop.f32.mrf.mxu0
      %v2107 = vadd.f32 %v2031, %v2106
      %v2108 = vpop.f32.mrf.mxu0
      %v2109 = vpop.f32.mrf.mxu0
      %v2110 = vadd.f32 %v2031, %v2109
      %v2111 = vpop.f32.mrf.mxu0
      %2112 = vmatprep.mubr.bf16.mxu0 0
      %2113 = vmatmul.mubr.bf16.gmra.mxu0 %v2042
      %v2114 = vpop.f32.mrf.mxu0
      %v2115 = vadd.f32 %v2031, %v2114
      %v2116 = vpop.f32.mrf.mxu0
      %v2117 = vpop.f32.mrf.mxu0
      %v2118 = vadd.f32 %v2031, %v2117
      %v2119 = vpop.f32.mrf.mxu0
      %2120 = vmatprep.mubr.bf16.mxu0 0
      %2121 = vmatmul.mubr.bf16.gmra.mxu0 %v2044
      %v2122 = vpop.f32.mrf.mxu0
      %v2123 = vadd.f32 %v2031, %v2122
      %v2124 = vpop.f32.mrf.mxu0
      %v2125 = vpop.f32.mrf.mxu0
      %v2126 = vadd.f32 %v2031, %v2125
      %v2127 = vpop.f32.mrf.mxu0
      %2128 = vmatprep.mubr.bf16.mxu0 0
      %2129 = vmatmul.mubr.bf16.gmra.mxu0 %v2046
      %v2130 = vpop.f32.mrf.mxu0
      %v2131 = vadd.f32 %v2031, %v2130
      %v2132 = vpop.f32.mrf.mxu0
      %v2133 = vpop.f32.mrf.mxu0
      %v2134 = vadd.f32 %v2031, %v2133
      %v2135 = vpop.f32.mrf.mxu0
      %2136 = vmatprep.mubr.bf16.mxu0 0
      %2137 = vmatmul.mubr.bf16.gmra.mxu0 %v2048
      %v2138 = vpop.f32.mrf.mxu0
      %v2139 = vadd.f32 %v2031, %v2138
      %v2140 = vpop.f32.mrf.mxu0
      %v2141 = vpop.f32.mrf.mxu0
      %v2142 = vadd.f32 %v2031, %v2141
      %v2143 = vpop.f32.mrf.mxu0
      %2144 = vmatprep.mubr.bf16.mxu0 0
      %2145 = vmatmul.mubr.bf16.gmra.mxu0 %v2050
      %v2146 = vpop.f32.mrf.mxu0
      %v2147 = vadd.f32 %v2031, %v2146
      %v2148 = vpop.f32.mrf.mxu0
      %v2149 = vpop.f32.mrf.mxu0
      %v2150 = vadd.f32 %v2031, %v2149
      %v2151 = vpop.f32.mrf.mxu0
      %2152 = vmatprep.mubr.bf16.mxu0 0
      %2153 = vmatmul.mubr.bf16.gmra.mxu0 %v2052
      %v2154 = vpop.f32.mrf.mxu0
      %v2155 = vadd.f32 %v2031, %v2154
      %v2156 = vpop.f32.mrf.mxu0
      %v2157 = vpop.f32.mrf.mxu0
      %v2158 = vadd.f32 %v2031, %v2157
      %v2159 = vpop.f32.mrf.mxu0
      %2160 = vmatprep.mubr.bf16.mxu0 0
      %2161 = vmatmul.mubr.bf16.gmra.mxu0 %v2054
      %v2162 = vpop.f32.mrf.mxu0
      %v2163 = vadd.f32 %v2031, %v2162
      %v2164 = vpop.f32.mrf.mxu0
      %v2165 = vpop.f32.mrf.mxu0
      %v2166 = vadd.f32 %v2031, %v2165
      %v2167 = vpop.f32.mrf.mxu0
      %2168 = vmatprep.mubr.bf16.mxu0 0
      %2169 = vmatmul.mubr.bf16.gmra.mxu0 %v2056
      %v2170 = vpop.f32.mrf.mxu0
      %v2171 = vadd.f32 %v2031, %v2170
      %v2172 = vpop.f32.mrf.mxu0
      %v2173 = vpop.f32.mrf.mxu0
      %v2174 = vadd.f32 %v2031, %v2173
      %v2175 = vpop.f32.mrf.mxu0
      %2176 = vmatprep.mubr.bf16.mxu0 0
      %2177 = vmatmul.mubr.bf16.gmra.mxu0 %v2058
      %v2178 = vpop.f32.mrf.mxu0
      %v2179 = vadd.f32 %v2031, %v2178
      %v2180 = vpop.f32.mrf.mxu0
      %v2181 = vpop.f32.mrf.mxu0
      %v2182 = vadd.f32 %v2031, %v2181
      %v2183 = vpop.f32.mrf.mxu0
      %2184 = vmatprep.mubr.bf16.mxu0 0
      %2185 = vmatmul.mubr.bf16.gmra.mxu0 %v2060
      %v2186 = vpop.f32.mrf.mxu0
      %v2187 = vadd.f32 %v2031, %v2186
      %v2188 = vpop.f32.mrf.mxu0
      %v2189 = vpop.f32.mrf.mxu0
      %v2190 = vadd.f32 %v2031, %v2189
      %v2191 = vpop.f32.mrf.mxu0
      %2192 = vmatprep.mubr.bf16.mxu0 0
      %2193 = vmatmul.mubr.bf16.gmra.mxu0 %v2062
      %v2194 = vpop.f32.mrf.mxu0
      %v2195 = vadd.f32 %v2031, %v2194
      %v2196 = vpop.f32.mrf.mxu0
      %v2197 = vpop.f32.mrf.mxu0
      %v2198 = vadd.f32 %v2031, %v2197
      %v2199 = vpop.f32.mrf.mxu0
      %2200 = vmatprep.mubr.bf16.mxu0 0
      %2201 = vmatmul.mubr.bf16.gmra.mxu0 %v2064
      %v2202 = vpop.f32.mrf.mxu0
      %v2203 = vadd.f32 %v2031, %v2202
      %v2204 = vpop.f32.mrf.mxu0
      %v2205 = vpop.f32.mrf.mxu0
      %v2206 = vadd.f32 %v2031, %v2205
      %v2207 = vpop.f32.mrf.mxu0
      %2208 = vmatprep.mubr.bf16.mxu0 0
      %2209 = vmatmul.mubr.bf16.gmra.mxu0 %v2066
      %v2210 = vpop.f32.mrf.mxu0
      %v2211 = vadd.f32 %v2031, %v2210
      %v2212 = vpop.f32.mrf.mxu0
      %v2213 = vpop.f32.mrf.mxu0
      %v2214 = vadd.f32 %v2031, %v2213
      %v2215 = vpop.f32.mrf.mxu0
      %2216 = vmatprep.mubr.bf16.mxu0 0
      %2217 = vmatmul.mubr.bf16.gmra.mxu0 %v2068
      %v2218 = vpop.f32.mrf.mxu0
      %v2219 = vadd.f32 %v2031, %v2218
      %v2220 = vpop.f32.mrf.mxu0
      %v2221 = vpop.f32.mrf.mxu0
      %v2222 = vadd.f32 %v2031, %v2221
      %v2223 = vpop.f32.mrf.mxu0
      %2224 = vmatprep.mubr.bf16.mxu0 0
      %2225 = vmatmul.mubr.bf16.gmra.mxu0 %v2070
      %v2226 = vpop.f32.mrf.mxu0
      %v2227 = vadd.f32 %v2031, %v2226
      %v2228 = vpop.f32.mrf.mxu0
      %v2229 = vpop.f32.mrf.mxu0
      %v2230 = vadd.f32 %v2031, %v2229
      %v2231 = vpop.f32.mrf.mxu0
      %2232 = vdwg.mxu0
      %v2233 = vpack.c.bf16 %v2110, %v2107
      %v2234 = vpack.c.bf16 %v2118, %v2115
      %v2235 = vpack.c.bf16 %v2126, %v2123
      %v2236 = vpack.c.bf16 %v2134, %v2131
      %v2237 = vpack.c.bf16 %v2142, %v2139
      %v2238 = vpack.c.bf16 %v2150, %v2147
      %v2239 = vpack.c.bf16 %v2158, %v2155
      %v2240 = vpack.c.bf16 %v2166, %v2163
      %v2241 = vpack.c.bf16 %v2174, %v2171
      %v2242 = vpack.c.bf16 %v2182, %v2179
      %v2243 = vpack.c.bf16 %v2190, %v2187
      %v2244 = vpack.c.bf16 %v2198, %v2195
      %v2245 = vpack.c.bf16 %v2206, %v2203
      %v2246 = vpack.c.bf16 %v2214, %v2211
      %v2247 = vpack.c.bf16 %v2222, %v2219
      %v2248 = vpack.c.bf16 %v2230, %v2227
      %v2265 = vunpack.c.l.b16 %v2233
      %v2266 = vunpack.c.h.b16 %v2233
      %v2267 = vunpack.c.l.b16 %v2234
      %v2268 = vunpack.c.h.b16 %v2234
      %v2269 = vunpack.c.l.b16 %v2235
      %v2270 = vunpack.c.h.b16 %v2235
      %v2271 = vunpack.c.l.b16 %v2236
      %v2272 = vunpack.c.h.b16 %v2236
      %v2273 = vunpack.c.l.b16 %v2237
      %v2274 = vunpack.c.h.b16 %v2237
      %v2275 = vunpack.c.l.b16 %v2238
      %v2276 = vunpack.c.h.b16 %v2238
      %v2277 = vunpack.c.l.b16 %v2239
      %v2278 = vunpack.c.h.b16 %v2239
      %v2279 = vunpack.c.l.b16 %v2240
      %v2280 = vunpack.c.h.b16 %v2240
      %v2281 = vunpack.c.l.b16 %v2241
      %v2282 = vunpack.c.h.b16 %v2241
      %v2283 = vunpack.c.l.b16 %v2242
      %v2284 = vunpack.c.h.b16 %v2242
      %v2285 = vunpack.c.l.b16 %v2243
      %v2286 = vunpack.c.h.b16 %v2243
      %v2287 = vunpack.c.l.b16 %v2244
      %v2288 = vunpack.c.h.b16 %v2244
      %v2289 = vunpack.c.l.b16 %v2245
      %v2290 = vunpack.c.h.b16 %v2245
      %v2291 = vunpack.c.l.b16 %v2246
      %v2292 = vunpack.c.h.b16 %v2246
      %v2293 = vunpack.c.l.b16 %v2247
      %v2294 = vunpack.c.h.b16 %v2247
      %v2295 = vunpack.c.l.b16 %v2248
      %v2296 = vunpack.c.h.b16 %v2248
      %v2297 = vpack.c.b16 %v2265, %v2265
      %v2298 = vpack.c.b16 %v2266, %v2266
      %v2299 = vpack.c.b16 %v2267, %v2267
      %v2300 = vpack.c.b16 %v2268, %v2268
      %v2301 = vpack.c.b16 %v2269, %v2269
      %v2302 = vpack.c.b16 %v2270, %v2270
      %v2303 = vpack.c.b16 %v2271, %v2271
      %v2304 = vpack.c.b16 %v2272, %v2272
      %v2305 = vpack.c.b16 %v2273, %v2273
      %v2306 = vpack.c.b16 %v2274, %v2274
      %v2307 = vpack.c.b16 %v2275, %v2275
      %v2308 = vpack.c.b16 %v2276, %v2276
      %v2309 = vpack.c.b16 %v2277, %v2277
      %v2310 = vpack.c.b16 %v2278, %v2278
      %v2311 = vpack.c.b16 %v2279, %v2279
      %v2312 = vpack.c.b16 %v2280, %v2280
      %v2313 = vpack.c.b16 %v2281, %v2281
      %v2314 = vpack.c.b16 %v2282, %v2282
      %v2315 = vpack.c.b16 %v2283, %v2283
      %v2316 = vpack.c.b16 %v2284, %v2284
      %v2317 = vpack.c.b16 %v2285, %v2285
      %v2318 = vpack.c.b16 %v2286, %v2286
      %v2319 = vpack.c.b16 %v2287, %v2287
      %v2320 = vpack.c.b16 %v2288, %v2288
      %v2321 = vpack.c.b16 %v2289, %v2289
      %v2322 = vpack.c.b16 %v2290, %v2290
      %v2323 = vpack.c.b16 %v2291, %v2291
      %v2324 = vpack.c.b16 %v2292, %v2292
      %v2325 = vpack.c.b16 %v2293, %v2293
      %v2326 = vpack.c.b16 %v2294, %v2294
      %v2327 = vpack.c.b16 %v2295, %v2295
      %v2328 = vpack.c.b16 %v2296, %v2296
      %2361 = vst.msk [vmem:[%s435] sm:$0xf] %vm911, %v2297
      %2362 = vst.msk [vmem:[%s435 + $0x4] sm:$0xf] %vm911, %v2298
      %2363 = vst.msk [vmem:[%s435 + $0x8] sm:$0xf] %vm911, %v2299
      %2364 = vst.msk [vmem:[%s435 + $0xc] sm:$0xf] %vm911, %v2300
      %2365 = vst.msk [vmem:[%s435 + $0x10] sm:$0xf] %vm911, %v2301
      %2366 = vst.msk [vmem:[%s435 + $0x14] sm:$0xf] %vm911, %v2302
      %2367 = vst.msk [vmem:[%s435 + $0x18] sm:$0xf] %vm911, %v2303
      %2368 = vst.msk [vmem:[%s435 + $0x1c] sm:$0xf] %vm911, %v2304
      %2369 = vst.msk [vmem:[%s435 + $0x20] sm:$0xf] %vm911, %v2305
      %2370 = vst.msk [vmem:[%s435 + $0x24] sm:$0xf] %vm911, %v2306
      %2371 = vst.msk [vmem:[%s435 + $0x28] sm:$0xf] %vm911, %v2307
      %2372 = vst.msk [vmem:[%s435 + $0x2c] sm:$0xf] %vm911, %v2308
      %2373 = vst.msk [vmem:[%s435 + $0x30] sm:$0xf] %vm911, %v2309
      %2374 = vst.msk [vmem:[%s435 + $0x34] sm:$0xf] %vm911, %v2310
      %2375 = vst.msk [vmem:[%s435 + $0x38] sm:$0xf] %vm911, %v2311
      %2376 = vst.msk [vmem:[%s435 + $0x3c] sm:$0xf] %vm911, %v2312
      %2377 = vst.msk [vmem:[%s435 + $0x40] sm:$0xf] %vm911, %v2313
      %2378 = vst.msk [vmem:[%s435 + $0x44] sm:$0xf] %vm911, %v2314
      %2379 = vst.msk [vmem:[%s435 + $0x48] sm:$0xf] %vm911, %v2315
      %2380 = vst.msk [vmem:[%s435 + $0x4c] sm:$0xf] %vm911, %v2316
      %2381 = vst.msk [vmem:[%s435 + $0x50] sm:$0xf] %vm911, %v2317
      %2382 = vst.msk [vmem:[%s435 + $0x54] sm:$0xf] %vm911, %v2318
      %2383 = vst.msk [vmem:[%s435 + $0x58] sm:$0xf] %vm911, %v2319
      %2384 = vst.msk [vmem:[%s435 + $0x5c] sm:$0xf] %vm911, %v2320
      %2385 = vst.msk [vmem:[%s435 + $0x60] sm:$0xf] %vm911, %v2321
      %2386 = vst.msk [vmem:[%s435 + $0x64] sm:$0xf] %vm911, %v2322
      %2387 = vst.msk [vmem:[%s435 + $0x68] sm:$0xf] %vm911, %v2323
      %2388 = vst.msk [vmem:[%s435 + $0x6c] sm:$0xf] %vm911, %v2324
      %2389 = vst.msk [vmem:[%s435 + $0x70] sm:$0xf] %vm911, %v2325
      %2390 = vst.msk [vmem:[%s435 + $0x74] sm:$0xf] %vm911, %v2326
      %2391 = vst.msk [vmem:[%s435 + $0x78] sm:$0xf] %vm911, %v2327
      %2392 = vst.msk [vmem:[%s435 + $0x7c] sm:$0xf] %vm911, %v2328
      %v2393 = vld [vmem:[#allocation2] sm:$0xf]
      %v2394 = vld [vmem:[#allocation2 + $0x4] sm:$0xf]
      %v2395 = vld [vmem:[#allocation2 + $0x8] sm:$0x1]
      %v2396 = vld [vmem:[#allocation2 + $0xc] sm:$0xf]
      %v2397 = vld [vmem:[#allocation2 + $0x10] sm:$0xf]
      %v2398 = vld [vmem:[#allocation2 + $0x14] sm:$0x1]
      %v2399 = vld [vmem:[#allocation2 + $0x18] sm:$0xf]
      %v2400 = vld [vmem:[#allocation2 + $0x1c] sm:$0xf]
      %v2401 = vld [vmem:[#allocation2 + $0x20] sm:$0x1]
      %v2402 = vld [vmem:[#allocation2 + $0x24] sm:$0xf]
      %v2403 = vld [vmem:[#allocation2 + $0x28] sm:$0xf]
      %v2404 = vld [vmem:[#allocation2 + $0x2c] sm:$0x1]
      %v2405 = vld [vmem:[#allocation2 + $0x30] sm:$0xf]
      %v2406 = vld [vmem:[#allocation2 + $0x34] sm:$0xf]
      %v2407 = vld [vmem:[#allocation2 + $0x38] sm:$0x1]
      %v2408 = vld [vmem:[#allocation2 + $0x3c] sm:$0xf]
      %v2409 = vld [vmem:[#allocation2 + $0x40] sm:$0xf]
      %v2410 = vld [vmem:[#allocation2 + $0x44] sm:$0x1]
      %v2411 = vld [vmem:[#allocation2 + $0x48] sm:$0xf]
      %v2412 = vld [vmem:[#allocation2 + $0x4c] sm:$0xf]
      %v2413 = vld [vmem:[#allocation2 + $0x50] sm:$0x1]
      %v2414 = vld [vmem:[#allocation2 + $0x54] sm:$0xf]
      %v2415 = vld [vmem:[#allocation2 + $0x58] sm:$0xf]
      %v2416 = vld [vmem:[#allocation2 + $0x5c] sm:$0x1]
      %v2417 = vld [vmem:[#allocation2 + $0x60] sm:$0xf]
      %v2418 = vld [vmem:[#allocation2 + $0x64] sm:$0xf]
      %v2419 = vld [vmem:[#allocation2 + $0x68] sm:$0x1]
      %v2420 = vld [vmem:[#allocation2 + $0x6c] sm:$0xf]
      %v2421 = vld [vmem:[#allocation2 + $0x70] sm:$0xf]
      %v2422 = vld [vmem:[#allocation2 + $0x74] sm:$0x1]
      %v2423 = vld [vmem:[#allocation2 + $0x78] sm:$0xf]
      %v2424 = vld [vmem:[#allocation2 + $0x7c] sm:$0xf]
      %v2425 = vld [vmem:[#allocation2 + $0x80] sm:$0x1]
      %v2426 = vld [vmem:[#allocation2 + $0x84] sm:$0xf]
      %v2427 = vld [vmem:[#allocation2 + $0x88] sm:$0xf]
      %v2428 = vld [vmem:[#allocation2 + $0x8c] sm:$0x1]
      %v2429 = vld [vmem:[#allocation2 + $0x90] sm:$0xf]
      %v2430 = vld [vmem:[#allocation2 + $0x94] sm:$0xf]
      %v2431 = vld [vmem:[#allocation2 + $0x98] sm:$0x1]
      %v2432 = vld [vmem:[#allocation2 + $0x9c] sm:$0xf]
      %v2433 = vld [vmem:[#allocation2 + $0xa0] sm:$0xf]
      %v2434 = vld [vmem:[#allocation2 + $0xa4] sm:$0x1]
      %v2435 = vld [vmem:[#allocation2 + $0xa8] sm:$0xf]
      %v2436 = vld [vmem:[#allocation2 + $0xac] sm:$0xf]
      %v2437 = vld [vmem:[#allocation2 + $0xb0] sm:$0x1]
      %v2438 = vld [vmem:[#allocation2 + $0xb4] sm:$0xf]
      %v2439 = vld [vmem:[#allocation2 + $0xb8] sm:$0xf]
      %v2440 = vld [vmem:[#allocation2 + $0xbc] sm:$0x1]
      %v2441 = vld [vmem:[#allocation2] sm:$0xe]
      %v2442 = vld [vmem:[#allocation2 + $0xc] sm:$0xe]
      %v2443 = vld [vmem:[#allocation2 + $0x18] sm:$0xe]
      %v2444 = vld [vmem:[#allocation2 + $0x24] sm:$0xe]
      %v2445 = vld [vmem:[#allocation2 + $0x30] sm:$0xe]
      %v2446 = vld [vmem:[#allocation2 + $0x3c] sm:$0xe]
      %v2447 = vld [vmem:[#allocation2 + $0x48] sm:$0xe]
      %v2448 = vld [vmem:[#allocation2 + $0x54] sm:$0xe]
      %v2449 = vld [vmem:[#allocation2 + $0x60] sm:$0xe]
      %v2450 = vld [vmem:[#allocation2 + $0x6c] sm:$0xe]
      %v2451 = vld [vmem:[#allocation2 + $0x78] sm:$0xe]
      %v2452 = vld [vmem:[#allocation2 + $0x84] sm:$0xe]
      %v2453 = vld [vmem:[#allocation2 + $0x90] sm:$0xe]
      %v2454 = vld [vmem:[#allocation2 + $0x9c] sm:$0xe]
      %v2455 = vld [vmem:[#allocation2 + $0xa8] sm:$0xe]
      %v2456 = vld [vmem:[#allocation2 + $0xb4] sm:$0xe]
      %v2457 = vld [vmem:[%s905] sm:$0xf]
      %v2458 = vld [vmem:[%s905 + $0x4] sm:$0xf]
      %v2459 = vld [vmem:[%s905 + $0x8] sm:$0x1]
      %v2460 = vld [vmem:[%s905 + $0xc] sm:$0xf]
      %v2461 = vld [vmem:[%s905 + $0x10] sm:$0xf]
      %v2462 = vld [vmem:[%s905 + $0x14] sm:$0x1]
      %v2463 = vld [vmem:[%s905 + $0x18] sm:$0xf]
      %v2464 = vld [vmem:[%s905 + $0x1c] sm:$0xf]
      %v2465 = vld [vmem:[%s905 + $0x20] sm:$0x1]
      %v2466 = vld [vmem:[%s905 + $0x24] sm:$0xf]
      %v2467 = vld [vmem:[%s905 + $0x28] sm:$0xf]
      %v2468 = vld [vmem:[%s905 + $0x2c] sm:$0x1]
      %v2469 = vld [vmem:[%s905 + $0x30] sm:$0xf]
      %v2470 = vld [vmem:[%s905 + $0x34] sm:$0xf]
      %v2471 = vld [vmem:[%s905 + $0x38] sm:$0x1]
      %v2472 = vld [vmem:[%s905 + $0x3c] sm:$0xf]
      %v2473 = vld [vmem:[%s905 + $0x40] sm:$0xf]
      %v2474 = vld [vmem:[%s905 + $0x44] sm:$0x1]
      %v2475 = vld [vmem:[%s905 + $0x48] sm:$0xf]
      %v2476 = vld [vmem:[%s905 + $0x4c] sm:$0xf]
      %v2477 = vld [vmem:[%s905 + $0x50] sm:$0x1]
      %v2478 = vld [vmem:[%s905 + $0x54] sm:$0xf]
      %v2479 = vld [vmem:[%s905 + $0x58] sm:$0xf]
      %v2480 = vld [vmem:[%s905 + $0x5c] sm:$0x1]
      %v2481 = vld [vmem:[%s905 + $0x60] sm:$0xf]
      %v2482 = vld [vmem:[%s905 + $0x64] sm:$0xf]
      %v2483 = vld [vmem:[%s905 + $0x68] sm:$0x1]
      %v2484 = vld [vmem:[%s905 + $0x6c] sm:$0xf]
      %v2485 = vld [vmem:[%s905 + $0x70] sm:$0xf]
      %v2486 = vld [vmem:[%s905 + $0x74] sm:$0x1]
      %v2487 = vld [vmem:[%s905 + $0x78] sm:$0xf]
      %v2488 = vld [vmem:[%s905 + $0x7c] sm:$0xf]
      %v2489 = vld [vmem:[%s905 + $0x80] sm:$0x1]
      %v2490 = vld [vmem:[%s905 + $0x84] sm:$0xf]
      %v2491 = vld [vmem:[%s905 + $0x88] sm:$0xf]
      %v2492 = vld [vmem:[%s905 + $0x8c] sm:$0x1]
      %v2493 = vld [vmem:[%s905 + $0x90] sm:$0xf]
      %v2494 = vld [vmem:[%s905 + $0x94] sm:$0xf]
      %v2495 = vld [vmem:[%s905 + $0x98] sm:$0x1]
      %v2496 = vld [vmem:[%s905 + $0x9c] sm:$0xf]
      %v2497 = vld [vmem:[%s905 + $0xa0] sm:$0xf]
      %v2498 = vld [vmem:[%s905 + $0xa4] sm:$0x1]
      %v2499 = vld [vmem:[%s905 + $0xa8] sm:$0xf]
      %v2500 = vld [vmem:[%s905 + $0xac] sm:$0xf]
      %v2501 = vld [vmem:[%s905 + $0xb0] sm:$0x1]
      %v2502 = vld [vmem:[%s905 + $0xb4] sm:$0xf]
      %v2503 = vld [vmem:[%s905 + $0xb8] sm:$0xf]
      %v2504 = vld [vmem:[%s905 + $0xbc] sm:$0x1]
      %v2505 = vld [vmem:[%s905] sm:$0xe]
      %v2506 = vld [vmem:[%s905 + $0xc] sm:$0xe]
      %v2507 = vld [vmem:[%s905 + $0x18] sm:$0xe]
      %v2508 = vld [vmem:[%s905 + $0x24] sm:$0xe]
      %v2509 = vld [vmem:[%s905 + $0x30] sm:$0xe]
      %v2510 = vld [vmem:[%s905 + $0x3c] sm:$0xe]
      %v2511 = vld [vmem:[%s905 + $0x48] sm:$0xe]
      %v2512 = vld [vmem:[%s905 + $0x54] sm:$0xe]
      %v2513 = vld [vmem:[%s905 + $0x60] sm:$0xe]
      %v2514 = vld [vmem:[%s905 + $0x6c] sm:$0xe]
      %v2515 = vld [vmem:[%s905 + $0x78] sm:$0xe]
      %v2516 = vld [vmem:[%s905 + $0x84] sm:$0xe]
      %v2517 = vld [vmem:[%s905 + $0x90] sm:$0xe]
      %v2518 = vld [vmem:[%s905 + $0x9c] sm:$0xe]
      %v2519 = vld [vmem:[%s905 + $0xa8] sm:$0xe]
      %v2520 = vld [vmem:[%s905 + $0xb4] sm:$0xe]
      %v2569 = vunpack.c.l.b16 %v2393
      %v2570 = vunpack.c.l.b16 %v2394
      %v2571 = vunpack.c.l.b16 %v2395
      %v2572 = vunpack.c.l.b16 %v2396
      %v2573 = vunpack.c.l.b16 %v2397
      %v2574 = vunpack.c.l.b16 %v2398
      %v2575 = vunpack.c.l.b16 %v2399
      %v2576 = vunpack.c.l.b16 %v2400
      %v2577 = vunpack.c.l.b16 %v2401
      %v2578 = vunpack.c.l.b16 %v2402
      %v2579 = vunpack.c.l.b16 %v2403
      %v2580 = vunpack.c.l.b16 %v2404
      %v2581 = vunpack.c.l.b16 %v2405
      %v2582 = vunpack.c.l.b16 %v2406
      %v2583 = vunpack.c.l.b16 %v2407
      %v2584 = vunpack.c.l.b16 %v2408
      %v2585 = vunpack.c.l.b16 %v2409
      %v2586 = vunpack.c.l.b16 %v2410
      %v2587 = vunpack.c.l.b16 %v2411
      %v2588 = vunpack.c.l.b16 %v2412
      %v2589 = vunpack.c.l.b16 %v2413
      %v2590 = vunpack.c.l.b16 %v2414
      %v2591 = vunpack.c.l.b16 %v2415
      %v2592 = vunpack.c.l.b16 %v2416
      %v2593 = vunpack.c.l.b16 %v2417
      %v2594 = vunpack.c.l.b16 %v2418
      %v2595 = vunpack.c.l.b16 %v2419
      %v2596 = vunpack.c.l.b16 %v2420
      %v2597 = vunpack.c.l.b16 %v2421
      %v2598 = vunpack.c.l.b16 %v2422
      %v2599 = vunpack.c.l.b16 %v2423
      %v2600 = vunpack.c.l.b16 %v2424
      %v2601 = vunpack.c.l.b16 %v2425
      %v2602 = vunpack.c.l.b16 %v2426
      %v2603 = vunpack.c.l.b16 %v2427
      %v2604 = vunpack.c.l.b16 %v2428
      %v2605 = vunpack.c.l.b16 %v2429
      %v2606 = vunpack.c.l.b16 %v2430
      %v2607 = vunpack.c.l.b16 %v2431
      %v2608 = vunpack.c.l.b16 %v2432
      %v2609 = vunpack.c.l.b16 %v2433
      %v2610 = vunpack.c.l.b16 %v2434
      %v2611 = vunpack.c.l.b16 %v2435
      %v2612 = vunpack.c.l.b16 %v2436
      %v2613 = vunpack.c.l.b16 %v2437
      %v2614 = vunpack.c.l.b16 %v2438
      %v2615 = vunpack.c.l.b16 %v2439
      %v2616 = vunpack.c.l.b16 %v2440
      %v2617 = vpack.c.b16 %v2570, %v2569
      %v2618 = vpack.c.b16 %v2571, %v2571
      %v2619 = vpack.c.b16 %v2573, %v2572
      %v2620 = vpack.c.b16 %v2574, %v2574
      %v2621 = vpack.c.b16 %v2576, %v2575
      %v2622 = vpack.c.b16 %v2577, %v2577
      %v2623 = vpack.c.b16 %v2579, %v2578
      %v2624 = vpack.c.b16 %v2580, %v2580
      %v2625 = vpack.c.b16 %v2582, %v2581
      %v2626 = vpack.c.b16 %v2583, %v2583
      %v2627 = vpack.c.b16 %v2585, %v2584
      %v2628 = vpack.c.b16 %v2586, %v2586
      %v2629 = vpack.c.b16 %v2588, %v2587
      %v2630 = vpack.c.b16 %v2589, %v2589
      %v2631 = vpack.c.b16 %v2591, %v2590
      %v2632 = vpack.c.b16 %v2592, %v2592
      %v2633 = vpack.c.b16 %v2594, %v2593
      %v2634 = vpack.c.b16 %v2595, %v2595
      %v2635 = vpack.c.b16 %v2597, %v2596
      %v2636 = vpack.c.b16 %v2598, %v2598
      %v2637 = vpack.c.b16 %v2600, %v2599
      %v2638 = vpack.c.b16 %v2601, %v2601
      %v2639 = vpack.c.b16 %v2603, %v2602
      %v2640 = vpack.c.b16 %v2604, %v2604
      %v2641 = vpack.c.b16 %v2606, %v2605
      %v2642 = vpack.c.b16 %v2607, %v2607
      %v2643 = vpack.c.b16 %v2609, %v2608
      %v2644 = vpack.c.b16 %v2610, %v2610
      %v2645 = vpack.c.b16 %v2612, %v2611
      %v2646 = vpack.c.b16 %v2613, %v2613
      %v2647 = vpack.c.b16 %v2615, %v2614
      %v2648 = vpack.c.b16 %v2616, %v2616
      %v2665 = vunpack.c.l.b16 %v2441
      %v2666 = vunpack.c.l.b16 %v2442
      %v2667 = vunpack.c.l.b16 %v2443
      %v2668 = vunpack.c.l.b16 %v2444
      %v2669 = vunpack.c.l.b16 %v2445
      %v2670 = vunpack.c.l.b16 %v2446
      %v2671 = vunpack.c.l.b16 %v2447
      %v2672 = vunpack.c.l.b16 %v2448
      %v2673 = vunpack.c.l.b16 %v2449
      %v2674 = vunpack.c.l.b16 %v2450
      %v2675 = vunpack.c.l.b16 %v2451
      %v2676 = vunpack.c.l.b16 %v2452
      %v2677 = vunpack.c.l.b16 %v2453
      %v2678 = vunpack.c.l.b16 %v2454
      %v2679 = vunpack.c.l.b16 %v2455
      %v2680 = vunpack.c.l.b16 %v2456
      %v2681 = vpack.c.b16 %v2570, %v2665
      %v2682 = vpack.c.b16 %v2573, %v2666
      %v2683 = vpack.c.b16 %v2576, %v2667
      %v2684 = vpack.c.b16 %v2579, %v2668
      %v2685 = vpack.c.b16 %v2582, %v2669
      %v2686 = vpack.c.b16 %v2585, %v2670
      %v2687 = vpack.c.b16 %v2588, %v2671
      %v2688 = vpack.c.b16 %v2591, %v2672
      %v2689 = vpack.c.b16 %v2594, %v2673
      %v2690 = vpack.c.b16 %v2597, %v2674
      %v2691 = vpack.c.b16 %v2600, %v2675
      %v2692 = vpack.c.b16 %v2603, %v2676
      %v2693 = vpack.c.b16 %v2606, %v2677
      %v2694 = vpack.c.b16 %v2609, %v2678
      %v2695 = vpack.c.b16 %v2612, %v2679
      %v2696 = vpack.c.b16 %v2615, %v2680
      %v2698 = vshrl.u32 %v2681, 16
      %v2700 = vshll.u32 %v2681, 16
      %v2702 = vrot.slane %v2700, 1
      %v2703 = vor.u32 %v2698, %v2702
      %v2705 = vshll.u32 %v2618, 16
      %v2707 = vrot.slane %v2705, 1
      %v2708 = vsel %vm1317, %v2703, %v2707
      %v2709 = vshrl.u32 %v2618, 16
      %v2712 = vshrl.u32 %v2682, 16
      %v2714 = vshll.u32 %v2682, 16
      %v2716 = vrot.slane %v2714, 1
      %v2717 = vor.u32 %v2712, %v2716
      %v2719 = vshll.u32 %v2620, 16
      %v2721 = vrot.slane %v2719, 1
      %v2722 = vsel %vm1317, %v2717, %v2721
      %v2723 = vshrl.u32 %v2620, 16
      %v2726 = vshrl.u32 %v2683, 16
      %v2728 = vshll.u32 %v2683, 16
      %v2730 = vrot.slane %v2728, 1
      %v2731 = vor.u32 %v2726, %v2730
      %v2733 = vshll.u32 %v2622, 16
      %v2735 = vrot.slane %v2733, 1
      %v2736 = vsel %vm1317, %v2731, %v2735
      %v2737 = vshrl.u32 %v2622, 16
      %v2740 = vshrl.u32 %v2684, 16
      %v2742 = vshll.u32 %v2684, 16
      %v2744 = vrot.slane %v2742, 1
      %v2745 = vor.u32 %v2740, %v2744
      %v2747 = vshll.u32 %v2624, 16
      %v2749 = vrot.slane %v2747, 1
      %v2750 = vsel %vm1317, %v2745, %v2749
      %v2751 = vshrl.u32 %v2624, 16
      %v2754 = vshrl.u32 %v2685, 16
      %v2756 = vshll.u32 %v2685, 16
      %v2758 = vrot.slane %v2756, 1
      %v2759 = vor.u32 %v2754, %v2758
      %v2761 = vshll.u32 %v2626, 16
      %v2763 = vrot.slane %v2761, 1
      %v2764 = vsel %vm1317, %v2759, %v2763
      %v2765 = vshrl.u32 %v2626, 16
      %v2768 = vshrl.u32 %v2686, 16
      %v2770 = vshll.u32 %v2686, 16
      %v2772 = vrot.slane %v2770, 1
      %v2773 = vor.u32 %v2768, %v2772
      %v2775 = vshll.u32 %v2628, 16
      %v2777 = vrot.slane %v2775, 1
      %v2778 = vsel %vm1317, %v2773, %v2777
      %v2779 = vshrl.u32 %v2628, 16
      %v2782 = vshrl.u32 %v2687, 16
      %v2784 = vshll.u32 %v2687, 16
      %v2786 = vrot.slane %v2784, 1
      %v2787 = vor.u32 %v2782, %v2786
      %v2789 = vshll.u32 %v2630, 16
      %v2791 = vrot.slane %v2789, 1
      %v2792 = vsel %vm1317, %v2787, %v2791
      %v2793 = vshrl.u32 %v2630, 16
      %v2796 = vshrl.u32 %v2688, 16
      %v2798 = vshll.u32 %v2688, 16
      %v2800 = vrot.slane %v2798, 1
      %v2801 = vor.u32 %v2796, %v2800
      %v2803 = vshll.u32 %v2632, 16
      %v2805 = vrot.slane %v2803, 1
      %v2806 = vsel %vm1317, %v2801, %v2805
      %v2807 = vshrl.u32 %v2632, 16
      %v2810 = vshrl.u32 %v2689, 16
      %v2812 = vshll.u32 %v2689, 16
      %v2814 = vrot.slane %v2812, 1
      %v2815 = vor.u32 %v2810, %v2814
      %v2817 = vshll.u32 %v2634, 16
      %v2819 = vrot.slane %v2817, 1
      %v2820 = vsel %vm1317, %v2815, %v2819
      %v2821 = vshrl.u32 %v2634, 16
      %v2824 = vshrl.u32 %v2690, 16
      %v2826 = vshll.u32 %v2690, 16
      %v2828 = vrot.slane %v2826, 1
      %v2829 = vor.u32 %v2824, %v2828
      %v2831 = vshll.u32 %v2636, 16
      %v2833 = vrot.slane %v2831, 1
      %v2834 = vsel %vm1317, %v2829, %v2833
      %v2835 = vshrl.u32 %v2636, 16
      %v2838 = vshrl.u32 %v2691, 16
      %v2840 = vshll.u32 %v2691, 16
      %v2842 = vrot.slane %v2840, 1
      %v2843 = vor.u32 %v2838, %v2842
      %v2845 = vshll.u32 %v2638, 16
      %v2847 = vrot.slane %v2845, 1
      %v2848 = vsel %vm1317, %v2843, %v2847
      %v2849 = vshrl.u32 %v2638, 16
      %v2852 = vshrl.u32 %v2692, 16
      %v2854 = vshll.u32 %v2692, 16
      %v2856 = vrot.slane %v2854, 1
      %v2857 = vor.u32 %v2852, %v2856
      %v2859 = vshll.u32 %v2640, 16
      %v2861 = vrot.slane %v2859, 1
      %v2862 = vsel %vm1317, %v2857, %v2861
      %v2863 = vshrl.u32 %v2640, 16
      %v2866 = vshrl.u32 %v2693, 16
      %v2868 = vshll.u32 %v2693, 16
      %v2870 = vrot.slane %v2868, 1
      %v2871 = vor.u32 %v2866, %v2870
      %v2873 = vshll.u32 %v2642, 16
      %v2875 = vrot.slane %v2873, 1
      %v2876 = vsel %vm1317, %v2871, %v2875
      %v2877 = vshrl.u32 %v2642, 16
      %v2880 = vshrl.u32 %v2694, 16
      %v2882 = vshll.u32 %v2694, 16
      %v2884 = vrot.slane %v2882, 1
      %v2885 = vor.u32 %v2880, %v2884
      %v2887 = vshll.u32 %v2644, 16
      %v2889 = vrot.slane %v2887, 1
      %v2890 = vsel %vm1317, %v2885, %v2889
      %v2891 = vshrl.u32 %v2644, 16
      %v2894 = vshrl.u32 %v2695, 16
      %v2896 = vshll.u32 %v2695, 16
      %v2898 = vrot.slane %v2896, 1
      %v2899 = vor.u32 %v2894, %v2898
      %v2901 = vshll.u32 %v2646, 16
      %v2903 = vrot.slane %v2901, 1
      %v2904 = vsel %vm1317, %v2899, %v2903
      %v2905 = vshrl.u32 %v2646, 16
      %v2908 = vshrl.u32 %v2696, 16
      %v2910 = vshll.u32 %v2696, 16
      %v2912 = vrot.slane %v2910, 1
      %v2913 = vor.u32 %v2908, %v2912
      %v2915 = vshll.u32 %v2648, 16
      %v2917 = vrot.slane %v2915, 1
      %v2918 = vsel %vm1317, %v2913, %v2917
      %v2919 = vshrl.u32 %v2648, 16
      %2921 = vrot.lane.b32.xlu0 %v2708, 4
      %v2922 = vpop.permute.xlu0 %2921
      %2923 = vrot.lane.b32.xlu0 %v2709, 4
      %v2924 = vpop.permute.xlu0 %2923
      %2925 = vrot.lane.b32.xlu0 %v2722, 4
      %v2926 = vpop.permute.xlu0 %2925
      %2927 = vrot.lane.b32.xlu0 %v2723, 4
      %v2928 = vpop.permute.xlu0 %2927
      %2929 = vrot.lane.b32.xlu0 %v2736, 4
      %v2930 = vpop.permute.xlu0 %2929
      %2931 = vrot.lane.b32.xlu0 %v2737, 4
      %v2932 = vpop.permute.xlu0 %2931
      %2933 = vrot.lane.b32.xlu0 %v2750, 4
      %v2934 = vpop.permute.xlu0 %2933
      %2935 = vrot.lane.b32.xlu0 %v2751, 4
      %v2936 = vpop.permute.xlu0 %2935
      %2937 = vrot.lane.b32.xlu0 %v2764, 4
      %v2938 = vpop.permute.xlu0 %2937
      %2939 = vrot.lane.b32.xlu0 %v2765, 4
      %v2940 = vpop.permute.xlu0 %2939
      %2941 = vrot.lane.b32.xlu0 %v2778, 4
      %v2942 = vpop.permute.xlu0 %2941
      %2943 = vrot.lane.b32.xlu0 %v2779, 4
      %v2944 = vpop.permute.xlu0 %2943
      %2945 = vrot.lane.b32.xlu0 %v2792, 4
      %v2946 = vpop.permute.xlu0 %2945
      %2947 = vrot.lane.b32.xlu0 %v2793, 4
      %v2948 = vpop.permute.xlu0 %2947
      %2949 = vrot.lane.b32.xlu0 %v2806, 4
      %v2950 = vpop.permute.xlu0 %2949
      %2951 = vrot.lane.b32.xlu0 %v2807, 4
      %v2952 = vpop.permute.xlu0 %2951
      %2953 = vrot.lane.b32.xlu0 %v2820, 4
      %v2954 = vpop.permute.xlu0 %2953
      %2955 = vrot.lane.b32.xlu0 %v2821, 4
      %v2956 = vpop.permute.xlu0 %2955
      %2957 = vrot.lane.b32.xlu0 %v2834, 4
      %v2958 = vpop.permute.xlu0 %2957
      %2959 = vrot.lane.b32.xlu0 %v2835, 4
      %v2960 = vpop.permute.xlu0 %2959
      %2961 = vrot.lane.b32.xlu0 %v2848, 4
      %v2962 = vpop.permute.xlu0 %2961
      %2963 = vrot.lane.b32.xlu0 %v2849, 4
      %v2964 = vpop.permute.xlu0 %2963
      %2965 = vrot.lane.b32.xlu0 %v2862, 4
      %v2966 = vpop.permute.xlu0 %2965
      %2967 = vrot.lane.b32.xlu0 %v2863, 4
      %v2968 = vpop.permute.xlu0 %2967
      %2969 = vrot.lane.b32.xlu0 %v2876, 4
      %v2970 = vpop.permute.xlu0 %2969
      %2971 = vrot.lane.b32.xlu0 %v2877, 4
      %v2972 = vpop.permute.xlu0 %2971
      %2973 = vrot.lane.b32.xlu0 %v2890, 4
      %v2974 = vpop.permute.xlu0 %2973
      %2975 = vrot.lane.b32.xlu0 %v2891, 4
      %v2976 = vpop.permute.xlu0 %2975
      %2977 = vrot.lane.b32.xlu0 %v2904, 4
      %v2978 = vpop.permute.xlu0 %2977
      %2979 = vrot.lane.b32.xlu0 %v2905, 4
      %v2980 = vpop.permute.xlu0 %2979
      %2981 = vrot.lane.b32.xlu0 %v2918, 4
      %v2982 = vpop.permute.xlu0 %2981
      %2983 = vrot.lane.b32.xlu0 %v2919, 4
      %v2984 = vpop.permute.xlu0 %2983
      %v3033 = vunpack.c.l.b16 %v2457
      %v3034 = vunpack.c.l.b16 %v2458
      %v3035 = vunpack.c.l.b16 %v2459
      %v3036 = vunpack.c.l.b16 %v2460
      %v3037 = vunpack.c.l.b16 %v2461
      %v3038 = vunpack.c.l.b16 %v2462
      %v3039 = vunpack.c.l.b16 %v2463
      %v3040 = vunpack.c.l.b16 %v2464
      %v3041 = vunpack.c.l.b16 %v2465
      %v3042 = vunpack.c.l.b16 %v2466
      %v3043 = vunpack.c.l.b16 %v2467
      %v3044 = vunpack.c.l.b16 %v2468
      %v3045 = vunpack.c.l.b16 %v2469
      %v3046 = vunpack.c.l.b16 %v2470
      %v3047 = vunpack.c.l.b16 %v2471
      %v3048 = vunpack.c.l.b16 %v2472
      %v3049 = vunpack.c.l.b16 %v2473
      %v3050 = vunpack.c.l.b16 %v2474
      %v3051 = vunpack.c.l.b16 %v2475
      %v3052 = vunpack.c.l.b16 %v2476
      %v3053 = vunpack.c.l.b16 %v2477
      %v3054 = vunpack.c.l.b16 %v2478
      %v3055 = vunpack.c.l.b16 %v2479
      %v3056 = vunpack.c.l.b16 %v2480
      %v3057 = vunpack.c.l.b16 %v2481
      %v3058 = vunpack.c.l.b16 %v2482
      %v3059 = vunpack.c.l.b16 %v2483
      %v3060 = vunpack.c.l.b16 %v2484
      %v3061 = vunpack.c.l.b16 %v2485
      %v3062 = vunpack.c.l.b16 %v2486
      %v3063 = vunpack.c.l.b16 %v2487
      %v3064 = vunpack.c.l.b16 %v2488
      %v3065 = vunpack.c.l.b16 %v2489
      %v3066 = vunpack.c.l.b16 %v2490
      %v3067 = vunpack.c.l.b16 %v2491
      %v3068 = vunpack.c.l.b16 %v2492
      %v3069 = vunpack.c.l.b16 %v2493
      %v3070 = vunpack.c.l.b16 %v2494
      %v3071 = vunpack.c.l.b16 %v2495
      %v3072 = vunpack.c.l.b16 %v2496
      %v3073 = vunpack.c.l.b16 %v2497
      %v3074 = vunpack.c.l.b16 %v2498
      %v3075 = vunpack.c.l.b16 %v2499
      %v3076 = vunpack.c.l.b16 %v2500
      %v3077 = vunpack.c.l.b16 %v2501
      %v3078 = vunpack.c.l.b16 %v2502
      %v3079 = vunpack.c.l.b16 %v2503
      %v3080 = vunpack.c.l.b16 %v2504
      %v3081 = vpack.c.b16 %v3034, %v3033
      %v3082 = vpack.c.b16 %v3035, %v3035
      %v3083 = vpack.c.b16 %v3037, %v3036
      %v3084 = vpack.c.b16 %v3038, %v3038
      %v3085 = vpack.c.b16 %v3040, %v3039
      %v3086 = vpack.c.b16 %v3041, %v3041
      %v3087 = vpack.c.b16 %v3043, %v3042
      %v3088 = vpack.c.b16 %v3044, %v3044
      %v3089 = vpack.c.b16 %v3046, %v3045
      %v3090 = vpack.c.b16 %v3047, %v3047
      %v3091 = vpack.c.b16 %v3049, %v3048
      %v3092 = vpack.c.b16 %v3050, %v3050
      %v3093 = vpack.c.b16 %v3052, %v3051
      %v3094 = vpack.c.b16 %v3053, %v3053
      %v3095 = vpack.c.b16 %v3055, %v3054
      %v3096 = vpack.c.b16 %v3056, %v3056
      %v3097 = vpack.c.b16 %v3058, %v3057
      %v3098 = vpack.c.b16 %v3059, %v3059
      %v3099 = vpack.c.b16 %v3061, %v3060
      %v3100 = vpack.c.b16 %v3062, %v3062
      %v3101 = vpack.c.b16 %v3064, %v3063
      %v3102 = vpack.c.b16 %v3065, %v3065
      %v3103 = vpack.c.b16 %v3067, %v3066
      %v3104 = vpack.c.b16 %v3068, %v3068
      %v3105 = vpack.c.b16 %v3070, %v3069
      %v3106 = vpack.c.b16 %v3071, %v3071
      %v3107 = vpack.c.b16 %v3073, %v3072
      %v3108 = vpack.c.b16 %v3074, %v3074
      %v3109 = vpack.c.b16 %v3076, %v3075
      %v3110 = vpack.c.b16 %v3077, %v3077
      %v3111 = vpack.c.b16 %v3079, %v3078
      %v3112 = vpack.c.b16 %v3080, %v3080
      %3113 = vrot.lane.b32.xlu0 %v3081, 8
      %v3114 = vpop.permute.xlu0 %3113
      %3115 = vrot.lane.b32.xlu0 %v3082, 8
      %v3116 = vpop.permute.xlu0 %3115
      %3117 = vrot.lane.b32.xlu0 %v3083, 8
      %v3118 = vpop.permute.xlu0 %3117
      %3119 = vrot.lane.b32.xlu0 %v3084, 8
      %v3120 = vpop.permute.xlu0 %3119
      %3121 = vrot.lane.b32.xlu0 %v3085, 8
      %v3122 = vpop.permute.xlu0 %3121
      %3123 = vrot.lane.b32.xlu0 %v3086, 8
      %v3124 = vpop.permute.xlu0 %3123
      %3125 = vrot.lane.b32.xlu0 %v3087, 8
      %v3126 = vpop.permute.xlu0 %3125
      %3127 = vrot.lane.b32.xlu0 %v3088, 8
      %v3128 = vpop.permute.xlu0 %3127
      %3129 = vrot.lane.b32.xlu0 %v3089, 8
      %v3130 = vpop.permute.xlu0 %3129
      %3131 = vrot.lane.b32.xlu0 %v3090, 8
      %v3132 = vpop.permute.xlu0 %3131
      %3133 = vrot.lane.b32.xlu0 %v3091, 8
      %v3134 = vpop.permute.xlu0 %3133
      %3135 = vrot.lane.b32.xlu0 %v3092, 8
      %v3136 = vpop.permute.xlu0 %3135
      %3137 = vrot.lane.b32.xlu0 %v3093, 8
      %v3138 = vpop.permute.xlu0 %3137
      %3139 = vrot.lane.b32.xlu0 %v3094, 8
      %v3140 = vpop.permute.xlu0 %3139
      %3141 = vrot.lane.b32.xlu0 %v3095, 8
      %v3142 = vpop.permute.xlu0 %3141
      %3143 = vrot.lane.b32.xlu0 %v3096, 8
      %v3144 = vpop.permute.xlu0 %3143
      %3145 = vrot.lane.b32.xlu0 %v3097, 8
      %v3146 = vpop.permute.xlu0 %3145
      %3147 = vrot.lane.b32.xlu0 %v3098, 8
      %v3148 = vpop.permute.xlu0 %3147
      %3149 = vrot.lane.b32.xlu0 %v3099, 8
      %v3150 = vpop.permute.xlu0 %3149
      %3151 = vrot.lane.b32.xlu0 %v3100, 8
      %v3152 = vpop.permute.xlu0 %3151
      %3153 = vrot.lane.b32.xlu0 %v3101, 8
      %v3154 = vpop.permute.xlu0 %3153
      %3155 = vrot.lane.b32.xlu0 %v3102, 8
      %v3156 = vpop.permute.xlu0 %3155
      %3157 = vrot.lane.b32.xlu0 %v3103, 8
      %v3158 = vpop.permute.xlu0 %3157
      %3159 = vrot.lane.b32.xlu0 %v3104, 8
      %v3160 = vpop.permute.xlu0 %3159
      %3161 = vrot.lane.b32.xlu0 %v3105, 8
      %v3162 = vpop.permute.xlu0 %3161
      %3163 = vrot.lane.b32.xlu0 %v3106, 8
      %v3164 = vpop.permute.xlu0 %3163
      %3165 = vrot.lane.b32.xlu0 %v3107, 8
      %v3166 = vpop.permute.xlu0 %3165
      %3167 = vrot.lane.b32.xlu0 %v3108, 8
      %v3168 = vpop.permute.xlu0 %3167
      %3169 = vrot.lane.b32.xlu0 %v3109, 8
      %v3170 = vpop.permute.xlu0 %3169
      %3171 = vrot.lane.b32.xlu0 %v3110, 8
      %v3172 = vpop.permute.xlu0 %3171
      %3173 = vrot.lane.b32.xlu0 %v3111, 8
      %v3174 = vpop.permute.xlu0 %3173
      %3175 = vrot.lane.b32.xlu0 %v3112, 8
      %v3176 = vpop.permute.xlu0 %3175
      %v3193 = vunpack.c.l.b16 %v2505
      %v3194 = vunpack.c.l.b16 %v2506
      %v3195 = vunpack.c.l.b16 %v2507
      %v3196 = vunpack.c.l.b16 %v2508
      %v3197 = vunpack.c.l.b16 %v2509
      %v3198 = vunpack.c.l.b16 %v2510
      %v3199 = vunpack.c.l.b16 %v2511
      %v3200 = vunpack.c.l.b16 %v2512
      %v3201 = vunpack.c.l.b16 %v2513
      %v3202 = vunpack.c.l.b16 %v2514
      %v3203 = vunpack.c.l.b16 %v2515
      %v3204 = vunpack.c.l.b16 %v2516
      %v3205 = vunpack.c.l.b16 %v2517
      %v3206 = vunpack.c.l.b16 %v2518
      %v3207 = vunpack.c.l.b16 %v2519
      %v3208 = vunpack.c.l.b16 %v2520
      %v3209 = vpack.c.b16 %v3034, %v3193
      %v3210 = vpack.c.b16 %v3037, %v3194
      %v3211 = vpack.c.b16 %v3040, %v3195
      %v3212 = vpack.c.b16 %v3043, %v3196
      %v3213 = vpack.c.b16 %v3046, %v3197
      %v3214 = vpack.c.b16 %v3049, %v3198
      %v3215 = vpack.c.b16 %v3052, %v3199
      %v3216 = vpack.c.b16 %v3055, %v3200
      %v3217 = vpack.c.b16 %v3058, %v3201
      %v3218 = vpack.c.b16 %v3061, %v3202
      %v3219 = vpack.c.b16 %v3064, %v3203
      %v3220 = vpack.c.b16 %v3067, %v3204
      %v3221 = vpack.c.b16 %v3070, %v3205
      %v3222 = vpack.c.b16 %v3073, %v3206
      %v3223 = vpack.c.b16 %v3076, %v3207
      %v3224 = vpack.c.b16 %v3079, %v3208
      %v3226 = vshrl.u32 %v3209, 16
      %v3228 = vshll.u32 %v3209, 16
      %v3230 = vrot.slane %v3228, 1
      %v3231 = vor.u32 %v3226, %v3230
      %v3233 = vshll.u32 %v3082, 16
      %v3235 = vrot.slane %v3233, 1
      %v3236 = vsel %vm1317, %v3231, %v3235
      %v3237 = vshrl.u32 %v3082, 16
      %v3240 = vshrl.u32 %v3210, 16
      %v3242 = vshll.u32 %v3210, 16
      %v3244 = vrot.slane %v3242, 1
      %v3245 = vor.u32 %v3240, %v3244
      %v3247 = vshll.u32 %v3084, 16
      %v3249 = vrot.slane %v3247, 1
      %v3250 = vsel %vm1317, %v3245, %v3249
      %v3251 = vshrl.u32 %v3084, 16
      %v3254 = vshrl.u32 %v3211, 16
      %v3256 = vshll.u32 %v3211, 16
      %v3258 = vrot.slane %v3256, 1
      %v3259 = vor.u32 %v3254, %v3258
      %v3261 = vshll.u32 %v3086, 16
      %v3263 = vrot.slane %v3261, 1
      %v3264 = vsel %vm1317, %v3259, %v3263
      %v3265 = vshrl.u32 %v3086, 16
      %v3268 = vshrl.u32 %v3212, 16
      %v3270 = vshll.u32 %v3212, 16
      %v3272 = vrot.slane %v3270, 1
      %v3273 = vor.u32 %v3268, %v3272
      %v3275 = vshll.u32 %v3088, 16
      %v3277 = vrot.slane %v3275, 1
      %v3278 = vsel %vm1317, %v3273, %v3277
      %v3279 = vshrl.u32 %v3088, 16
      %v3282 = vshrl.u32 %v3213, 16
      %v3284 = vshll.u32 %v3213, 16
      %v3286 = vrot.slane %v3284, 1
      %v3287 = vor.u32 %v3282, %v3286
      %v3289 = vshll.u32 %v3090, 16
      %v3291 = vrot.slane %v3289, 1
      %v3292 = vsel %vm1317, %v3287, %v3291
      %v3293 = vshrl.u32 %v3090, 16
      %v3296 = vshrl.u32 %v3214, 16
      %v3298 = vshll.u32 %v3214, 16
      %v3300 = vrot.slane %v3298, 1
      %v3301 = vor.u32 %v3296, %v3300
      %v3303 = vshll.u32 %v3092, 16
      %v3305 = vrot.slane %v3303, 1
      %v3306 = vsel %vm1317, %v3301, %v3305
      %v3307 = vshrl.u32 %v3092, 16
      %v3310 = vshrl.u32 %v3215, 16
      %v3312 = vshll.u32 %v3215, 16
      %v3314 = vrot.slane %v3312, 1
      %v3315 = vor.u32 %v3310, %v3314
      %v3317 = vshll.u32 %v3094, 16
      %v3319 = vrot.slane %v3317, 1
      %v3320 = vsel %vm1317, %v3315, %v3319
      %v3321 = vshrl.u32 %v3094, 16
      %v3324 = vshrl.u32 %v3216, 16
      %v3326 = vshll.u32 %v3216, 16
      %v3328 = vrot.slane %v3326, 1
      %v3329 = vor.u32 %v3324, %v3328
      %v3331 = vshll.u32 %v3096, 16
      %v3333 = vrot.slane %v3331, 1
      %v3334 = vsel %vm1317, %v3329, %v3333
      %v3335 = vshrl.u32 %v3096, 16
      %v3338 = vshrl.u32 %v3217, 16
      %v3340 = vshll.u32 %v3217, 16
      %v3342 = vrot.slane %v3340, 1
      %v3343 = vor.u32 %v3338, %v3342
      %v3345 = vshll.u32 %v3098, 16
      %v3347 = vrot.slane %v3345, 1
      %v3348 = vsel %vm1317, %v3343, %v3347
      %v3349 = vshrl.u32 %v3098, 16
      %v3352 = vshrl.u32 %v3218, 16
      %v3354 = vshll.u32 %v3218, 16
      %v3356 = vrot.slane %v3354, 1
      %v3357 = vor.u32 %v3352, %v3356
      %v3359 = vshll.u32 %v3100, 16
      %v3361 = vrot.slane %v3359, 1
      %v3362 = vsel %vm1317, %v3357, %v3361
      %v3363 = vshrl.u32 %v3100, 16
      %v3366 = vshrl.u32 %v3219, 16
      %v3368 = vshll.u32 %v3219, 16
      %v3370 = vrot.slane %v3368, 1
      %v3371 = vor.u32 %v3366, %v3370
      %v3373 = vshll.u32 %v3102, 16
      %v3375 = vrot.slane %v3373, 1
      %v3376 = vsel %vm1317, %v3371, %v3375
      %v3377 = vshrl.u32 %v3102, 16
      %v3380 = vshrl.u32 %v3220, 16
      %v3382 = vshll.u32 %v3220, 16
      %v3384 = vrot.slane %v3382, 1
      %v3385 = vor.u32 %v3380, %v3384
      %v3387 = vshll.u32 %v3104, 16
      %v3389 = vrot.slane %v3387, 1
      %v3390 = vsel %vm1317, %v3385, %v3389
      %v3391 = vshrl.u32 %v3104, 16
      %v3394 = vshrl.u32 %v3221, 16
      %v3396 = vshll.u32 %v3221, 16
      %v3398 = vrot.slane %v3396, 1
      %v3399 = vor.u32 %v3394, %v3398
      %v3401 = vshll.u32 %v3106, 16
      %v3403 = vrot.slane %v3401, 1
      %v3404 = vsel %vm1317, %v3399, %v3403
      %v3405 = vshrl.u32 %v3106, 16
      %v3408 = vshrl.u32 %v3222, 16
      %v3410 = vshll.u32 %v3222, 16
      %v3412 = vrot.slane %v3410, 1
      %v3413 = vor.u32 %v3408, %v3412
      %v3415 = vshll.u32 %v3108, 16
      %v3417 = vrot.slane %v3415, 1
      %v3418 = vsel %vm1317, %v3413, %v3417
      %v3419 = vshrl.u32 %v3108, 16
      %v3422 = vshrl.u32 %v3223, 16
      %v3424 = vshll.u32 %v3223, 16
      %v3426 = vrot.slane %v3424, 1
      %v3427 = vor.u32 %v3422, %v3426
      %v3429 = vshll.u32 %v3110, 16
      %v3431 = vrot.slane %v3429, 1
      %v3432 = vsel %vm1317, %v3427, %v3431
      %v3433 = vshrl.u32 %v3110, 16
      %v3436 = vshrl.u32 %v3224, 16
      %v3438 = vshll.u32 %v3224, 16
      %v3440 = vrot.slane %v3438, 1
      %v3441 = vor.u32 %v3436, %v3440
      %v3443 = vshll.u32 %v3112, 16
      %v3445 = vrot.slane %v3443, 1
      %v3446 = vsel %vm1317, %v3441, %v3445
      %v3447 = vshrl.u32 %v3112, 16
      %3449 = vrot.lane.b32.xlu0 %v3236, 12
      %v3450 = vpop.permute.xlu0 %3449
      %3451 = vrot.lane.b32.xlu0 %v3237, 12
      %v3452 = vpop.permute.xlu0 %3451
      %3453 = vrot.lane.b32.xlu0 %v3250, 12
      %v3454 = vpop.permute.xlu0 %3453
      %3455 = vrot.lane.b32.xlu0 %v3251, 12
      %v3456 = vpop.permute.xlu0 %3455
      %3457 = vrot.lane.b32.xlu0 %v3264, 12
      %v3458 = vpop.permute.xlu0 %3457
      %3459 = vrot.lane.b32.xlu0 %v3265, 12
      %v3460 = vpop.permute.xlu0 %3459
      %3461 = vrot.lane.b32.xlu0 %v3278, 12
      %v3462 = vpop.permute.xlu0 %3461
      %3463 = vrot.lane.b32.xlu0 %v3279, 12
      %v3464 = vpop.permute.xlu0 %3463
      %3465 = vrot.lane.b32.xlu0 %v3292, 12
      %v3466 = vpop.permute.xlu0 %3465
      %3467 = vrot.lane.b32.xlu0 %v3293, 12
      %v3468 = vpop.permute.xlu0 %3467
      %3469 = vrot.lane.b32.xlu0 %v3306, 12
      %v3470 = vpop.permute.xlu0 %3469
      %3471 = vrot.lane.b32.xlu0 %v3307, 12
      %v3472 = vpop.permute.xlu0 %3471
      %3473 = vrot.lane.b32.xlu0 %v3320, 12
      %v3474 = vpop.permute.xlu0 %3473
      %3475 = vrot.lane.b32.xlu0 %v3321, 12
      %v3476 = vpop.permute.xlu0 %3475
      %3477 = vrot.lane.b32.xlu0 %v3334, 12
      %v3478 = vpop.permute.xlu0 %3477
      %3479 = vrot.lane.b32.xlu0 %v3335, 12
      %v3480 = vpop.permute.xlu0 %3479
      %3481 = vrot.lane.b32.xlu0 %v3348, 12
      %v3482 = vpop.permute.xlu0 %3481
      %3483 = vrot.lane.b32.xlu0 %v3349, 12
      %v3484 = vpop.permute.xlu0 %3483
      %3485 = vrot.lane.b32.xlu0 %v3362, 12
      %v3486 = vpop.permute.xlu0 %3485
      %3487 = vrot.lane.b32.xlu0 %v3363, 12
      %v3488 = vpop.permute.xlu0 %3487
      %3489 = vrot.lane.b32.xlu0 %v3376, 12
      %v3490 = vpop.permute.xlu0 %3489
      %3491 = vrot.lane.b32.xlu0 %v3377, 12
      %v3492 = vpop.permute.xlu0 %3491
      %3493 = vrot.lane.b32.xlu0 %v3390, 12
      %v3494 = vpop.permute.xlu0 %3493
      %3495 = vrot.lane.b32.xlu0 %v3391, 12
      %v3496 = vpop.permute.xlu0 %3495
      %3497 = vrot.lane.b32.xlu0 %v3404, 12
      %v3498 = vpop.permute.xlu0 %3497
      %3499 = vrot.lane.b32.xlu0 %v3405, 12
      %v3500 = vpop.permute.xlu0 %3499
      %3501 = vrot.lane.b32.xlu0 %v3418, 12
      %v3502 = vpop.permute.xlu0 %3501
      %3503 = vrot.lane.b32.xlu0 %v3419, 12
      %v3504 = vpop.permute.xlu0 %3503
      %3505 = vrot.lane.b32.xlu0 %v3432, 12
      %v3506 = vpop.permute.xlu0 %3505
      %3507 = vrot.lane.b32.xlu0 %v3433, 12
      %v3508 = vpop.permute.xlu0 %3507
      %3509 = vrot.lane.b32.xlu0 %v3446, 12
      %v3510 = vpop.permute.xlu0 %3509
      %3511 = vrot.lane.b32.xlu0 %v3447, 12
      %v3512 = vpop.permute.xlu0 %3511
      %v3515 = vsel %vm1926, %v2617, %v2922
      %v3517 = vsel %vm1926, %v2618, %v2924
      %v3520 = vsel %vm1926, %v2619, %v2926
      %v3522 = vsel %vm1926, %v2620, %v2928
      %v3525 = vsel %vm1926, %v2621, %v2930
      %v3527 = vsel %vm1926, %v2622, %v2932
      %v3530 = vsel %vm1926, %v2623, %v2934
      %v3532 = vsel %vm1926, %v2624, %v2936
      %v3535 = vsel %vm1926, %v2625, %v2938
      %v3537 = vsel %vm1926, %v2626, %v2940
      %v3540 = vsel %vm1926, %v2627, %v2942
      %v3542 = vsel %vm1926, %v2628, %v2944
      %v3545 = vsel %vm1926, %v2629, %v2946
      %v3547 = vsel %vm1926, %v2630, %v2948
      %v3550 = vsel %vm1926, %v2631, %v2950
      %v3552 = vsel %vm1926, %v2632, %v2952
      %v3555 = vsel %vm1926, %v2633, %v2954
      %v3557 = vsel %vm1926, %v2634, %v2956
      %v3560 = vsel %vm1926, %v2635, %v2958
      %v3562 = vsel %vm1926, %v2636, %v2960
      %v3565 = vsel %vm1926, %v2637, %v2962
      %v3567 = vsel %vm1926, %v2638, %v2964
      %v3570 = vsel %vm1926, %v2639, %v2966
      %v3572 = vsel %vm1926, %v2640, %v2968
      %v3575 = vsel %vm1926, %v2641, %v2970
      %v3577 = vsel %vm1926, %v2642, %v2972
      %v3580 = vsel %vm1926, %v2643, %v2974
      %v3582 = vsel %vm1926, %v2644, %v2976
      %v3585 = vsel %vm1926, %v2645, %v2978
      %v3587 = vsel %vm1926, %v2646, %v2980
      %v3590 = vsel %vm1926, %v2647, %v2982
      %v3592 = vsel %vm1926, %v2648, %v2984
      %v3594 = vsel %vm1959, %v3515, %v3114
      %v3596 = vsel %vm1959, %v3517, %v3116
      %v3598 = vsel %vm1959, %v3520, %v3118
      %v3600 = vsel %vm1959, %v3522, %v3120
      %v3602 = vsel %vm1959, %v3525, %v3122
      %v3604 = vsel %vm1959, %v3527, %v3124
      %v3606 = vsel %vm1959, %v3530, %v3126
      %v3608 = vsel %vm1959, %v3532, %v3128
      %v3610 = vsel %vm1959, %v3535, %v3130
      %v3612 = vsel %vm1959, %v3537, %v3132
      %v3614 = vsel %vm1959, %v3540, %v3134
      %v3616 = vsel %vm1959, %v3542, %v3136
      %v3618 = vsel %vm1959, %v3545, %v3138
      %v3620 = vsel %vm1959, %v3547, %v3140
      %v3622 = vsel %vm1959, %v3550, %v3142
      %v3624 = vsel %vm1959, %v3552, %v3144
      %v3626 = vsel %vm1959, %v3555, %v3146
      %v3628 = vsel %vm1959, %v3557, %v3148
      %v3630 = vsel %vm1959, %v3560, %v3150
      %v3632 = vsel %vm1959, %v3562, %v3152
      %v3634 = vsel %vm1959, %v3565, %v3154
      %v3636 = vsel %vm1959, %v3567, %v3156
      %v3638 = vsel %vm1959, %v3570, %v3158
      %v3640 = vsel %vm1959, %v3572, %v3160
      %v3642 = vsel %vm1959, %v3575, %v3162
      %v3644 = vsel %vm1959, %v3577, %v3164
      %v3646 = vsel %vm1959, %v3580, %v3166
      %v3648 = vsel %vm1959, %v3582, %v3168
      %v3650 = vsel %vm1959, %v3585, %v3170
      %v3652 = vsel %vm1959, %v3587, %v3172
      %v3654 = vsel %vm1959, %v3590, %v3174
      %v3656 = vsel %vm1959, %v3592, %v3176
      %v3658 = vsel %vm1992, %v3594, %v3450
      %v3660 = vsel %vm1992, %v3596, %v3452
      %v3662 = vsel %vm1992, %v3598, %v3454
      %v3664 = vsel %vm1992, %v3600, %v3456
      %v3666 = vsel %vm1992, %v3602, %v3458
      %v3668 = vsel %vm1992, %v3604, %v3460
      %v3670 = vsel %vm1992, %v3606, %v3462
      %v3672 = vsel %vm1992, %v3608, %v3464
      %v3674 = vsel %vm1992, %v3610, %v3466
      %v3676 = vsel %vm1992, %v3612, %v3468
      %v3678 = vsel %vm1992, %v3614, %v3470
      %v3680 = vsel %vm1992, %v3616, %v3472
      %v3682 = vsel %vm1992, %v3618, %v3474
      %v3684 = vsel %vm1992, %v3620, %v3476
      %v3686 = vsel %vm1992, %v3622, %v3478
      %v3688 = vsel %vm1992, %v3624, %v3480
      %v3690 = vsel %vm1992, %v3626, %v3482
      %v3692 = vsel %vm1992, %v3628, %v3484
      %v3694 = vsel %vm1992, %v3630, %v3486
      %v3696 = vsel %vm1992, %v3632, %v3488
      %v3698 = vsel %vm1992, %v3634, %v3490
      %v3700 = vsel %vm1992, %v3636, %v3492
      %v3702 = vsel %vm1992, %v3638, %v3494
      %v3704 = vsel %vm1992, %v3640, %v3496
      %v3706 = vsel %vm1992, %v3642, %v3498
      %v3708 = vsel %vm1992, %v3644, %v3500
      %v3710 = vsel %vm1992, %v3646, %v3502
      %v3712 = vsel %vm1992, %v3648, %v3504
      %v3714 = vsel %vm1992, %v3650, %v3506
      %v3716 = vsel %vm1992, %v3652, %v3508
      %v3718 = vsel %vm1992, %v3654, %v3510
      %v3720 = vsel %vm1992, %v3656, %v3512
      %v3721 = vshrl.u32 %v3658, 16
      %v3723 = vshll.u32 %v3658, 16
      %v3725 = vrot.slane %v3723, 1
      %v3726 = vor.u32 %v3721, %v3725
      %v3727 = vshll.u32 %v3660, 16
      %v3729 = vrot.slane %v3727, 1
      %v3730 = vsel %vm1317, %v3726, %v3729
      %v3731 = vshrl.u32 %v3662, 16
      %v3733 = vshll.u32 %v3662, 16
      %v3735 = vrot.slane %v3733, 1
      %v3736 = vor.u32 %v3731, %v3735
      %v3737 = vshll.u32 %v3664, 16
      %v3739 = vrot.slane %v3737, 1
      %v3740 = vsel %vm1317, %v3736, %v3739
      %v3741 = vshrl.u32 %v3666, 16
      %v3743 = vshll.u32 %v3666, 16
      %v3745 = vrot.slane %v3743, 1
      %v3746 = vor.u32 %v3741, %v3745
      %v3747 = vshll.u32 %v3668, 16
      %v3749 = vrot.slane %v3747, 1
      %v3750 = vsel %vm1317, %v3746, %v3749
      %v3751 = vshrl.u32 %v3670, 16
      %v3753 = vshll.u32 %v3670, 16
      %v3755 = vrot.slane %v3753, 1
      %v3756 = vor.u32 %v3751, %v3755
      %v3757 = vshll.u32 %v3672, 16
      %v3759 = vrot.slane %v3757, 1
      %v3760 = vsel %vm1317, %v3756, %v3759
      %v3761 = vshrl.u32 %v3674, 16
      %v3763 = vshll.u32 %v3674, 16
      %v3765 = vrot.slane %v3763, 1
      %v3766 = vor.u32 %v3761, %v3765
      %v3767 = vshll.u32 %v3676, 16
      %v3769 = vrot.slane %v3767, 1
      %v3770 = vsel %vm1317, %v3766, %v3769
      %v3771 = vshrl.u32 %v3678, 16
      %v3773 = vshll.u32 %v3678, 16
      %v3775 = vrot.slane %v3773, 1
      %v3776 = vor.u32 %v3771, %v3775
      %v3777 = vshll.u32 %v3680, 16
      %v3779 = vrot.slane %v3777, 1
      %v3780 = vsel %vm1317, %v3776, %v3779
      %v3781 = vshrl.u32 %v3682, 16
      %v3783 = vshll.u32 %v3682, 16
      %v3785 = vrot.slane %v3783, 1
      %v3786 = vor.u32 %v3781, %v3785
      %v3787 = vshll.u32 %v3684, 16
      %v3789 = vrot.slane %v3787, 1
      %v3790 = vsel %vm1317, %v3786, %v3789
      %v3791 = vshrl.u32 %v3686, 16
      %v3793 = vshll.u32 %v3686, 16
      %v3795 = vrot.slane %v3793, 1
      %v3796 = vor.u32 %v3791, %v3795
      %v3797 = vshll.u32 %v3688, 16
      %v3799 = vrot.slane %v3797, 1
      %v3800 = vsel %vm1317, %v3796, %v3799
      %v3801 = vshrl.u32 %v3690, 16
      %v3803 = vshll.u32 %v3690, 16
      %v3805 = vrot.slane %v3803, 1
      %v3806 = vor.u32 %v3801, %v3805
      %v3807 = vshll.u32 %v3692, 16
      %v3809 = vrot.slane %v3807, 1
      %v3810 = vsel %vm1317, %v3806, %v3809
      %v3811 = vshrl.u32 %v3694, 16
      %v3813 = vshll.u32 %v3694, 16
      %v3815 = vrot.slane %v3813, 1
      %v3816 = vor.u32 %v3811, %v3815
      %v3817 = vshll.u32 %v3696, 16
      %v3819 = vrot.slane %v3817, 1
      %v3820 = vsel %vm1317, %v3816, %v3819
      %v3821 = vshrl.u32 %v3698, 16
      %v3823 = vshll.u32 %v3698, 16
      %v3825 = vrot.slane %v3823, 1
      %v3826 = vor.u32 %v3821, %v3825
      %v3827 = vshll.u32 %v3700, 16
      %v3829 = vrot.slane %v3827, 1
      %v3830 = vsel %vm1317, %v3826, %v3829
      %v3831 = vshrl.u32 %v3702, 16
      %v3833 = vshll.u32 %v3702, 16
      %v3835 = vrot.slane %v3833, 1
      %v3836 = vor.u32 %v3831, %v3835
      %v3837 = vshll.u32 %v3704, 16
      %v3839 = vrot.slane %v3837, 1
      %v3840 = vsel %vm1317, %v3836, %v3839
      %v3841 = vshrl.u32 %v3706, 16
      %v3843 = vshll.u32 %v3706, 16
      %v3845 = vrot.slane %v3843, 1
      %v3846 = vor.u32 %v3841, %v3845
      %v3847 = vshll.u32 %v3708, 16
      %v3849 = vrot.slane %v3847, 1
      %v3850 = vsel %vm1317, %v3846, %v3849
      %v3851 = vshrl.u32 %v3710, 16
      %v3853 = vshll.u32 %v3710, 16
      %v3855 = vrot.slane %v3853, 1
      %v3856 = vor.u32 %v3851, %v3855
      %v3857 = vshll.u32 %v3712, 16
      %v3859 = vrot.slane %v3857, 1
      %v3860 = vsel %vm1317, %v3856, %v3859
      %v3861 = vshrl.u32 %v3714, 16
      %v3863 = vshll.u32 %v3714, 16
      %v3865 = vrot.slane %v3863, 1
      %v3866 = vor.u32 %v3861, %v3865
      %v3867 = vshll.u32 %v3716, 16
      %v3869 = vrot.slane %v3867, 1
      %v3870 = vsel %vm1317, %v3866, %v3869
      %v3871 = vshrl.u32 %v3718, 16
      %v3873 = vshll.u32 %v3718, 16
      %v3875 = vrot.slane %v3873, 1
      %v3876 = vor.u32 %v3871, %v3875
      %v3877 = vshll.u32 %v3720, 16
      %v3879 = vrot.slane %v3877, 1
      %v3880 = vsel %vm1317, %v3876, %v3879
      %s3881 = scalar_lea.vmem %s420, 8
      %v3882 = vld [vmem:[%s3881] sm:$0xf]
      %v3883 = vld [vmem:[%s3881 + $0x4] sm:$0xf]
      %v3886 = vunpack.c.l.b16 %v3882
      %v3887 = vunpack.c.l.b16 %v3883
      %v3888 = vpack.c.b16 %v3887, %v3886
      %v3891 = vsel %vm2039, %v3730, 0
      %v3894 = vsel %vm2039, %v3740, 0
      %v3897 = vsel %vm2039, %v3750, 0
      %v3900 = vsel %vm2039, %v3760, 0
      %v3903 = vsel %vm2039, %v3770, 0
      %v3906 = vsel %vm2039, %v3780, 0
      %v3909 = vsel %vm2039, %v3790, 0
      %v3912 = vsel %vm2039, %v3800, 0
      %v3915 = vsel %vm2039, %v3810, 0
      %v3918 = vsel %vm2039, %v3820, 0
      %v3921 = vsel %vm2039, %v3830, 0
      %v3924 = vsel %vm2039, %v3840, 0
      %v3927 = vsel %vm2039, %v3850, 0
      %v3930 = vsel %vm2039, %v3860, 0
      %v3933 = vsel %vm2039, %v3870, 0
      %v3936 = vsel %vm2039, %v3880, 0
      %3938 = vmatprep.subr.bf16.mxu0 0
      %3939 = vmatpush1.bf16.msra.mxu0 0
      %3940 = vmatprep.subr.bf16.mxu0 0
      %3941 = vmatpush1.bf16.msra.mxu0 0
      %3942 = vmatprep.subr.bf16.mxu0 0
      %3943 = vmatpush1.bf16.msra.mxu0 0
      %3944 = vmatprep.subr.bf16.mxu0 0
      %3945 = vmatpush1.bf16.msra.mxu0 0
      %3946 = vmatprep.subr.bf16.mxu0 0
      %3947 = vmatpush1.bf16.msra.mxu0 0
      %3948 = vmatprep.subr.bf16.mxu0 0
      %3949 = vmatpush1.bf16.msra.mxu0 0
      %3950 = vmatprep.subr.bf16.mxu0 0
      %3951 = vmatpush1.bf16.msra.mxu0 0
      %3952 = vmatprep.subr.bf16.mxu0 0
      %3953 = vmatpush1.bf16.msra.mxu0 %v3888
      %3954 = vmatprep.subr.bf16.mxu0 0
      %3955 = vmatpush2.bf16.msra.mxu0 0
      %3956 = vmatprep.subr.bf16.mxu0 0
      %3957 = vmatpush2.bf16.msra.mxu0 0
      %3958 = vmatprep.subr.bf16.mxu0 0
      %3959 = vmatpush2.bf16.msra.mxu0 0
      %3960 = vmatprep.subr.bf16.mxu0 0
      %3961 = vmatpush2.bf16.msra.mxu0 0
      %3962 = vmatprep.subr.bf16.mxu0 0
      %3963 = vmatpush2.bf16.msra.mxu0 0
      %3964 = vmatprep.subr.bf16.mxu0 0
      %3965 = vmatpush2.bf16.msra.mxu0 0
      %3966 = vmatprep.subr.bf16.mxu0 0
      %3967 = vmatpush2.bf16.msra.mxu0 0
      %3968 = vmatprep.subr.bf16.mxu0 0
      %3969 = vmatpush2.bf16.msra.mxu0 0
      %3970 = vmatprep.mubr.bf16.mxu0 0
      %3971 = vmatmul.mubr.bf16.gmra.mxu0 %v3891
      %v3972 = vpop.f32.mrf.mxu0
      %v3973 = vadd.f32 %v2031, %v3972
      %v3974 = vpop.f32.mrf.mxu0
      %v3975 = vpop.f32.mrf.mxu0
      %v3976 = vadd.f32 %v2031, %v3975
      %v3977 = vpop.f32.mrf.mxu0
      %3978 = vmatprep.mubr.bf16.mxu0 0
      %3979 = vmatmul.mubr.bf16.gmra.mxu0 %v3894
      %v3980 = vpop.f32.mrf.mxu0
      %v3981 = vadd.f32 %v2031, %v3980
      %v3982 = vpop.f32.mrf.mxu0
      %v3983 = vpop.f32.mrf.mxu0
      %v3984 = vadd.f32 %v2031, %v3983
      %v3985 = vpop.f32.mrf.mxu0
      %3986 = vmatprep.mubr.bf16.mxu0 0
      %3987 = vmatmul.mubr.bf16.gmra.mxu0 %v3897
      %v3988 = vpop.f32.mrf.mxu0
      %v3989 = vadd.f32 %v2031, %v3988
      %v3990 = vpop.f32.mrf.mxu0
      %v3991 = vpop.f32.mrf.mxu0
      %v3992 = vadd.f32 %v2031, %v3991
      %v3993 = vpop.f32.mrf.mxu0
      %3994 = vmatprep.mubr.bf16.mxu0 0
      %3995 = vmatmul.mubr.bf16.gmra.mxu0 %v3900
      %v3996 = vpop.f32.mrf.mxu0
      %v3997 = vadd.f32 %v2031, %v3996
      %v3998 = vpop.f32.mrf.mxu0
      %v3999 = vpop.f32.mrf.mxu0
      %v4000 = vadd.f32 %v2031, %v3999
      %v4001 = vpop.f32.mrf.mxu0
      %4002 = vmatprep.mubr.bf16.mxu0 0
      %4003 = vmatmul.mubr.bf16.gmra.mxu0 %v3903
      %v4004 = vpop.f32.mrf.mxu0
      %v4005 = vadd.f32 %v2031, %v4004
      %v4006 = vpop.f32.mrf.mxu0
      %v4007 = vpop.f32.mrf.mxu0
      %v4008 = vadd.f32 %v2031, %v4007
      %v4009 = vpop.f32.mrf.mxu0
      %4010 = vmatprep.mubr.bf16.mxu0 0
      %4011 = vmatmul.mubr.bf16.gmra.mxu0 %v3906
      %v4012 = vpop.f32.mrf.mxu0
      %v4013 = vadd.f32 %v2031, %v4012
      %v4014 = vpop.f32.mrf.mxu0
      %v4015 = vpop.f32.mrf.mxu0
      %v4016 = vadd.f32 %v2031, %v4015
      %v4017 = vpop.f32.mrf.mxu0
      %4018 = vmatprep.mubr.bf16.mxu0 0
      %4019 = vmatmul.mubr.bf16.gmra.mxu0 %v3909
      %v4020 = vpop.f32.mrf.mxu0
      %v4021 = vadd.f32 %v2031, %v4020
      %v4022 = vpop.f32.mrf.mxu0
      %v4023 = vpop.f32.mrf.mxu0
      %v4024 = vadd.f32 %v2031, %v4023
      %v4025 = vpop.f32.mrf.mxu0
      %4026 = vmatprep.mubr.bf16.mxu0 0
      %4027 = vmatmul.mubr.bf16.gmra.mxu0 %v3912
      %v4028 = vpop.f32.mrf.mxu0
      %v4029 = vadd.f32 %v2031, %v4028
      %v4030 = vpop.f32.mrf.mxu0
      %v4031 = vpop.f32.mrf.mxu0
      %v4032 = vadd.f32 %v2031, %v4031
      %v4033 = vpop.f32.mrf.mxu0
      %4034 = vmatprep.mubr.bf16.mxu0 0
      %4035 = vmatmul.mubr.bf16.gmra.mxu0 %v3915
      %v4036 = vpop.f32.mrf.mxu0
      %v4037 = vadd.f32 %v2031, %v4036
      %v4038 = vpop.f32.mrf.mxu0
      %v4039 = vpop.f32.mrf.mxu0
      %v4040 = vadd.f32 %v2031, %v4039
      %v4041 = vpop.f32.mrf.mxu0
      %4042 = vmatprep.mubr.bf16.mxu0 0
      %4043 = vmatmul.mubr.bf16.gmra.mxu0 %v3918
      %v4044 = vpop.f32.mrf.mxu0
      %v4045 = vadd.f32 %v2031, %v4044
      %v4046 = vpop.f32.mrf.mxu0
      %v4047 = vpop.f32.mrf.mxu0
      %v4048 = vadd.f32 %v2031, %v4047
      %v4049 = vpop.f32.mrf.mxu0
      %4050 = vmatprep.mubr.bf16.mxu0 0
      %4051 = vmatmul.mubr.bf16.gmra.mxu0 %v3921
      %v4052 = vpop.f32.mrf.mxu0
      %v4053 = vadd.f32 %v2031, %v4052
      %v4054 = vpop.f32.mrf.mxu0
      %v4055 = vpop.f32.mrf.mxu0
      %v4056 = vadd.f32 %v2031, %v4055
      %v4057 = vpop.f32.mrf.mxu0
      %4058 = vmatprep.mubr.bf16.mxu0 0
      %4059 = vmatmul.mubr.bf16.gmra.mxu0 %v3924
      %v4060 = vpop.f32.mrf.mxu0
      %v4061 = vadd.f32 %v2031, %v4060
      %v4062 = vpop.f32.mrf.mxu0
      %v4063 = vpop.f32.mrf.mxu0
      %v4064 = vadd.f32 %v2031, %v4063
      %v4065 = vpop.f32.mrf.mxu0
      %4066 = vmatprep.mubr.bf16.mxu0 0
      %4067 = vmatmul.mubr.bf16.gmra.mxu0 %v3927
      %v4068 = vpop.f32.mrf.mxu0
      %v4069 = vadd.f32 %v2031, %v4068
      %v4070 = vpop.f32.mrf.mxu0
      %v4071 = vpop.f32.mrf.mxu0
      %v4072 = vadd.f32 %v2031, %v4071
      %v4073 = vpop.f32.mrf.mxu0
      %4074 = vmatprep.mubr.bf16.mxu0 0
      %4075 = vmatmul.mubr.bf16.gmra.mxu0 %v3930
      %v4076 = vpop.f32.mrf.mxu0
      %v4077 = vadd.f32 %v2031, %v4076
      %v4078 = vpop.f32.mrf.mxu0
      %v4079 = vpop.f32.mrf.mxu0
      %v4080 = vadd.f32 %v2031, %v4079
      %v4081 = vpop.f32.mrf.mxu0
      %4082 = vmatprep.mubr.bf16.mxu0 0
      %4083 = vmatmul.mubr.bf16.gmra.mxu0 %v3933
      %v4084 = vpop.f32.mrf.mxu0
      %v4085 = vadd.f32 %v2031, %v4084
      %v4086 = vpop.f32.mrf.mxu0
      %v4087 = vpop.f32.mrf.mxu0
      %v4088 = vadd.f32 %v2031, %v4087
      %v4089 = vpop.f32.mrf.mxu0
      %4090 = vmatprep.mubr.bf16.mxu0 0
      %4091 = vmatmul.mubr.bf16.gmra.mxu0 %v3936
      %v4092 = vpop.f32.mrf.mxu0
      %v4093 = vadd.f32 %v2031, %v4092
      %v4094 = vpop.f32.mrf.mxu0
      %v4095 = vpop.f32.mrf.mxu0
      %v4096 = vadd.f32 %v2031, %v4095
      %v4097 = vpop.f32.mrf.mxu0
      %4098 = vdwg.mxu0
      %v4099 = vpack.c.bf16 %v3976, %v3973
      %v4100 = vpack.c.bf16 %v3984, %v3981
      %v4101 = vpack.c.bf16 %v3992, %v3989
      %v4102 = vpack.c.bf16 %v4000, %v3997
      %v4103 = vpack.c.bf16 %v4008, %v4005
      %v4104 = vpack.c.bf16 %v4016, %v4013
      %v4105 = vpack.c.bf16 %v4024, %v4021
      %v4106 = vpack.c.bf16 %v4032, %v4029
      %v4107 = vpack.c.bf16 %v4040, %v4037
      %v4108 = vpack.c.bf16 %v4048, %v4045
      %v4109 = vpack.c.bf16 %v4056, %v4053
      %v4110 = vpack.c.bf16 %v4064, %v4061
      %v4111 = vpack.c.bf16 %v4072, %v4069
      %v4112 = vpack.c.bf16 %v4080, %v4077
      %v4113 = vpack.c.bf16 %v4088, %v4085
      %v4114 = vpack.c.bf16 %v4096, %v4093
      %v4131 = vunpack.c.l.b16 %v4099
      %v4132 = vunpack.c.h.b16 %v4099
      %v4133 = vunpack.c.l.b16 %v4100
      %v4134 = vunpack.c.h.b16 %v4100
      %v4135 = vunpack.c.l.b16 %v4101
      %v4136 = vunpack.c.h.b16 %v4101
      %v4137 = vunpack.c.l.b16 %v4102
      %v4138 = vunpack.c.h.b16 %v4102
      %v4139 = vunpack.c.l.b16 %v4103
      %v4140 = vunpack.c.h.b16 %v4103
      %v4141 = vunpack.c.l.b16 %v4104
      %v4142 = vunpack.c.h.b16 %v4104
      %v4143 = vunpack.c.l.b16 %v4105
      %v4144 = vunpack.c.h.b16 %v4105
      %v4145 = vunpack.c.l.b16 %v4106
      %v4146 = vunpack.c.h.b16 %v4106
      %v4147 = vunpack.c.l.b16 %v4107
      %v4148 = vunpack.c.h.b16 %v4107
      %v4149 = vunpack.c.l.b16 %v4108
      %v4150 = vunpack.c.h.b16 %v4108
      %v4151 = vunpack.c.l.b16 %v4109
      %v4152 = vunpack.c.h.b16 %v4109
      %v4153 = vunpack.c.l.b16 %v4110
      %v4154 = vunpack.c.h.b16 %v4110
      %v4155 = vunpack.c.l.b16 %v4111
      %v4156 = vunpack.c.h.b16 %v4111
      %v4157 = vunpack.c.l.b16 %v4112
      %v4158 = vunpack.c.h.b16 %v4112
      %v4159 = vunpack.c.l.b16 %v4113
      %v4160 = vunpack.c.h.b16 %v4113
      %v4161 = vunpack.c.l.b16 %v4114
      %v4162 = vunpack.c.h.b16 %v4114
      %v4163 = vpack.c.b16 %v4131, %v4131
      %v4164 = vpack.c.b16 %v4132, %v4132
      %v4165 = vpack.c.b16 %v4133, %v4133
      %v4166 = vpack.c.b16 %v4134, %v4134
      %v4167 = vpack.c.b16 %v4135, %v4135
      %v4168 = vpack.c.b16 %v4136, %v4136
      %v4169 = vpack.c.b16 %v4137, %v4137
      %v4170 = vpack.c.b16 %v4138, %v4138
      %v4171 = vpack.c.b16 %v4139, %v4139
      %v4172 = vpack.c.b16 %v4140, %v4140
      %v4173 = vpack.c.b16 %v4141, %v4141
      %v4174 = vpack.c.b16 %v4142, %v4142
      %v4175 = vpack.c.b16 %v4143, %v4143
      %v4176 = vpack.c.b16 %v4144, %v4144
      %v4177 = vpack.c.b16 %v4145, %v4145
      %v4178 = vpack.c.b16 %v4146, %v4146
      %v4179 = vpack.c.b16 %v4147, %v4147
      %v4180 = vpack.c.b16 %v4148, %v4148
      %v4181 = vpack.c.b16 %v4149, %v4149
      %v4182 = vpack.c.b16 %v4150, %v4150
      %v4183 = vpack.c.b16 %v4151, %v4151
      %v4184 = vpack.c.b16 %v4152, %v4152
      %v4185 = vpack.c.b16 %v4153, %v4153
      %v4186 = vpack.c.b16 %v4154, %v4154
      %v4187 = vpack.c.b16 %v4155, %v4155
      %v4188 = vpack.c.b16 %v4156, %v4156
      %v4189 = vpack.c.b16 %v4157, %v4157
      %v4190 = vpack.c.b16 %v4158, %v4158
      %v4191 = vpack.c.b16 %v4159, %v4159
      %v4192 = vpack.c.b16 %v4160, %v4160
      %v4193 = vpack.c.b16 %v4161, %v4161
      %v4194 = vpack.c.b16 %v4162, %v4162
      %s4227 = scalar_lea.vmem %s435, 128
      %4228 = vst.msk [vmem:[%s4227] sm:$0xf] %vm911, %v4163
      %4229 = vst.msk [vmem:[%s4227 + $0x4] sm:$0xf] %vm911, %v4164
      %4230 = vst.msk [vmem:[%s4227 + $0x8] sm:$0xf] %vm911, %v4165
      %4231 = vst.msk [vmem:[%s4227 + $0xc] sm:$0xf] %vm911, %v4166
      %4232 = vst.msk [vmem:[%s4227 + $0x10] sm:$0xf] %vm911, %v4167
      %4233 = vst.msk [vmem:[%s4227 + $0x14] sm:$0xf] %vm911, %v4168
      %4234 = vst.msk [vmem:[%s4227 + $0x18] sm:$0xf] %vm911, %v4169
      %4235 = vst.msk [vmem:[%s4227 + $0x1c] sm:$0xf] %vm911, %v4170
      %4236 = vst.msk [vmem:[%s4227 + $0x20] sm:$0xf] %vm911, %v4171
      %4237 = vst.msk [vmem:[%s4227 + $0x24] sm:$0xf] %vm911, %v4172
      %4238 = vst.msk [vmem:[%s4227 + $0x28] sm:$0xf] %vm911, %v4173
      %4239 = vst.msk [vmem:[%s4227 + $0x2c] sm:$0xf] %vm911, %v4174
      %4240 = vst.msk [vmem:[%s4227 + $0x30] sm:$0xf] %vm911, %v4175
      %4241 = vst.msk [vmem:[%s4227 + $0x34] sm:$0xf] %vm911, %v4176
      %4242 = vst.msk [vmem:[%s4227 + $0x38] sm:$0xf] %vm911, %v4177
      %4243 = vst.msk [vmem:[%s4227 + $0x3c] sm:$0xf] %vm911, %v4178
      %4244 = vst.msk [vmem:[%s4227 + $0x40] sm:$0xf] %vm911, %v4179
      %4245 = vst.msk [vmem:[%s4227 + $0x44] sm:$0xf] %vm911, %v4180
      %4246 = vst.msk [vmem:[%s4227 + $0x48] sm:$0xf] %vm911, %v4181
      %4247 = vst.msk [vmem:[%s4227 + $0x4c] sm:$0xf] %vm911, %v4182
      %4248 = vst.msk [vmem:[%s4227 + $0x50] sm:$0xf] %vm911, %v4183
      %4249 = vst.msk [vmem:[%s4227 + $0x54] sm:$0xf] %vm911, %v4184
      %4250 = vst.msk [vmem:[%s4227 + $0x58] sm:$0xf] %vm911, %v4185
      %4251 = vst.msk [vmem:[%s4227 + $0x5c] sm:$0xf] %vm911, %v4186
      %4252 = vst.msk [vmem:[%s4227 + $0x60] sm:$0xf] %vm911, %v4187
      %4253 = vst.msk [vmem:[%s4227 + $0x64] sm:$0xf] %vm911, %v4188
      %4254 = vst.msk [vmem:[%s4227 + $0x68] sm:$0xf] %vm911, %v4189
      %4255 = vst.msk [vmem:[%s4227 + $0x6c] sm:$0xf] %vm911, %v4190
      %4256 = vst.msk [vmem:[%s4227 + $0x70] sm:$0xf] %vm911, %v4191
      %4257 = vst.msk [vmem:[%s4227 + $0x74] sm:$0xf] %vm911, %v4192
      %4258 = vst.msk [vmem:[%s4227 + $0x78] sm:$0xf] %vm911, %v4193
      %4259 = vst.msk [vmem:[%s4227 + $0x7c] sm:$0xf] %vm911, %v4194
      %v4260 = vld [vmem:[%s905] sm:$0xf]
      %v4261 = vld [vmem:[%s905 + $0x4] sm:$0xf]
      %v4262 = vld [vmem:[%s905 + $0xc] sm:$0xf]
      %v4263 = vld [vmem:[%s905 + $0x10] sm:$0xf]
      %v4264 = vld [vmem:[%s905 + $0x18] sm:$0xf]
      %v4265 = vld [vmem:[%s905 + $0x1c] sm:$0xf]
      %v4266 = vld [vmem:[%s905 + $0x24] sm:$0xf]
      %v4267 = vld [vmem:[%s905 + $0x28] sm:$0xf]
      %v4268 = vld [vmem:[%s905 + $0x30] sm:$0xf]
      %v4269 = vld [vmem:[%s905 + $0x34] sm:$0xf]
      %v4270 = vld [vmem:[%s905 + $0x3c] sm:$0xf]
      %v4271 = vld [vmem:[%s905 + $0x40] sm:$0xf]
      %v4272 = vld [vmem:[%s905 + $0x48] sm:$0xf]
      %v4273 = vld [vmem:[%s905 + $0x4c] sm:$0xf]
      %v4274 = vld [vmem:[%s905 + $0x54] sm:$0xf]
      %v4275 = vld [vmem:[%s905 + $0x58] sm:$0xf]
      %v4276 = vld [vmem:[%s905 + $0x60] sm:$0xf]
      %v4277 = vld [vmem:[%s905 + $0x64] sm:$0xf]
      %v4278 = vld [vmem:[%s905 + $0x6c] sm:$0xf]
      %v4279 = vld [vmem:[%s905 + $0x70] sm:$0xf]
      %v4280 = vld [vmem:[%s905 + $0x78] sm:$0xf]
      %v4281 = vld [vmem:[%s905 + $0x7c] sm:$0xf]
      %v4282 = vld [vmem:[%s905 + $0x84] sm:$0xf]
      %v4283 = vld [vmem:[%s905 + $0x88] sm:$0xf]
      %v4284 = vld [vmem:[%s905 + $0x90] sm:$0xf]
      %v4285 = vld [vmem:[%s905 + $0x94] sm:$0xf]
      %v4286 = vld [vmem:[%s905 + $0x9c] sm:$0xf]
      %v4287 = vld [vmem:[%s905 + $0xa0] sm:$0xf]
      %v4288 = vld [vmem:[%s905 + $0xa8] sm:$0xf]
      %v4289 = vld [vmem:[%s905 + $0xac] sm:$0xf]
      %v4290 = vld [vmem:[%s905 + $0xb4] sm:$0xf]
      %v4291 = vld [vmem:[%s905 + $0xb8] sm:$0xf]
      %v4292 = vld [vmem:[%s905 + $0x8] sm:$0x1]
      %v4293 = vld [vmem:[%s905 + $0x14] sm:$0x1]
      %v4294 = vld [vmem:[%s905 + $0x20] sm:$0x1]
      %v4295 = vld [vmem:[%s905 + $0x2c] sm:$0x1]
      %v4296 = vld [vmem:[%s905 + $0x38] sm:$0x1]
      %v4297 = vld [vmem:[%s905 + $0x44] sm:$0x1]
      %v4298 = vld [vmem:[%s905 + $0x50] sm:$0x1]
      %v4299 = vld [vmem:[%s905 + $0x5c] sm:$0x1]
      %v4300 = vld [vmem:[%s905 + $0x68] sm:$0x1]
      %v4301 = vld [vmem:[%s905 + $0x74] sm:$0x1]
      %v4302 = vld [vmem:[%s905 + $0x80] sm:$0x1]
      %v4303 = vld [vmem:[%s905 + $0x8c] sm:$0x1]
      %v4304 = vld [vmem:[%s905 + $0x98] sm:$0x1]
      %v4305 = vld [vmem:[%s905 + $0xa4] sm:$0x1]
      %v4306 = vld [vmem:[%s905 + $0xb0] sm:$0x1]
      %v4307 = vld [vmem:[%s905 + $0xbc] sm:$0x1]
      %s4308 = scalar_lea.vmem [#allocation2], 24
      %v4309 = vld [vmem:[%s4308] sm:$0xf]
      %v4310 = vld [vmem:[%s4308 + $0x4] sm:$0xf]
      %v4311 = vld [vmem:[%s4308 + $0xc] sm:$0xf]
      %v4312 = vld [vmem:[%s4308 + $0x10] sm:$0xf]
      %v4313 = vld [vmem:[%s4308 + $0x18] sm:$0xf]
      %v4314 = vld [vmem:[%s4308 + $0x1c] sm:$0xf]
      %v4315 = vld [vmem:[%s4308 + $0x24] sm:$0xf]
      %v4316 = vld [vmem:[%s4308 + $0x28] sm:$0xf]
      %v4317 = vld [vmem:[%s4308 + $0x30] sm:$0xf]
      %v4318 = vld [vmem:[%s4308 + $0x34] sm:$0xf]
      %v4319 = vld [vmem:[%s4308 + $0x3c] sm:$0xf]
      %v4320 = vld [vmem:[%s4308 + $0x40] sm:$0xf]
      %v4321 = vld [vmem:[%s4308 + $0x48] sm:$0xf]
      %v4322 = vld [vmem:[%s4308 + $0x4c] sm:$0xf]
      %v4323 = vld [vmem:[%s4308 + $0x54] sm:$0xf]
      %v4324 = vld [vmem:[%s4308 + $0x58] sm:$0xf]
      %v4325 = vld [vmem:[%s4308 + $0x60] sm:$0xf]
      %v4326 = vld [vmem:[%s4308 + $0x64] sm:$0xf]
      %v4327 = vld [vmem:[%s4308 + $0x6c] sm:$0xf]
      %v4328 = vld [vmem:[%s4308 + $0x70] sm:$0xf]
      %v4329 = vld [vmem:[%s4308 + $0x78] sm:$0xf]
      %v4330 = vld [vmem:[%s4308 + $0x7c] sm:$0xf]
      %v4331 = vld [vmem:[%s4308 + $0x84] sm:$0xf]
      %v4332 = vld [vmem:[%s4308 + $0x88] sm:$0xf]
      %v4333 = vld [vmem:[%s4308 + $0x90] sm:$0xf]
      %v4334 = vld [vmem:[%s4308 + $0x94] sm:$0xf]
      %v4335 = vld [vmem:[%s4308 + $0x9c] sm:$0xf]
      %v4336 = vld [vmem:[%s4308 + $0xa0] sm:$0xf]
      %v4337 = vld [vmem:[%s4308 + $0xa8] sm:$0xf]
      %v4338 = vld [vmem:[%s4308 + $0xac] sm:$0xf]
      %v4339 = vld [vmem:[%s4308 + $0xb4] sm:$0xf]
      %v4340 = vld [vmem:[%s4308 + $0xb8] sm:$0xf]
      %v4341 = vld [vmem:[%s4308 + $0x8] sm:$0x1]
      %v4342 = vld [vmem:[%s4308 + $0x14] sm:$0x1]
      %v4343 = vld [vmem:[%s4308 + $0x20] sm:$0x1]
      %v4344 = vld [vmem:[%s4308 + $0x2c] sm:$0x1]
      %v4345 = vld [vmem:[%s4308 + $0x38] sm:$0x1]
      %v4346 = vld [vmem:[%s4308 + $0x44] sm:$0x1]
      %v4347 = vld [vmem:[%s4308 + $0x50] sm:$0x1]
      %v4348 = vld [vmem:[%s4308 + $0x5c] sm:$0x1]
      %v4349 = vld [vmem:[%s4308 + $0x68] sm:$0x1]
      %v4350 = vld [vmem:[%s4308 + $0x74] sm:$0x1]
      %v4351 = vld [vmem:[%s4308 + $0x80] sm:$0x1]
      %v4352 = vld [vmem:[%s4308 + $0x8c] sm:$0x1]
      %v4353 = vld [vmem:[%s4308 + $0x98] sm:$0x1]
      %v4354 = vld [vmem:[%s4308 + $0xa4] sm:$0x1]
      %v4355 = vld [vmem:[%s4308 + $0xb0] sm:$0x1]
      %v4356 = vld [vmem:[%s4308 + $0xbc] sm:$0x1]
      %v4389 = vunpack.c.l.b16 %v4260
      %v4390 = vunpack.c.l.b16 %v4261
      %v4391 = vunpack.c.l.b16 %v4262
      %v4392 = vunpack.c.l.b16 %v4263
      %v4393 = vunpack.c.l.b16 %v4264
      %v4394 = vunpack.c.l.b16 %v4265
      %v4395 = vunpack.c.l.b16 %v4266
      %v4396 = vunpack.c.l.b16 %v4267
      %v4397 = vunpack.c.l.b16 %v4268
      %v4398 = vunpack.c.l.b16 %v4269
      %v4399 = vunpack.c.l.b16 %v4270
      %v4400 = vunpack.c.l.b16 %v4271
      %v4401 = vunpack.c.l.b16 %v4272
      %v4402 = vunpack.c.l.b16 %v4273
      %v4403 = vunpack.c.l.b16 %v4274
      %v4404 = vunpack.c.l.b16 %v4275
      %v4405 = vunpack.c.l.b16 %v4276
      %v4406 = vunpack.c.l.b16 %v4277
      %v4407 = vunpack.c.l.b16 %v4278
      %v4408 = vunpack.c.l.b16 %v4279
      %v4409 = vunpack.c.l.b16 %v4280
      %v4410 = vunpack.c.l.b16 %v4281
      %v4411 = vunpack.c.l.b16 %v4282
      %v4412 = vunpack.c.l.b16 %v4283
      %v4413 = vunpack.c.l.b16 %v4284
      %v4414 = vunpack.c.l.b16 %v4285
      %v4415 = vunpack.c.l.b16 %v4286
      %v4416 = vunpack.c.l.b16 %v4287
      %v4417 = vunpack.c.l.b16 %v4288
      %v4418 = vunpack.c.l.b16 %v4289
      %v4419 = vunpack.c.l.b16 %v4290
      %v4420 = vunpack.c.l.b16 %v4291
      %v4421 = vpack.c.b16 %v4390, %v4389
      %v4422 = vpack.c.b16 %v4392, %v4391
      %v4423 = vpack.c.b16 %v4394, %v4393
      %v4424 = vpack.c.b16 %v4396, %v4395
      %v4425 = vpack.c.b16 %v4398, %v4397
      %v4426 = vpack.c.b16 %v4400, %v4399
      %v4427 = vpack.c.b16 %v4402, %v4401
      %v4428 = vpack.c.b16 %v4404, %v4403
      %v4429 = vpack.c.b16 %v4406, %v4405
      %v4430 = vpack.c.b16 %v4408, %v4407
      %v4431 = vpack.c.b16 %v4410, %v4409
      %v4432 = vpack.c.b16 %v4412, %v4411
      %v4433 = vpack.c.b16 %v4414, %v4413
      %v4434 = vpack.c.b16 %v4416, %v4415
      %v4435 = vpack.c.b16 %v4418, %v4417
      %v4436 = vpack.c.b16 %v4420, %v4419
      %v4453 = vunpack.c.l.b16 %v4292
      %v4454 = vunpack.c.l.b16 %v4293
      %v4455 = vunpack.c.l.b16 %v4294
      %v4456 = vunpack.c.l.b16 %v4295
      %v4457 = vunpack.c.l.b16 %v4296
      %v4458 = vunpack.c.l.b16 %v4297
      %v4459 = vunpack.c.l.b16 %v4298
      %v4460 = vunpack.c.l.b16 %v4299
      %v4461 = vunpack.c.l.b16 %v4300
      %v4462 = vunpack.c.l.b16 %v4301
      %v4463 = vunpack.c.l.b16 %v4302
      %v4464 = vunpack.c.l.b16 %v4303
      %v4465 = vunpack.c.l.b16 %v4304
      %v4466 = vunpack.c.l.b16 %v4305
      %v4467 = vunpack.c.l.b16 %v4306
      %v4468 = vunpack.c.l.b16 %v4307
      %v4469 = vpack.c.b16 %v4453, %v4453
      %v4470 = vpack.c.b16 %v4454, %v4454
      %v4471 = vpack.c.b16 %v4455, %v4455
      %v4472 = vpack.c.b16 %v4456, %v4456
      %v4473 = vpack.c.b16 %v4457, %v4457
      %v4474 = vpack.c.b16 %v4458, %v4458
      %v4475 = vpack.c.b16 %v4459, %v4459
      %v4476 = vpack.c.b16 %v4460, %v4460
      %v4477 = vpack.c.b16 %v4461, %v4461
      %v4478 = vpack.c.b16 %v4462, %v4462
      %v4479 = vpack.c.b16 %v4463, %v4463
      %v4480 = vpack.c.b16 %v4464, %v4464
      %v4481 = vpack.c.b16 %v4465, %v4465
      %v4482 = vpack.c.b16 %v4466, %v4466
      %v4483 = vpack.c.b16 %v4467, %v4467
      %v4484 = vpack.c.b16 %v4468, %v4468
      %v4486 = vshrl.u32 %v4421, 16
      %v4488 = vshll.u32 %v4421, 16
      %v4490 = vrot.slane %v4488, 1
      %v4491 = vor.u32 %v4486, %v4490
      %v4493 = vshll.u32 %v4469, 16
      %v4495 = vrot.slane %v4493, 1
      %v4496 = vsel %vm1317, %v4491, %v4495
      %v4498 = vshrl.u32 %v4422, 16
      %v4500 = vshll.u32 %v4422, 16
      %v4502 = vrot.slane %v4500, 1
      %v4503 = vor.u32 %v4498, %v4502
      %v4505 = vshll.u32 %v4470, 16
      %v4507 = vrot.slane %v4505, 1
      %v4508 = vsel %vm1317, %v4503, %v4507
      %v4510 = vshrl.u32 %v4423, 16
      %v4512 = vshll.u32 %v4423, 16
      %v4514 = vrot.slane %v4512, 1
      %v4515 = vor.u32 %v4510, %v4514
      %v4517 = vshll.u32 %v4471, 16
      %v4519 = vrot.slane %v4517, 1
      %v4520 = vsel %vm1317, %v4515, %v4519
      %v4522 = vshrl.u32 %v4424, 16
      %v4524 = vshll.u32 %v4424, 16
      %v4526 = vrot.slane %v4524, 1
      %v4527 = vor.u32 %v4522, %v4526
      %v4529 = vshll.u32 %v4472, 16
      %v4531 = vrot.slane %v4529, 1
      %v4532 = vsel %vm1317, %v4527, %v4531
      %v4534 = vshrl.u32 %v4425, 16
      %v4536 = vshll.u32 %v4425, 16
      %v4538 = vrot.slane %v4536, 1
      %v4539 = vor.u32 %v4534, %v4538
      %v4541 = vshll.u32 %v4473, 16
      %v4543 = vrot.slane %v4541, 1
      %v4544 = vsel %vm1317, %v4539, %v4543
      %v4546 = vshrl.u32 %v4426, 16
      %v4548 = vshll.u32 %v4426, 16
      %v4550 = vrot.slane %v4548, 1
      %v4551 = vor.u32 %v4546, %v4550
      %v4553 = vshll.u32 %v4474, 16
      %v4555 = vrot.slane %v4553, 1
      %v4556 = vsel %vm1317, %v4551, %v4555
      %v4558 = vshrl.u32 %v4427, 16
      %v4560 = vshll.u32 %v4427, 16
      %v4562 = vrot.slane %v4560, 1
      %v4563 = vor.u32 %v4558, %v4562
      %v4565 = vshll.u32 %v4475, 16
      %v4567 = vrot.slane %v4565, 1
      %v4568 = vsel %vm1317, %v4563, %v4567
      %v4570 = vshrl.u32 %v4428, 16
      %v4572 = vshll.u32 %v4428, 16
      %v4574 = vrot.slane %v4572, 1
      %v4575 = vor.u32 %v4570, %v4574
      %v4577 = vshll.u32 %v4476, 16
      %v4579 = vrot.slane %v4577, 1
      %v4580 = vsel %vm1317, %v4575, %v4579
      %v4582 = vshrl.u32 %v4429, 16
      %v4584 = vshll.u32 %v4429, 16
      %v4586 = vrot.slane %v4584, 1
      %v4587 = vor.u32 %v4582, %v4586
      %v4589 = vshll.u32 %v4477, 16
      %v4591 = vrot.slane %v4589, 1
      %v4592 = vsel %vm1317, %v4587, %v4591
      %v4594 = vshrl.u32 %v4430, 16
      %v4596 = vshll.u32 %v4430, 16
      %v4598 = vrot.slane %v4596, 1
      %v4599 = vor.u32 %v4594, %v4598
      %v4601 = vshll.u32 %v4478, 16
      %v4603 = vrot.slane %v4601, 1
      %v4604 = vsel %vm1317, %v4599, %v4603
      %v4606 = vshrl.u32 %v4431, 16
      %v4608 = vshll.u32 %v4431, 16
      %v4610 = vrot.slane %v4608, 1
      %v4611 = vor.u32 %v4606, %v4610
      %v4613 = vshll.u32 %v4479, 16
      %v4615 = vrot.slane %v4613, 1
      %v4616 = vsel %vm1317, %v4611, %v4615
      %v4618 = vshrl.u32 %v4432, 16
      %v4620 = vshll.u32 %v4432, 16
      %v4622 = vrot.slane %v4620, 1
      %v4623 = vor.u32 %v4618, %v4622
      %v4625 = vshll.u32 %v4480, 16
      %v4627 = vrot.slane %v4625, 1
      %v4628 = vsel %vm1317, %v4623, %v4627
      %v4630 = vshrl.u32 %v4433, 16
      %v4632 = vshll.u32 %v4433, 16
      %v4634 = vrot.slane %v4632, 1
      %v4635 = vor.u32 %v4630, %v4634
      %v4637 = vshll.u32 %v4481, 16
      %v4639 = vrot.slane %v4637, 1
      %v4640 = vsel %vm1317, %v4635, %v4639
      %v4642 = vshrl.u32 %v4434, 16
      %v4644 = vshll.u32 %v4434, 16
      %v4646 = vrot.slane %v4644, 1
      %v4647 = vor.u32 %v4642, %v4646
      %v4649 = vshll.u32 %v4482, 16
      %v4651 = vrot.slane %v4649, 1
      %v4652 = vsel %vm1317, %v4647, %v4651
      %v4654 = vshrl.u32 %v4435, 16
      %v4656 = vshll.u32 %v4435, 16
      %v4658 = vrot.slane %v4656, 1
      %v4659 = vor.u32 %v4654, %v4658
      %v4661 = vshll.u32 %v4483, 16
      %v4663 = vrot.slane %v4661, 1
      %v4664 = vsel %vm1317, %v4659, %v4663
      %v4666 = vshrl.u32 %v4436, 16
      %v4668 = vshll.u32 %v4436, 16
      %v4670 = vrot.slane %v4668, 1
      %v4671 = vor.u32 %v4666, %v4670
      %v4673 = vshll.u32 %v4484, 16
      %v4675 = vrot.slane %v4673, 1
      %v4676 = vsel %vm1317, %v4671, %v4675
      %4677 = vrot.lane.b32.xlu0 %v4496, 4
      %v4678 = vpop.permute.xlu0 %4677
      %4679 = vrot.lane.b32.xlu0 %v4508, 4
      %v4680 = vpop.permute.xlu0 %4679
      %4681 = vrot.lane.b32.xlu0 %v4520, 4
      %v4682 = vpop.permute.xlu0 %4681
      %4683 = vrot.lane.b32.xlu0 %v4532, 4
      %v4684 = vpop.permute.xlu0 %4683
      %4685 = vrot.lane.b32.xlu0 %v4544, 4
      %v4686 = vpop.permute.xlu0 %4685
      %4687 = vrot.lane.b32.xlu0 %v4556, 4
      %v4688 = vpop.permute.xlu0 %4687
      %4689 = vrot.lane.b32.xlu0 %v4568, 4
      %v4690 = vpop.permute.xlu0 %4689
      %4691 = vrot.lane.b32.xlu0 %v4580, 4
      %v4692 = vpop.permute.xlu0 %4691
      %4693 = vrot.lane.b32.xlu0 %v4592, 4
      %v4694 = vpop.permute.xlu0 %4693
      %4695 = vrot.lane.b32.xlu0 %v4604, 4
      %v4696 = vpop.permute.xlu0 %4695
      %4697 = vrot.lane.b32.xlu0 %v4616, 4
      %v4698 = vpop.permute.xlu0 %4697
      %4699 = vrot.lane.b32.xlu0 %v4628, 4
      %v4700 = vpop.permute.xlu0 %4699
      %4701 = vrot.lane.b32.xlu0 %v4640, 4
      %v4702 = vpop.permute.xlu0 %4701
      %4703 = vrot.lane.b32.xlu0 %v4652, 4
      %v4704 = vpop.permute.xlu0 %4703
      %4705 = vrot.lane.b32.xlu0 %v4664, 4
      %v4706 = vpop.permute.xlu0 %4705
      %4707 = vrot.lane.b32.xlu0 %v4676, 4
      %v4708 = vpop.permute.xlu0 %4707
      %v4741 = vunpack.c.l.b16 %v4309
      %v4742 = vunpack.c.l.b16 %v4310
      %v4743 = vunpack.c.l.b16 %v4311
      %v4744 = vunpack.c.l.b16 %v4312
      %v4745 = vunpack.c.l.b16 %v4313
      %v4746 = vunpack.c.l.b16 %v4314
      %v4747 = vunpack.c.l.b16 %v4315
      %v4748 = vunpack.c.l.b16 %v4316
      %v4749 = vunpack.c.l.b16 %v4317
      %v4750 = vunpack.c.l.b16 %v4318
      %v4751 = vunpack.c.l.b16 %v4319
      %v4752 = vunpack.c.l.b16 %v4320
      %v4753 = vunpack.c.l.b16 %v4321
      %v4754 = vunpack.c.l.b16 %v4322
      %v4755 = vunpack.c.l.b16 %v4323
      %v4756 = vunpack.c.l.b16 %v4324
      %v4757 = vunpack.c.l.b16 %v4325
      %v4758 = vunpack.c.l.b16 %v4326
      %v4759 = vunpack.c.l.b16 %v4327
      %v4760 = vunpack.c.l.b16 %v4328
      %v4761 = vunpack.c.l.b16 %v4329
      %v4762 = vunpack.c.l.b16 %v4330
      %v4763 = vunpack.c.l.b16 %v4331
      %v4764 = vunpack.c.l.b16 %v4332
      %v4765 = vunpack.c.l.b16 %v4333
      %v4766 = vunpack.c.l.b16 %v4334
      %v4767 = vunpack.c.l.b16 %v4335
      %v4768 = vunpack.c.l.b16 %v4336
      %v4769 = vunpack.c.l.b16 %v4337
      %v4770 = vunpack.c.l.b16 %v4338
      %v4771 = vunpack.c.l.b16 %v4339
      %v4772 = vunpack.c.l.b16 %v4340
      %v4773 = vpack.c.b16 %v4742, %v4741
      %v4774 = vpack.c.b16 %v4744, %v4743
      %v4775 = vpack.c.b16 %v4746, %v4745
      %v4776 = vpack.c.b16 %v4748, %v4747
      %v4777 = vpack.c.b16 %v4750, %v4749
      %v4778 = vpack.c.b16 %v4752, %v4751
      %v4779 = vpack.c.b16 %v4754, %v4753
      %v4780 = vpack.c.b16 %v4756, %v4755
      %v4781 = vpack.c.b16 %v4758, %v4757
      %v4782 = vpack.c.b16 %v4760, %v4759
      %v4783 = vpack.c.b16 %v4762, %v4761
      %v4784 = vpack.c.b16 %v4764, %v4763
      %v4785 = vpack.c.b16 %v4766, %v4765
      %v4786 = vpack.c.b16 %v4768, %v4767
      %v4787 = vpack.c.b16 %v4770, %v4769
      %v4788 = vpack.c.b16 %v4772, %v4771
      %4789 = vrot.lane.b32.xlu0 %v4773, 8
      %v4790 = vpop.permute.xlu0 %4789
      %4791 = vrot.lane.b32.xlu0 %v4774, 8
      %v4792 = vpop.permute.xlu0 %4791
      %4793 = vrot.lane.b32.xlu0 %v4775, 8
      %v4794 = vpop.permute.xlu0 %4793
      %4795 = vrot.lane.b32.xlu0 %v4776, 8
      %v4796 = vpop.permute.xlu0 %4795
      %4797 = vrot.lane.b32.xlu0 %v4777, 8
      %v4798 = vpop.permute.xlu0 %4797
      %4799 = vrot.lane.b32.xlu0 %v4778, 8
      %v4800 = vpop.permute.xlu0 %4799
      %4801 = vrot.lane.b32.xlu0 %v4779, 8
      %v4802 = vpop.permute.xlu0 %4801
      %4803 = vrot.lane.b32.xlu0 %v4780, 8
      %v4804 = vpop.permute.xlu0 %4803
      %4805 = vrot.lane.b32.xlu0 %v4781, 8
      %v4806 = vpop.permute.xlu0 %4805
      %4807 = vrot.lane.b32.xlu0 %v4782, 8
      %v4808 = vpop.permute.xlu0 %4807
      %4809 = vrot.lane.b32.xlu0 %v4783, 8
      %v4810 = vpop.permute.xlu0 %4809
      %4811 = vrot.lane.b32.xlu0 %v4784, 8
      %v4812 = vpop.permute.xlu0 %4811
      %4813 = vrot.lane.b32.xlu0 %v4785, 8
      %v4814 = vpop.permute.xlu0 %4813
      %4815 = vrot.lane.b32.xlu0 %v4786, 8
      %v4816 = vpop.permute.xlu0 %4815
      %4817 = vrot.lane.b32.xlu0 %v4787, 8
      %v4818 = vpop.permute.xlu0 %4817
      %4819 = vrot.lane.b32.xlu0 %v4788, 8
      %v4820 = vpop.permute.xlu0 %4819
      %v4837 = vunpack.c.l.b16 %v4341
      %v4838 = vunpack.c.l.b16 %v4342
      %v4839 = vunpack.c.l.b16 %v4343
      %v4840 = vunpack.c.l.b16 %v4344
      %v4841 = vunpack.c.l.b16 %v4345
      %v4842 = vunpack.c.l.b16 %v4346
      %v4843 = vunpack.c.l.b16 %v4347
      %v4844 = vunpack.c.l.b16 %v4348
      %v4845 = vunpack.c.l.b16 %v4349
      %v4846 = vunpack.c.l.b16 %v4350
      %v4847 = vunpack.c.l.b16 %v4351
      %v4848 = vunpack.c.l.b16 %v4352
      %v4849 = vunpack.c.l.b16 %v4353
      %v4850 = vunpack.c.l.b16 %v4354
      %v4851 = vunpack.c.l.b16 %v4355
      %v4852 = vunpack.c.l.b16 %v4356
      %v4853 = vpack.c.b16 %v4837, %v4837
      %v4854 = vpack.c.b16 %v4838, %v4838
      %v4855 = vpack.c.b16 %v4839, %v4839
      %v4856 = vpack.c.b16 %v4840, %v4840
      %v4857 = vpack.c.b16 %v4841, %v4841
      %v4858 = vpack.c.b16 %v4842, %v4842
      %v4859 = vpack.c.b16 %v4843, %v4843
      %v4860 = vpack.c.b16 %v4844, %v4844
      %v4861 = vpack.c.b16 %v4845, %v4845
      %v4862 = vpack.c.b16 %v4846, %v4846
      %v4863 = vpack.c.b16 %v4847, %v4847
      %v4864 = vpack.c.b16 %v4848, %v4848
      %v4865 = vpack.c.b16 %v4849, %v4849
      %v4866 = vpack.c.b16 %v4850, %v4850
      %v4867 = vpack.c.b16 %v4851, %v4851
      %v4868 = vpack.c.b16 %v4852, %v4852
      %v4870 = vshrl.u32 %v4773, 16
      %v4872 = vshll.u32 %v4773, 16
      %v4874 = vrot.slane %v4872, 1
      %v4875 = vor.u32 %v4870, %v4874
      %v4877 = vshll.u32 %v4853, 16
      %v4879 = vrot.slane %v4877, 1
      %v4880 = vsel %vm1317, %v4875, %v4879
      %v4882 = vshrl.u32 %v4774, 16
      %v4884 = vshll.u32 %v4774, 16
      %v4886 = vrot.slane %v4884, 1
      %v4887 = vor.u32 %v4882, %v4886
      %v4889 = vshll.u32 %v4854, 16
      %v4891 = vrot.slane %v4889, 1
      %v4892 = vsel %vm1317, %v4887, %v4891
      %v4894 = vshrl.u32 %v4775, 16
      %v4896 = vshll.u32 %v4775, 16
      %v4898 = vrot.slane %v4896, 1
      %v4899 = vor.u32 %v4894, %v4898
      %v4901 = vshll.u32 %v4855, 16
      %v4903 = vrot.slane %v4901, 1
      %v4904 = vsel %vm1317, %v4899, %v4903
      %v4906 = vshrl.u32 %v4776, 16
      %v4908 = vshll.u32 %v4776, 16
      %v4910 = vrot.slane %v4908, 1
      %v4911 = vor.u32 %v4906, %v4910
      %v4913 = vshll.u32 %v4856, 16
      %v4915 = vrot.slane %v4913, 1
      %v4916 = vsel %vm1317, %v4911, %v4915
      %v4918 = vshrl.u32 %v4777, 16
      %v4920 = vshll.u32 %v4777, 16
      %v4922 = vrot.slane %v4920, 1
      %v4923 = vor.u32 %v4918, %v4922
      %v4925 = vshll.u32 %v4857, 16
      %v4927 = vrot.slane %v4925, 1
      %v4928 = vsel %vm1317, %v4923, %v4927
      %v4930 = vshrl.u32 %v4778, 16
      %v4932 = vshll.u32 %v4778, 16
      %v4934 = vrot.slane %v4932, 1
      %v4935 = vor.u32 %v4930, %v4934
      %v4937 = vshll.u32 %v4858, 16
      %v4939 = vrot.slane %v4937, 1
      %v4940 = vsel %vm1317, %v4935, %v4939
      %v4942 = vshrl.u32 %v4779, 16
      %v4944 = vshll.u32 %v4779, 16
      %v4946 = vrot.slane %v4944, 1
      %v4947 = vor.u32 %v4942, %v4946
      %v4949 = vshll.u32 %v4859, 16
      %v4951 = vrot.slane %v4949, 1
      %v4952 = vsel %vm1317, %v4947, %v4951
      %v4954 = vshrl.u32 %v4780, 16
      %v4956 = vshll.u32 %v4780, 16
      %v4958 = vrot.slane %v4956, 1
      %v4959 = vor.u32 %v4954, %v4958
      %v4961 = vshll.u32 %v4860, 16
      %v4963 = vrot.slane %v4961, 1
      %v4964 = vsel %vm1317, %v4959, %v4963
      %v4966 = vshrl.u32 %v4781, 16
      %v4968 = vshll.u32 %v4781, 16
      %v4970 = vrot.slane %v4968, 1
      %v4971 = vor.u32 %v4966, %v4970
      %v4973 = vshll.u32 %v4861, 16
      %v4975 = vrot.slane %v4973, 1
      %v4976 = vsel %vm1317, %v4971, %v4975
      %v4978 = vshrl.u32 %v4782, 16
      %v4980 = vshll.u32 %v4782, 16
      %v4982 = vrot.slane %v4980, 1
      %v4983 = vor.u32 %v4978, %v4982
      %v4985 = vshll.u32 %v4862, 16
      %v4987 = vrot.slane %v4985, 1
      %v4988 = vsel %vm1317, %v4983, %v4987
      %v4990 = vshrl.u32 %v4783, 16
      %v4992 = vshll.u32 %v4783, 16
      %v4994 = vrot.slane %v4992, 1
      %v4995 = vor.u32 %v4990, %v4994
      %v4997 = vshll.u32 %v4863, 16
      %v4999 = vrot.slane %v4997, 1
      %v5000 = vsel %vm1317, %v4995, %v4999
      %v5002 = vshrl.u32 %v4784, 16
      %v5004 = vshll.u32 %v4784, 16
      %v5006 = vrot.slane %v5004, 1
      %v5007 = vor.u32 %v5002, %v5006
      %v5009 = vshll.u32 %v4864, 16
      %v5011 = vrot.slane %v5009, 1
      %v5012 = vsel %vm1317, %v5007, %v5011
      %v5014 = vshrl.u32 %v4785, 16
      %v5016 = vshll.u32 %v4785, 16
      %v5018 = vrot.slane %v5016, 1
      %v5019 = vor.u32 %v5014, %v5018
      %v5021 = vshll.u32 %v4865, 16
      %v5023 = vrot.slane %v5021, 1
      %v5024 = vsel %vm1317, %v5019, %v5023
      %v5026 = vshrl.u32 %v4786, 16
      %v5028 = vshll.u32 %v4786, 16
      %v5030 = vrot.slane %v5028, 1
      %v5031 = vor.u32 %v5026, %v5030
      %v5033 = vshll.u32 %v4866, 16
      %v5035 = vrot.slane %v5033, 1
      %v5036 = vsel %vm1317, %v5031, %v5035
      %v5038 = vshrl.u32 %v4787, 16
      %v5040 = vshll.u32 %v4787, 16
      %v5042 = vrot.slane %v5040, 1
      %v5043 = vor.u32 %v5038, %v5042
      %v5045 = vshll.u32 %v4867, 16
      %v5047 = vrot.slane %v5045, 1
      %v5048 = vsel %vm1317, %v5043, %v5047
      %v5050 = vshrl.u32 %v4788, 16
      %v5052 = vshll.u32 %v4788, 16
      %v5054 = vrot.slane %v5052, 1
      %v5055 = vor.u32 %v5050, %v5054
      %v5057 = vshll.u32 %v4868, 16
      %v5059 = vrot.slane %v5057, 1
      %v5060 = vsel %vm1317, %v5055, %v5059
      %5061 = vrot.lane.b32.xlu0 %v4880, 12
      %v5062 = vpop.permute.xlu0 %5061
      %5063 = vrot.lane.b32.xlu0 %v4892, 12
      %v5064 = vpop.permute.xlu0 %5063
      %5065 = vrot.lane.b32.xlu0 %v4904, 12
      %v5066 = vpop.permute.xlu0 %5065
      %5067 = vrot.lane.b32.xlu0 %v4916, 12
      %v5068 = vpop.permute.xlu0 %5067
      %5069 = vrot.lane.b32.xlu0 %v4928, 12
      %v5070 = vpop.permute.xlu0 %5069
      %5071 = vrot.lane.b32.xlu0 %v4940, 12
      %v5072 = vpop.permute.xlu0 %5071
      %5073 = vrot.lane.b32.xlu0 %v4952, 12
      %v5074 = vpop.permute.xlu0 %5073
      %5075 = vrot.lane.b32.xlu0 %v4964, 12
      %v5076 = vpop.permute.xlu0 %5075
      %5077 = vrot.lane.b32.xlu0 %v4976, 12
      %v5078 = vpop.permute.xlu0 %5077
      %5079 = vrot.lane.b32.xlu0 %v4988, 12
      %v5080 = vpop.permute.xlu0 %5079
      %5081 = vrot.lane.b32.xlu0 %v5000, 12
      %v5082 = vpop.permute.xlu0 %5081
      %5083 = vrot.lane.b32.xlu0 %v5012, 12
      %v5084 = vpop.permute.xlu0 %5083
      %5085 = vrot.lane.b32.xlu0 %v5024, 12
      %v5086 = vpop.permute.xlu0 %5085
      %5087 = vrot.lane.b32.xlu0 %v5036, 12
      %v5088 = vpop.permute.xlu0 %5087
      %5089 = vrot.lane.b32.xlu0 %v5048, 12
      %v5090 = vpop.permute.xlu0 %5089
      %5091 = vrot.lane.b32.xlu0 %v5060, 12
      %v5092 = vpop.permute.xlu0 %5091
      %v5094 = vsel %vm1926, %v4421, %v4678
      %v5096 = vsel %vm1926, %v4422, %v4680
      %v5098 = vsel %vm1926, %v4423, %v4682
      %v5100 = vsel %vm1926, %v4424, %v4684
      %v5102 = vsel %vm1926, %v4425, %v4686
      %v5104 = vsel %vm1926, %v4426, %v4688
      %v5106 = vsel %vm1926, %v4427, %v4690
      %v5108 = vsel %vm1926, %v4428, %v4692
      %v5110 = vsel %vm1926, %v4429, %v4694
      %v5112 = vsel %vm1926, %v4430, %v4696
      %v5114 = vsel %vm1926, %v4431, %v4698
      %v5116 = vsel %vm1926, %v4432, %v4700
      %v5118 = vsel %vm1926, %v4433, %v4702
      %v5120 = vsel %vm1926, %v4434, %v4704
      %v5122 = vsel %vm1926, %v4435, %v4706
      %v5124 = vsel %vm1926, %v4436, %v4708
      %v5126 = vsel %vm1959, %v5094, %v4790
      %v5128 = vsel %vm1959, %v5096, %v4792
      %v5130 = vsel %vm1959, %v5098, %v4794
      %v5132 = vsel %vm1959, %v5100, %v4796
      %v5134 = vsel %vm1959, %v5102, %v4798
      %v5136 = vsel %vm1959, %v5104, %v4800
      %v5138 = vsel %vm1959, %v5106, %v4802
      %v5140 = vsel %vm1959, %v5108, %v4804
      %v5142 = vsel %vm1959, %v5110, %v4806
      %v5144 = vsel %vm1959, %v5112, %v4808
      %v5146 = vsel %vm1959, %v5114, %v4810
      %v5148 = vsel %vm1959, %v5116, %v4812
      %v5150 = vsel %vm1959, %v5118, %v4814
      %v5152 = vsel %vm1959, %v5120, %v4816
      %v5154 = vsel %vm1959, %v5122, %v4818
      %v5156 = vsel %vm1959, %v5124, %v4820
      %v5158 = vsel %vm1992, %v5126, %v5062
      %v5160 = vsel %vm1992, %v5128, %v5064
      %v5162 = vsel %vm1992, %v5130, %v5066
      %v5164 = vsel %vm1992, %v5132, %v5068
      %v5166 = vsel %vm1992, %v5134, %v5070
      %v5168 = vsel %vm1992, %v5136, %v5072
      %v5170 = vsel %vm1992, %v5138, %v5074
      %v5172 = vsel %vm1992, %v5140, %v5076
      %v5174 = vsel %vm1992, %v5142, %v5078
      %v5176 = vsel %vm1992, %v5144, %v5080
      %v5178 = vsel %vm1992, %v5146, %v5082
      %v5180 = vsel %vm1992, %v5148, %v5084
      %v5182 = vsel %vm1992, %v5150, %v5086
      %v5184 = vsel %vm1992, %v5152, %v5088
      %v5186 = vsel %vm1992, %v5154, %v5090
      %v5188 = vsel %vm1992, %v5156, %v5092
      %s5189 = scalar_lea.vmem %s420, 16
      %v5190 = vld [vmem:[%s5189] sm:$0xf]
      %v5191 = vld [vmem:[%s5189 + $0x4] sm:$0xf]
      %v5194 = vunpack.c.l.b16 %v5190
      %v5195 = vunpack.c.l.b16 %v5191
      %v5196 = vpack.c.b16 %v5195, %v5194
      %v5198 = vsel %vm2039, %v5158, 0
      %v5200 = vsel %vm2039, %v5160, 0
      %v5202 = vsel %vm2039, %v5162, 0
      %v5204 = vsel %vm2039, %v5164, 0
      %v5206 = vsel %vm2039, %v5166, 0
      %v5208 = vsel %vm2039, %v5168, 0
      %v5210 = vsel %vm2039, %v5170, 0
      %v5212 = vsel %vm2039, %v5172, 0
      %v5214 = vsel %vm2039, %v5174, 0
      %v5216 = vsel %vm2039, %v5176, 0
      %v5218 = vsel %vm2039, %v5178, 0
      %v5220 = vsel %vm2039, %v5180, 0
      %v5222 = vsel %vm2039, %v5182, 0
      %v5224 = vsel %vm2039, %v5184, 0
      %v5226 = vsel %vm2039, %v5186, 0
      %v5228 = vsel %vm2039, %v5188, 0
      %5230 = vmatprep.subr.bf16.mxu0 0
      %5231 = vmatpush1.bf16.msra.mxu0 0
      %5232 = vmatprep.subr.bf16.mxu0 0
      %5233 = vmatpush1.bf16.msra.mxu0 0
      %5234 = vmatprep.subr.bf16.mxu0 0
      %5235 = vmatpush1.bf16.msra.mxu0 0
      %5236 = vmatprep.subr.bf16.mxu0 0
      %5237 = vmatpush1.bf16.msra.mxu0 0
      %5238 = vmatprep.subr.bf16.mxu0 0
      %5239 = vmatpush1.bf16.msra.mxu0 0
      %5240 = vmatprep.subr.bf16.mxu0 0
      %5241 = vmatpush1.bf16.msra.mxu0 0
      %5242 = vmatprep.subr.bf16.mxu0 0
      %5243 = vmatpush1.bf16.msra.mxu0 0
      %5244 = vmatprep.subr.bf16.mxu0 0
      %5245 = vmatpush1.bf16.msra.mxu0 %v5196
      %5246 = vmatprep.subr.bf16.mxu0 0
      %5247 = vmatpush2.bf16.msra.mxu0 0
      %5248 = vmatprep.subr.bf16.mxu0 0
      %5249 = vmatpush2.bf16.msra.mxu0 0
      %5250 = vmatprep.subr.bf16.mxu0 0
      %5251 = vmatpush2.bf16.msra.mxu0 0
      %5252 = vmatprep.subr.bf16.mxu0 0
      %5253 = vmatpush2.bf16.msra.mxu0 0
      %5254 = vmatprep.subr.bf16.mxu0 0
      %5255 = vmatpush2.bf16.msra.mxu0 0
      %5256 = vmatprep.subr.bf16.mxu0 0
      %5257 = vmatpush2.bf16.msra.mxu0 0
      %5258 = vmatprep.subr.bf16.mxu0 0
      %5259 = vmatpush2.bf16.msra.mxu0 0
      %5260 = vmatprep.subr.bf16.mxu0 0
      %5261 = vmatpush2.bf16.msra.mxu0 0
      %5262 = vmatprep.mubr.bf16.mxu0 0
      %5263 = vmatmul.mubr.bf16.gmra.mxu0 %v5198
      %v5264 = vpop.f32.mrf.mxu0
      %v5265 = vadd.f32 %v2031, %v5264
      %v5266 = vpop.f32.mrf.mxu0
      %v5267 = vpop.f32.mrf.mxu0
      %v5268 = vadd.f32 %v2031, %v5267
      %v5269 = vpop.f32.mrf.mxu0
      %5270 = vmatprep.mubr.bf16.mxu0 0
      %5271 = vmatmul.mubr.bf16.gmra.mxu0 %v5200
      %v5272 = vpop.f32.mrf.mxu0
      %v5273 = vadd.f32 %v2031, %v5272
      %v5274 = vpop.f32.mrf.mxu0
      %v5275 = vpop.f32.mrf.mxu0
      %v5276 = vadd.f32 %v2031, %v5275
      %v5277 = vpop.f32.mrf.mxu0
      %5278 = vmatprep.mubr.bf16.mxu0 0
      %5279 = vmatmul.mubr.bf16.gmra.mxu0 %v5202
      %v5280 = vpop.f32.mrf.mxu0
      %v5281 = vadd.f32 %v2031, %v5280
      %v5282 = vpop.f32.mrf.mxu0
      %v5283 = vpop.f32.mrf.mxu0
      %v5284 = vadd.f32 %v2031, %v5283
      %v5285 = vpop.f32.mrf.mxu0
      %5286 = vmatprep.mubr.bf16.mxu0 0
      %5287 = vmatmul.mubr.bf16.gmra.mxu0 %v5204
      %v5288 = vpop.f32.mrf.mxu0
      %v5289 = vadd.f32 %v2031, %v5288
      %v5290 = vpop.f32.mrf.mxu0
      %v5291 = vpop.f32.mrf.mxu0
      %v5292 = vadd.f32 %v2031, %v5291
      %v5293 = vpop.f32.mrf.mxu0
      %5294 = vmatprep.mubr.bf16.mxu0 0
      %5295 = vmatmul.mubr.bf16.gmra.mxu0 %v5206
      %v5296 = vpop.f32.mrf.mxu0
      %v5297 = vadd.f32 %v2031, %v5296
      %v5298 = vpop.f32.mrf.mxu0
      %v5299 = vpop.f32.mrf.mxu0
      %v5300 = vadd.f32 %v2031, %v5299
      %v5301 = vpop.f32.mrf.mxu0
      %5302 = vmatprep.mubr.bf16.mxu0 0
      %5303 = vmatmul.mubr.bf16.gmra.mxu0 %v5208
      %v5304 = vpop.f32.mrf.mxu0
      %v5305 = vadd.f32 %v2031, %v5304
      %v5306 = vpop.f32.mrf.mxu0
      %v5307 = vpop.f32.mrf.mxu0
      %v5308 = vadd.f32 %v2031, %v5307
      %v5309 = vpop.f32.mrf.mxu0
      %5310 = vmatprep.mubr.bf16.mxu0 0
      %5311 = vmatmul.mubr.bf16.gmra.mxu0 %v5210
      %v5312 = vpop.f32.mrf.mxu0
      %v5313 = vadd.f32 %v2031, %v5312
      %v5314 = vpop.f32.mrf.mxu0
      %v5315 = vpop.f32.mrf.mxu0
      %v5316 = vadd.f32 %v2031, %v5315
      %v5317 = vpop.f32.mrf.mxu0
      %5318 = vmatprep.mubr.bf16.mxu0 0
      %5319 = vmatmul.mubr.bf16.gmra.mxu0 %v5212
      %v5320 = vpop.f32.mrf.mxu0
      %v5321 = vadd.f32 %v2031, %v5320
      %v5322 = vpop.f32.mrf.mxu0
      %v5323 = vpop.f32.mrf.mxu0
      %v5324 = vadd.f32 %v2031, %v5323
      %v5325 = vpop.f32.mrf.mxu0
      %5326 = vmatprep.mubr.bf16.mxu0 0
      %5327 = vmatmul.mubr.bf16.gmra.mxu0 %v5214
      %v5328 = vpop.f32.mrf.mxu0
      %v5329 = vadd.f32 %v2031, %v5328
      %v5330 = vpop.f32.mrf.mxu0
      %v5331 = vpop.f32.mrf.mxu0
      %v5332 = vadd.f32 %v2031, %v5331
      %v5333 = vpop.f32.mrf.mxu0
      %5334 = vmatprep.mubr.bf16.mxu0 0
      %5335 = vmatmul.mubr.bf16.gmra.mxu0 %v5216
      %v5336 = vpop.f32.mrf.mxu0
      %v5337 = vadd.f32 %v2031, %v5336
      %v5338 = vpop.f32.mrf.mxu0
      %v5339 = vpop.f32.mrf.mxu0
      %v5340 = vadd.f32 %v2031, %v5339
      %v5341 = vpop.f32.mrf.mxu0
      %5342 = vmatprep.mubr.bf16.mxu0 0
      %5343 = vmatmul.mubr.bf16.gmra.mxu0 %v5218
      %v5344 = vpop.f32.mrf.mxu0
      %v5345 = vadd.f32 %v2031, %v5344
      %v5346 = vpop.f32.mrf.mxu0
      %v5347 = vpop.f32.mrf.mxu0
      %v5348 = vadd.f32 %v2031, %v5347
      %v5349 = vpop.f32.mrf.mxu0
      %5350 = vmatprep.mubr.bf16.mxu0 0
      %5351 = vmatmul.mubr.bf16.gmra.mxu0 %v5220
      %v5352 = vpop.f32.mrf.mxu0
      %v5353 = vadd.f32 %v2031, %v5352
      %v5354 = vpop.f32.mrf.mxu0
      %v5355 = vpop.f32.mrf.mxu0
      %v5356 = vadd.f32 %v2031, %v5355
      %v5357 = vpop.f32.mrf.mxu0
      %5358 = vmatprep.mubr.bf16.mxu0 0
      %5359 = vmatmul.mubr.bf16.gmra.mxu0 %v5222
      %v5360 = vpop.f32.mrf.mxu0
      %v5361 = vadd.f32 %v2031, %v5360
      %v5362 = vpop.f32.mrf.mxu0
      %v5363 = vpop.f32.mrf.mxu0
      %v5364 = vadd.f32 %v2031, %v5363
      %v5365 = vpop.f32.mrf.mxu0
      %5366 = vmatprep.mubr.bf16.mxu0 0
      %5367 = vmatmul.mubr.bf16.gmra.mxu0 %v5224
      %v5368 = vpop.f32.mrf.mxu0
      %v5369 = vadd.f32 %v2031, %v5368
      %v5370 = vpop.f32.mrf.mxu0
      %v5371 = vpop.f32.mrf.mxu0
      %v5372 = vadd.f32 %v2031, %v5371
      %v5373 = vpop.f32.mrf.mxu0
      %5374 = vmatprep.mubr.bf16.mxu0 0
      %5375 = vmatmul.mubr.bf16.gmra.mxu0 %v5226
      %v5376 = vpop.f32.mrf.mxu0
      %v5377 = vadd.f32 %v2031, %v5376
      %v5378 = vpop.f32.mrf.mxu0
      %v5379 = vpop.f32.mrf.mxu0
      %v5380 = vadd.f32 %v2031, %v5379
      %v5381 = vpop.f32.mrf.mxu0
      %5382 = vmatprep.mubr.bf16.mxu0 0
      %5383 = vmatmul.mubr.bf16.gmra.mxu0 %v5228
      %v5384 = vpop.f32.mrf.mxu0
      %v5385 = vadd.f32 %v2031, %v5384
      %v5386 = vpop.f32.mrf.mxu0
      %v5387 = vpop.f32.mrf.mxu0
      %v5388 = vadd.f32 %v2031, %v5387
      %v5389 = vpop.f32.mrf.mxu0
      %5390 = vdwg.mxu0
      %v5391 = vpack.c.bf16 %v5268, %v5265
      %v5392 = vpack.c.bf16 %v5276, %v5273
      %v5393 = vpack.c.bf16 %v5284, %v5281
      %v5394 = vpack.c.bf16 %v5292, %v5289
      %v5395 = vpack.c.bf16 %v5300, %v5297
      %v5396 = vpack.c.bf16 %v5308, %v5305
      %v5397 = vpack.c.bf16 %v5316, %v5313
      %v5398 = vpack.c.bf16 %v5324, %v5321
      %v5399 = vpack.c.bf16 %v5332, %v5329
      %v5400 = vpack.c.bf16 %v5340, %v5337
      %v5401 = vpack.c.bf16 %v5348, %v5345
      %v5402 = vpack.c.bf16 %v5356, %v5353
      %v5403 = vpack.c.bf16 %v5364, %v5361
      %v5404 = vpack.c.bf16 %v5372, %v5369
      %v5405 = vpack.c.bf16 %v5380, %v5377
      %v5406 = vpack.c.bf16 %v5388, %v5385
      %v5423 = vunpack.c.l.b16 %v5391
      %v5424 = vunpack.c.h.b16 %v5391
      %v5425 = vunpack.c.l.b16 %v5392
      %v5426 = vunpack.c.h.b16 %v5392
      %v5427 = vunpack.c.l.b16 %v5393
      %v5428 = vunpack.c.h.b16 %v5393
      %v5429 = vunpack.c.l.b16 %v5394
      %v5430 = vunpack.c.h.b16 %v5394
      %v5431 = vunpack.c.l.b16 %v5395
      %v5432 = vunpack.c.h.b16 %v5395
      %v5433 = vunpack.c.l.b16 %v5396
      %v5434 = vunpack.c.h.b16 %v5396
      %v5435 = vunpack.c.l.b16 %v5397
      %v5436 = vunpack.c.h.b16 %v5397
      %v5437 = vunpack.c.l.b16 %v5398
      %v5438 = vunpack.c.h.b16 %v5398
      %v5439 = vunpack.c.l.b16 %v5399
      %v5440 = vunpack.c.h.b16 %v5399
      %v5441 = vunpack.c.l.b16 %v5400
      %v5442 = vunpack.c.h.b16 %v5400
      %v5443 = vunpack.c.l.b16 %v5401
      %v5444 = vunpack.c.h.b16 %v5401
      %v5445 = vunpack.c.l.b16 %v5402
      %v5446 = vunpack.c.h.b16 %v5402
      %v5447 = vunpack.c.l.b16 %v5403
      %v5448 = vunpack.c.h.b16 %v5403
      %v5449 = vunpack.c.l.b16 %v5404
      %v5450 = vunpack.c.h.b16 %v5404
      %v5451 = vunpack.c.l.b16 %v5405
      %v5452 = vunpack.c.h.b16 %v5405
      %v5453 = vunpack.c.l.b16 %v5406
      %v5454 = vunpack.c.h.b16 %v5406
      %v5455 = vpack.c.b16 %v5423, %v5423
      %v5456 = vpack.c.b16 %v5424, %v5424
      %v5457 = vpack.c.b16 %v5425, %v5425
      %v5458 = vpack.c.b16 %v5426, %v5426
      %v5459 = vpack.c.b16 %v5427, %v5427
      %v5460 = vpack.c.b16 %v5428, %v5428
      %v5461 = vpack.c.b16 %v5429, %v5429
      %v5462 = vpack.c.b16 %v5430, %v5430
      %v5463 = vpack.c.b16 %v5431, %v5431
      %v5464 = vpack.c.b16 %v5432, %v5432
      %v5465 = vpack.c.b16 %v5433, %v5433
      %v5466 = vpack.c.b16 %v5434, %v5434
      %v5467 = vpack.c.b16 %v5435, %v5435
      %v5468 = vpack.c.b16 %v5436, %v5436
      %v5469 = vpack.c.b16 %v5437, %v5437
      %v5470 = vpack.c.b16 %v5438, %v5438
      %v5471 = vpack.c.b16 %v5439, %v5439
      %v5472 = vpack.c.b16 %v5440, %v5440
      %v5473 = vpack.c.b16 %v5441, %v5441
      %v5474 = vpack.c.b16 %v5442, %v5442
      %v5475 = vpack.c.b16 %v5443, %v5443
      %v5476 = vpack.c.b16 %v5444, %v5444
      %v5477 = vpack.c.b16 %v5445, %v5445
      %v5478 = vpack.c.b16 %v5446, %v5446
      %v5479 = vpack.c.b16 %v5447, %v5447
      %v5480 = vpack.c.b16 %v5448, %v5448
      %v5481 = vpack.c.b16 %v5449, %v5449
      %v5482 = vpack.c.b16 %v5450, %v5450
      %v5483 = vpack.c.b16 %v5451, %v5451
      %v5484 = vpack.c.b16 %v5452, %v5452
      %v5485 = vpack.c.b16 %v5453, %v5453
      %v5486 = vpack.c.b16 %v5454, %v5454
      %s5519 = scalar_lea.vmem %s435, 256
      %5520 = vst.msk [vmem:[%s5519] sm:$0xf] %vm911, %v5455
      %5521 = vst.msk [vmem:[%s5519 + $0x4] sm:$0xf] %vm911, %v5456
      %5522 = vst.msk [vmem:[%s5519 + $0x8] sm:$0xf] %vm911, %v5457
      %5523 = vst.msk [vmem:[%s5519 + $0xc] sm:$0xf] %vm911, %v5458
      %5524 = vst.msk [vmem:[%s5519 + $0x10] sm:$0xf] %vm911, %v5459
      %5525 = vst.msk [vmem:[%s5519 + $0x14] sm:$0xf] %vm911, %v5460
      %5526 = vst.msk [vmem:[%s5519 + $0x18] sm:$0xf] %vm911, %v5461
      %5527 = vst.msk [vmem:[%s5519 + $0x1c] sm:$0xf] %vm911, %v5462
      %5528 = vst.msk [vmem:[%s5519 + $0x20] sm:$0xf] %vm911, %v5463
      %5529 = vst.msk [vmem:[%s5519 + $0x24] sm:$0xf] %vm911, %v5464
      %5530 = vst.msk [vmem:[%s5519 + $0x28] sm:$0xf] %vm911, %v5465
      %5531 = vst.msk [vmem:[%s5519 + $0x2c] sm:$0xf] %vm911, %v5466
      %5532 = vst.msk [vmem:[%s5519 + $0x30] sm:$0xf] %vm911, %v5467
      %5533 = vst.msk [vmem:[%s5519 + $0x34] sm:$0xf] %vm911, %v5468
      %5534 = vst.msk [vmem:[%s5519 + $0x38] sm:$0xf] %vm911, %v5469
      %5535 = vst.msk [vmem:[%s5519 + $0x3c] sm:$0xf] %vm911, %v5470
      %5536 = vst.msk [vmem:[%s5519 + $0x40] sm:$0xf] %vm911, %v5471
      %5537 = vst.msk [vmem:[%s5519 + $0x44] sm:$0xf] %vm911, %v5472
      %5538 = vst.msk [vmem:[%s5519 + $0x48] sm:$0xf] %vm911, %v5473
      %5539 = vst.msk [vmem:[%s5519 + $0x4c] sm:$0xf] %vm911, %v5474
      %5540 = vst.msk [vmem:[%s5519 + $0x50] sm:$0xf] %vm911, %v5475
      %5541 = vst.msk [vmem:[%s5519 + $0x54] sm:$0xf] %vm911, %v5476
      %5542 = vst.msk [vmem:[%s5519 + $0x58] sm:$0xf] %vm911, %v5477
      %5543 = vst.msk [vmem:[%s5519 + $0x5c] sm:$0xf] %vm911, %v5478
      %5544 = vst.msk [vmem:[%s5519 + $0x60] sm:$0xf] %vm911, %v5479
      %5545 = vst.msk [vmem:[%s5519 + $0x64] sm:$0xf] %vm911, %v5480
      %5546 = vst.msk [vmem:[%s5519 + $0x68] sm:$0xf] %vm911, %v5481
      %5547 = vst.msk [vmem:[%s5519 + $0x6c] sm:$0xf] %vm911, %v5482
      %5548 = vst.msk [vmem:[%s5519 + $0x70] sm:$0xf] %vm911, %v5483
      %5549 = vst.msk [vmem:[%s5519 + $0x74] sm:$0xf] %vm911, %v5484
      %5550 = vst.msk [vmem:[%s5519 + $0x78] sm:$0xf] %vm911, %v5485
      %5551 = vst.msk [vmem:[%s5519 + $0x7c] sm:$0xf] %vm911, %v5486
      %v5552 = vld [vmem:[%s905] sm:$0xf]
      %v5553 = vld [vmem:[%s905 + $0x4] sm:$0xf]
      %v5554 = vld [vmem:[%s905 + $0x8] sm:$0x1]
      %v5555 = vld [vmem:[%s905 + $0xc] sm:$0xf]
      %v5556 = vld [vmem:[%s905 + $0x10] sm:$0xf]
      %v5557 = vld [vmem:[%s905 + $0x14] sm:$0x1]
      %v5558 = vld [vmem:[%s905 + $0x18] sm:$0xf]
      %v5559 = vld [vmem:[%s905 + $0x1c] sm:$0xf]
      %v5560 = vld [vmem:[%s905 + $0x20] sm:$0x1]
      %v5561 = vld [vmem:[%s905 + $0x24] sm:$0xf]
      %v5562 = vld [vmem:[%s905 + $0x28] sm:$0xf]
      %v5563 = vld [vmem:[%s905 + $0x2c] sm:$0x1]
      %v5564 = vld [vmem:[%s905 + $0x30] sm:$0xf]
      %v5565 = vld [vmem:[%s905 + $0x34] sm:$0xf]
      %v5566 = vld [vmem:[%s905 + $0x38] sm:$0x1]
      %v5567 = vld [vmem:[%s905 + $0x3c] sm:$0xf]
      %v5568 = vld [vmem:[%s905 + $0x40] sm:$0xf]
      %v5569 = vld [vmem:[%s905 + $0x44] sm:$0x1]
      %v5570 = vld [vmem:[%s905 + $0x48] sm:$0xf]
      %v5571 = vld [vmem:[%s905 + $0x4c] sm:$0xf]
      %v5572 = vld [vmem:[%s905 + $0x50] sm:$0x1]
      %v5573 = vld [vmem:[%s905 + $0x54] sm:$0xf]
      %v5574 = vld [vmem:[%s905 + $0x58] sm:$0xf]
      %v5575 = vld [vmem:[%s905 + $0x5c] sm:$0x1]
      %v5576 = vld [vmem:[%s905 + $0x60] sm:$0xf]
      %v5577 = vld [vmem:[%s905 + $0x64] sm:$0xf]
      %v5578 = vld [vmem:[%s905 + $0x68] sm:$0x1]
      %v5579 = vld [vmem:[%s905 + $0x6c] sm:$0xf]
      %v5580 = vld [vmem:[%s905 + $0x70] sm:$0xf]
      %v5581 = vld [vmem:[%s905 + $0x74] sm:$0x1]
      %v5582 = vld [vmem:[%s905 + $0x78] sm:$0xf]
      %v5583 = vld [vmem:[%s905 + $0x7c] sm:$0xf]
      %v5584 = vld [vmem:[%s905 + $0x80] sm:$0x1]
      %v5585 = vld [vmem:[%s905 + $0x84] sm:$0xf]
      %v5586 = vld [vmem:[%s905 + $0x88] sm:$0xf]
      %v5587 = vld [vmem:[%s905 + $0x8c] sm:$0x1]
      %v5588 = vld [vmem:[%s905 + $0x90] sm:$0xf]
      %v5589 = vld [vmem:[%s905 + $0x94] sm:$0xf]
      %v5590 = vld [vmem:[%s905 + $0x98] sm:$0x1]
      %v5591 = vld [vmem:[%s905 + $0x9c] sm:$0xf]
      %v5592 = vld [vmem:[%s905 + $0xa0] sm:$0xf]
      %v5593 = vld [vmem:[%s905 + $0xa4] sm:$0x1]
      %v5594 = vld [vmem:[%s905 + $0xa8] sm:$0xf]
      %v5595 = vld [vmem:[%s905 + $0xac] sm:$0xf]
      %v5596 = vld [vmem:[%s905 + $0xb0] sm:$0x1]
      %v5597 = vld [vmem:[%s905 + $0xb4] sm:$0xf]
      %v5598 = vld [vmem:[%s905 + $0xb8] sm:$0xf]
      %v5599 = vld [vmem:[%s905 + $0xbc] sm:$0x1]
      %v5600 = vld [vmem:[%s905] sm:$0xe]
      %v5601 = vld [vmem:[%s905 + $0xc] sm:$0xe]
      %v5602 = vld [vmem:[%s905 + $0x18] sm:$0xe]
      %v5603 = vld [vmem:[%s905 + $0x24] sm:$0xe]
      %v5604 = vld [vmem:[%s905 + $0x30] sm:$0xe]
      %v5605 = vld [vmem:[%s905 + $0x3c] sm:$0xe]
      %v5606 = vld [vmem:[%s905 + $0x48] sm:$0xe]
      %v5607 = vld [vmem:[%s905 + $0x54] sm:$0xe]
      %v5608 = vld [vmem:[%s905 + $0x60] sm:$0xe]
      %v5609 = vld [vmem:[%s905 + $0x6c] sm:$0xe]
      %v5610 = vld [vmem:[%s905 + $0x78] sm:$0xe]
      %v5611 = vld [vmem:[%s905 + $0x84] sm:$0xe]
      %v5612 = vld [vmem:[%s905 + $0x90] sm:$0xe]
      %v5613 = vld [vmem:[%s905 + $0x9c] sm:$0xe]
      %v5614 = vld [vmem:[%s905 + $0xa8] sm:$0xe]
      %v5615 = vld [vmem:[%s905 + $0xb4] sm:$0xe]
      %v5616 = vld [vmem:[%s4308] sm:$0xf]
      %v5617 = vld [vmem:[%s4308 + $0x4] sm:$0xf]
      %v5618 = vld [vmem:[%s4308 + $0x8] sm:$0x1]
      %v5619 = vld [vmem:[%s4308 + $0xc] sm:$0xf]
      %v5620 = vld [vmem:[%s4308 + $0x10] sm:$0xf]
      %v5621 = vld [vmem:[%s4308 + $0x14] sm:$0x1]
      %v5622 = vld [vmem:[%s4308 + $0x18] sm:$0xf]
      %v5623 = vld [vmem:[%s4308 + $0x1c] sm:$0xf]
      %v5624 = vld [vmem:[%s4308 + $0x20] sm:$0x1]
      %v5625 = vld [vmem:[%s4308 + $0x24] sm:$0xf]
      %v5626 = vld [vmem:[%s4308 + $0x28] sm:$0xf]
      %v5627 = vld [vmem:[%s4308 + $0x2c] sm:$0x1]
      %v5628 = vld [vmem:[%s4308 + $0x30] sm:$0xf]
      %v5629 = vld [vmem:[%s4308 + $0x34] sm:$0xf]
      %v5630 = vld [vmem:[%s4308 + $0x38] sm:$0x1]
      %v5631 = vld [vmem:[%s4308 + $0x3c] sm:$0xf]
      %v5632 = vld [vmem:[%s4308 + $0x40] sm:$0xf]
      %v5633 = vld [vmem:[%s4308 + $0x44] sm:$0x1]
      %v5634 = vld [vmem:[%s4308 + $0x48] sm:$0xf]
      %v5635 = vld [vmem:[%s4308 + $0x4c] sm:$0xf]
      %v5636 = vld [vmem:[%s4308 + $0x50] sm:$0x1]
      %v5637 = vld [vmem:[%s4308 + $0x54] sm:$0xf]
      %v5638 = vld [vmem:[%s4308 + $0x58] sm:$0xf]
      %v5639 = vld [vmem:[%s4308 + $0x5c] sm:$0x1]
      %v5640 = vld [vmem:[%s4308 + $0x60] sm:$0xf]
      %v5641 = vld [vmem:[%s4308 + $0x64] sm:$0xf]
      %v5642 = vld [vmem:[%s4308 + $0x68] sm:$0x1]
      %v5643 = vld [vmem:[%s4308 + $0x6c] sm:$0xf]
      %v5644 = vld [vmem:[%s4308 + $0x70] sm:$0xf]
      %v5645 = vld [vmem:[%s4308 + $0x74] sm:$0x1]
      %v5646 = vld [vmem:[%s4308 + $0x78] sm:$0xf]
      %v5647 = vld [vmem:[%s4308 + $0x7c] sm:$0xf]
      %v5648 = vld [vmem:[%s4308 + $0x80] sm:$0x1]
      %v5649 = vld [vmem:[%s4308 + $0x84] sm:$0xf]
      %v5650 = vld [vmem:[%s4308 + $0x88] sm:$0xf]
      %v5651 = vld [vmem:[%s4308 + $0x8c] sm:$0x1]
      %v5652 = vld [vmem:[%s4308 + $0x90] sm:$0xf]
      %v5653 = vld [vmem:[%s4308 + $0x94] sm:$0xf]
      %v5654 = vld [vmem:[%s4308 + $0x98] sm:$0x1]
      %v5655 = vld [vmem:[%s4308 + $0x9c] sm:$0xf]
      %v5656 = vld [vmem:[%s4308 + $0xa0] sm:$0xf]
      %v5657 = vld [vmem:[%s4308 + $0xa4] sm:$0x1]
      %v5658 = vld [vmem:[%s4308 + $0xa8] sm:$0xf]
      %v5659 = vld [vmem:[%s4308 + $0xac] sm:$0xf]
      %v5660 = vld [vmem:[%s4308 + $0xb0] sm:$0x1]
      %v5661 = vld [vmem:[%s4308 + $0xb4] sm:$0xf]
      %v5662 = vld [vmem:[%s4308 + $0xb8] sm:$0xf]
      %v5663 = vld [vmem:[%s4308 + $0xbc] sm:$0x1]
      %v5664 = vld [vmem:[%s4308] sm:$0xe]
      %v5665 = vld [vmem:[%s4308 + $0xc] sm:$0xe]
      %v5666 = vld [vmem:[%s4308 + $0x18] sm:$0xe]
      %v5667 = vld [vmem:[%s4308 + $0x24] sm:$0xe]
      %v5668 = vld [vmem:[%s4308 + $0x30] sm:$0xe]
      %v5669 = vld [vmem:[%s4308 + $0x3c] sm:$0xe]
      %v5670 = vld [vmem:[%s4308 + $0x48] sm:$0xe]
      %v5671 = vld [vmem:[%s4308 + $0x54] sm:$0xe]
      %v5672 = vld [vmem:[%s4308 + $0x60] sm:$0xe]
      %v5673 = vld [vmem:[%s4308 + $0x6c] sm:$0xe]
      %v5674 = vld [vmem:[%s4308 + $0x78] sm:$0xe]
      %v5675 = vld [vmem:[%s4308 + $0x84] sm:$0xe]
      %v5676 = vld [vmem:[%s4308 + $0x90] sm:$0xe]
      %v5677 = vld [vmem:[%s4308 + $0x9c] sm:$0xe]
      %v5678 = vld [vmem:[%s4308 + $0xa8] sm:$0xe]
      %v5679 = vld [vmem:[%s4308 + $0xb4] sm:$0xe]
      %v5728 = vunpack.c.l.b16 %v5552
      %v5729 = vunpack.c.l.b16 %v5553
      %v5730 = vunpack.c.l.b16 %v5554
      %v5731 = vunpack.c.l.b16 %v5555
      %v5732 = vunpack.c.l.b16 %v5556
      %v5733 = vunpack.c.l.b16 %v5557
      %v5734 = vunpack.c.l.b16 %v5558
      %v5735 = vunpack.c.l.b16 %v5559
      %v5736 = vunpack.c.l.b16 %v5560
      %v5737 = vunpack.c.l.b16 %v5561
      %v5738 = vunpack.c.l.b16 %v5562
      %v5739 = vunpack.c.l.b16 %v5563
      %v5740 = vunpack.c.l.b16 %v5564
      %v5741 = vunpack.c.l.b16 %v5565
      %v5742 = vunpack.c.l.b16 %v5566
      %v5743 = vunpack.c.l.b16 %v5567
      %v5744 = vunpack.c.l.b16 %v5568
      %v5745 = vunpack.c.l.b16 %v5569
      %v5746 = vunpack.c.l.b16 %v5570
      %v5747 = vunpack.c.l.b16 %v5571
      %v5748 = vunpack.c.l.b16 %v5572
      %v5749 = vunpack.c.l.b16 %v5573
      %v5750 = vunpack.c.l.b16 %v5574
      %v5751 = vunpack.c.l.b16 %v5575
      %v5752 = vunpack.c.l.b16 %v5576
      %v5753 = vunpack.c.l.b16 %v5577
      %v5754 = vunpack.c.l.b16 %v5578
      %v5755 = vunpack.c.l.b16 %v5579
      %v5756 = vunpack.c.l.b16 %v5580
      %v5757 = vunpack.c.l.b16 %v5581
      %v5758 = vunpack.c.l.b16 %v5582
      %v5759 = vunpack.c.l.b16 %v5583
      %v5760 = vunpack.c.l.b16 %v5584
      %v5761 = vunpack.c.l.b16 %v5585
      %v5762 = vunpack.c.l.b16 %v5586
      %v5763 = vunpack.c.l.b16 %v5587
      %v5764 = vunpack.c.l.b16 %v5588
      %v5765 = vunpack.c.l.b16 %v5589
      %v5766 = vunpack.c.l.b16 %v5590
      %v5767 = vunpack.c.l.b16 %v5591
      %v5768 = vunpack.c.l.b16 %v5592
      %v5769 = vunpack.c.l.b16 %v5593
      %v5770 = vunpack.c.l.b16 %v5594
      %v5771 = vunpack.c.l.b16 %v5595
      %v5772 = vunpack.c.l.b16 %v5596
      %v5773 = vunpack.c.l.b16 %v5597
      %v5774 = vunpack.c.l.b16 %v5598
      %v5775 = vunpack.c.l.b16 %v5599
      %v5776 = vpack.c.b16 %v5729, %v5728
      %v5777 = vpack.c.b16 %v5730, %v5730
      %v5778 = vpack.c.b16 %v5732, %v5731
      %v5779 = vpack.c.b16 %v5733, %v5733
      %v5780 = vpack.c.b16 %v5735, %v5734
      %v5781 = vpack.c.b16 %v5736, %v5736
      %v5782 = vpack.c.b16 %v5738, %v5737
      %v5783 = vpack.c.b16 %v5739, %v5739
      %v5784 = vpack.c.b16 %v5741, %v5740
      %v5785 = vpack.c.b16 %v5742, %v5742
      %v5786 = vpack.c.b16 %v5744, %v5743
      %v5787 = vpack.c.b16 %v5745, %v5745
      %v5788 = vpack.c.b16 %v5747, %v5746
      %v5789 = vpack.c.b16 %v5748, %v5748
      %v5790 = vpack.c.b16 %v5750, %v5749
      %v5791 = vpack.c.b16 %v5751, %v5751
      %v5792 = vpack.c.b16 %v5753, %v5752
      %v5793 = vpack.c.b16 %v5754, %v5754
      %v5794 = vpack.c.b16 %v5756, %v5755
      %v5795 = vpack.c.b16 %v5757, %v5757
      %v5796 = vpack.c.b16 %v5759, %v5758
      %v5797 = vpack.c.b16 %v5760, %v5760
      %v5798 = vpack.c.b16 %v5762, %v5761
      %v5799 = vpack.c.b16 %v5763, %v5763
      %v5800 = vpack.c.b16 %v5765, %v5764
      %v5801 = vpack.c.b16 %v5766, %v5766
      %v5802 = vpack.c.b16 %v5768, %v5767
      %v5803 = vpack.c.b16 %v5769, %v5769
      %v5804 = vpack.c.b16 %v5771, %v5770
      %v5805 = vpack.c.b16 %v5772, %v5772
      %v5806 = vpack.c.b16 %v5774, %v5773
      %v5807 = vpack.c.b16 %v5775, %v5775
      %v5824 = vunpack.c.l.b16 %v5600
      %v5825 = vunpack.c.l.b16 %v5601
      %v5826 = vunpack.c.l.b16 %v5602
      %v5827 = vunpack.c.l.b16 %v5603
      %v5828 = vunpack.c.l.b16 %v5604
      %v5829 = vunpack.c.l.b16 %v5605
      %v5830 = vunpack.c.l.b16 %v5606
      %v5831 = vunpack.c.l.b16 %v5607
      %v5832 = vunpack.c.l.b16 %v5608
      %v5833 = vunpack.c.l.b16 %v5609
      %v5834 = vunpack.c.l.b16 %v5610
      %v5835 = vunpack.c.l.b16 %v5611
      %v5836 = vunpack.c.l.b16 %v5612
      %v5837 = vunpack.c.l.b16 %v5613
      %v5838 = vunpack.c.l.b16 %v5614
      %v5839 = vunpack.c.l.b16 %v5615
      %v5840 = vpack.c.b16 %v5729, %v5824
      %v5841 = vpack.c.b16 %v5732, %v5825
      %v5842 = vpack.c.b16 %v5735, %v5826
      %v5843 = vpack.c.b16 %v5738, %v5827
      %v5844 = vpack.c.b16 %v5741, %v5828
      %v5845 = vpack.c.b16 %v5744, %v5829
      %v5846 = vpack.c.b16 %v5747, %v5830
      %v5847 = vpack.c.b16 %v5750, %v5831
      %v5848 = vpack.c.b16 %v5753, %v5832
      %v5849 = vpack.c.b16 %v5756, %v5833
      %v5850 = vpack.c.b16 %v5759, %v5834
      %v5851 = vpack.c.b16 %v5762, %v5835
      %v5852 = vpack.c.b16 %v5765, %v5836
      %v5853 = vpack.c.b16 %v5768, %v5837
      %v5854 = vpack.c.b16 %v5771, %v5838
      %v5855 = vpack.c.b16 %v5774, %v5839
      %v5857 = vshrl.u32 %v5840, 16
      %v5859 = vshll.u32 %v5840, 16
      %v5861 = vrot.slane %v5859, 1
      %v5862 = vor.u32 %v5857, %v5861
      %v5864 = vshll.u32 %v5777, 16
      %v5866 = vrot.slane %v5864, 1
      %v5867 = vsel %vm1317, %v5862, %v5866
      %v5868 = vshrl.u32 %v5777, 16
      %v5871 = vshrl.u32 %v5841, 16
      %v5873 = vshll.u32 %v5841, 16
      %v5875 = vrot.slane %v5873, 1
      %v5876 = vor.u32 %v5871, %v5875
      %v5878 = vshll.u32 %v5779, 16
      %v5880 = vrot.slane %v5878, 1
      %v5881 = vsel %vm1317, %v5876, %v5880
      %v5882 = vshrl.u32 %v5779, 16
      %v5885 = vshrl.u32 %v5842, 16
      %v5887 = vshll.u32 %v5842, 16
      %v5889 = vrot.slane %v5887, 1
      %v5890 = vor.u32 %v5885, %v5889
      %v5892 = vshll.u32 %v5781, 16
      %v5894 = vrot.slane %v5892, 1
      %v5895 = vsel %vm1317, %v5890, %v5894
      %v5896 = vshrl.u32 %v5781, 16
      %v5899 = vshrl.u32 %v5843, 16
      %v5901 = vshll.u32 %v5843, 16
      %v5903 = vrot.slane %v5901, 1
      %v5904 = vor.u32 %v5899, %v5903
      %v5906 = vshll.u32 %v5783, 16
      %v5908 = vrot.slane %v5906, 1
      %v5909 = vsel %vm1317, %v5904, %v5908
      %v5910 = vshrl.u32 %v5783, 16
      %v5913 = vshrl.u32 %v5844, 16
      %v5915 = vshll.u32 %v5844, 16
      %v5917 = vrot.slane %v5915, 1
      %v5918 = vor.u32 %v5913, %v5917
      %v5920 = vshll.u32 %v5785, 16
      %v5922 = vrot.slane %v5920, 1
      %v5923 = vsel %vm1317, %v5918, %v5922
      %v5924 = vshrl.u32 %v5785, 16
      %v5927 = vshrl.u32 %v5845, 16
      %v5929 = vshll.u32 %v5845, 16
      %v5931 = vrot.slane %v5929, 1
      %v5932 = vor.u32 %v5927, %v5931
      %v5934 = vshll.u32 %v5787, 16
      %v5936 = vrot.slane %v5934, 1
      %v5937 = vsel %vm1317, %v5932, %v5936
      %v5938 = vshrl.u32 %v5787, 16
      %v5941 = vshrl.u32 %v5846, 16
      %v5943 = vshll.u32 %v5846, 16
      %v5945 = vrot.slane %v5943, 1
      %v5946 = vor.u32 %v5941, %v5945
      %v5948 = vshll.u32 %v5789, 16
      %v5950 = vrot.slane %v5948, 1
      %v5951 = vsel %vm1317, %v5946, %v5950
      %v5952 = vshrl.u32 %v5789, 16
      %v5955 = vshrl.u32 %v5847, 16
      %v5957 = vshll.u32 %v5847, 16
      %v5959 = vrot.slane %v5957, 1
      %v5960 = vor.u32 %v5955, %v5959
      %v5962 = vshll.u32 %v5791, 16
      %v5964 = vrot.slane %v5962, 1
      %v5965 = vsel %vm1317, %v5960, %v5964
      %v5966 = vshrl.u32 %v5791, 16
      %v5969 = vshrl.u32 %v5848, 16
      %v5971 = vshll.u32 %v5848, 16
      %v5973 = vrot.slane %v5971, 1
      %v5974 = vor.u32 %v5969, %v5973
      %v5976 = vshll.u32 %v5793, 16
      %v5978 = vrot.slane %v5976, 1
      %v5979 = vsel %vm1317, %v5974, %v5978
      %v5980 = vshrl.u32 %v5793, 16
      %v5983 = vshrl.u32 %v5849, 16
      %v5985 = vshll.u32 %v5849, 16
      %v5987 = vrot.slane %v5985, 1
      %v5988 = vor.u32 %v5983, %v5987
      %v5990 = vshll.u32 %v5795, 16
      %v5992 = vrot.slane %v5990, 1
      %v5993 = vsel %vm1317, %v5988, %v5992
      %v5994 = vshrl.u32 %v5795, 16
      %v5997 = vshrl.u32 %v5850, 16
      %v5999 = vshll.u32 %v5850, 16
      %v6001 = vrot.slane %v5999, 1
      %v6002 = vor.u32 %v5997, %v6001
      %v6004 = vshll.u32 %v5797, 16
      %v6006 = vrot.slane %v6004, 1
      %v6007 = vsel %vm1317, %v6002, %v6006
      %v6008 = vshrl.u32 %v5797, 16
      %v6011 = vshrl.u32 %v5851, 16
      %v6013 = vshll.u32 %v5851, 16
      %v6015 = vrot.slane %v6013, 1
      %v6016 = vor.u32 %v6011, %v6015
      %v6018 = vshll.u32 %v5799, 16
      %v6020 = vrot.slane %v6018, 1
      %v6021 = vsel %vm1317, %v6016, %v6020
      %v6022 = vshrl.u32 %v5799, 16
      %v6025 = vshrl.u32 %v5852, 16
      %v6027 = vshll.u32 %v5852, 16
      %v6029 = vrot.slane %v6027, 1
      %v6030 = vor.u32 %v6025, %v6029
      %v6032 = vshll.u32 %v5801, 16
      %v6034 = vrot.slane %v6032, 1
      %v6035 = vsel %vm1317, %v6030, %v6034
      %v6036 = vshrl.u32 %v5801, 16
      %v6039 = vshrl.u32 %v5853, 16
      %v6041 = vshll.u32 %v5853, 16
      %v6043 = vrot.slane %v6041, 1
      %v6044 = vor.u32 %v6039, %v6043
      %v6046 = vshll.u32 %v5803, 16
      %v6048 = vrot.slane %v6046, 1
      %v6049 = vsel %vm1317, %v6044, %v6048
      %v6050 = vshrl.u32 %v5803, 16
      %v6053 = vshrl.u32 %v5854, 16
      %v6055 = vshll.u32 %v5854, 16
      %v6057 = vrot.slane %v6055, 1
      %v6058 = vor.u32 %v6053, %v6057
      %v6060 = vshll.u32 %v5805, 16
      %v6062 = vrot.slane %v6060, 1
      %v6063 = vsel %vm1317, %v6058, %v6062
      %v6064 = vshrl.u32 %v5805, 16
      %v6067 = vshrl.u32 %v5855, 16
      %v6069 = vshll.u32 %v5855, 16
      %v6071 = vrot.slane %v6069, 1
      %v6072 = vor.u32 %v6067, %v6071
      %v6074 = vshll.u32 %v5807, 16
      %v6076 = vrot.slane %v6074, 1
      %v6077 = vsel %vm1317, %v6072, %v6076
      %v6078 = vshrl.u32 %v5807, 16
      %6080 = vrot.lane.b32.xlu0 %v5867, 4
      %v6081 = vpop.permute.xlu0 %6080
      %6082 = vrot.lane.b32.xlu0 %v5868, 4
      %v6083 = vpop.permute.xlu0 %6082
      %6084 = vrot.lane.b32.xlu0 %v5881, 4
      %v6085 = vpop.permute.xlu0 %6084
      %6086 = vrot.lane.b32.xlu0 %v5882, 4
      %v6087 = vpop.permute.xlu0 %6086
      %6088 = vrot.lane.b32.xlu0 %v5895, 4
      %v6089 = vpop.permute.xlu0 %6088
      %6090 = vrot.lane.b32.xlu0 %v5896, 4
      %v6091 = vpop.permute.xlu0 %6090
      %6092 = vrot.lane.b32.xlu0 %v5909, 4
      %v6093 = vpop.permute.xlu0 %6092
      %6094 = vrot.lane.b32.xlu0 %v5910, 4
      %v6095 = vpop.permute.xlu0 %6094
      %6096 = vrot.lane.b32.xlu0 %v5923, 4
      %v6097 = vpop.permute.xlu0 %6096
      %6098 = vrot.lane.b32.xlu0 %v5924, 4
      %v6099 = vpop.permute.xlu0 %6098
      %6100 = vrot.lane.b32.xlu0 %v5937, 4
      %v6101 = vpop.permute.xlu0 %6100
      %6102 = vrot.lane.b32.xlu0 %v5938, 4
      %v6103 = vpop.permute.xlu0 %6102
      %6104 = vrot.lane.b32.xlu0 %v5951, 4
      %v6105 = vpop.permute.xlu0 %6104
      %6106 = vrot.lane.b32.xlu0 %v5952, 4
      %v6107 = vpop.permute.xlu0 %6106
      %6108 = vrot.lane.b32.xlu0 %v5965, 4
      %v6109 = vpop.permute.xlu0 %6108
      %6110 = vrot.lane.b32.xlu0 %v5966, 4
      %v6111 = vpop.permute.xlu0 %6110
      %6112 = vrot.lane.b32.xlu0 %v5979, 4
      %v6113 = vpop.permute.xlu0 %6112
      %6114 = vrot.lane.b32.xlu0 %v5980, 4
      %v6115 = vpop.permute.xlu0 %6114
      %6116 = vrot.lane.b32.xlu0 %v5993, 4
      %v6117 = vpop.permute.xlu0 %6116
      %6118 = vrot.lane.b32.xlu0 %v5994, 4
      %v6119 = vpop.permute.xlu0 %6118
      %6120 = vrot.lane.b32.xlu0 %v6007, 4
      %v6121 = vpop.permute.xlu0 %6120
      %6122 = vrot.lane.b32.xlu0 %v6008, 4
      %v6123 = vpop.permute.xlu0 %6122
      %6124 = vrot.lane.b32.xlu0 %v6021, 4
      %v6125 = vpop.permute.xlu0 %6124
      %6126 = vrot.lane.b32.xlu0 %v6022, 4
      %v6127 = vpop.permute.xlu0 %6126
      %6128 = vrot.lane.b32.xlu0 %v6035, 4
      %v6129 = vpop.permute.xlu0 %6128
      %6130 = vrot.lane.b32.xlu0 %v6036, 4
      %v6131 = vpop.permute.xlu0 %6130
      %6132 = vrot.lane.b32.xlu0 %v6049, 4
      %v6133 = vpop.permute.xlu0 %6132
      %6134 = vrot.lane.b32.xlu0 %v6050, 4
      %v6135 = vpop.permute.xlu0 %6134
      %6136 = vrot.lane.b32.xlu0 %v6063, 4
      %v6137 = vpop.permute.xlu0 %6136
      %6138 = vrot.lane.b32.xlu0 %v6064, 4
      %v6139 = vpop.permute.xlu0 %6138
      %6140 = vrot.lane.b32.xlu0 %v6077, 4
      %v6141 = vpop.permute.xlu0 %6140
      %6142 = vrot.lane.b32.xlu0 %v6078, 4
      %v6143 = vpop.permute.xlu0 %6142
      %v6192 = vunpack.c.l.b16 %v5616
      %v6193 = vunpack.c.l.b16 %v5617
      %v6194 = vunpack.c.l.b16 %v5618
      %v6195 = vunpack.c.l.b16 %v5619
      %v6196 = vunpack.c.l.b16 %v5620
      %v6197 = vunpack.c.l.b16 %v5621
      %v6198 = vunpack.c.l.b16 %v5622
      %v6199 = vunpack.c.l.b16 %v5623
      %v6200 = vunpack.c.l.b16 %v5624
      %v6201 = vunpack.c.l.b16 %v5625
      %v6202 = vunpack.c.l.b16 %v5626
      %v6203 = vunpack.c.l.b16 %v5627
      %v6204 = vunpack.c.l.b16 %v5628
      %v6205 = vunpack.c.l.b16 %v5629
      %v6206 = vunpack.c.l.b16 %v5630
      %v6207 = vunpack.c.l.b16 %v5631
      %v6208 = vunpack.c.l.b16 %v5632
      %v6209 = vunpack.c.l.b16 %v5633
      %v6210 = vunpack.c.l.b16 %v5634
      %v6211 = vunpack.c.l.b16 %v5635
      %v6212 = vunpack.c.l.b16 %v5636
      %v6213 = vunpack.c.l.b16 %v5637
      %v6214 = vunpack.c.l.b16 %v5638
      %v6215 = vunpack.c.l.b16 %v5639
      %v6216 = vunpack.c.l.b16 %v5640
      %v6217 = vunpack.c.l.b16 %v5641
      %v6218 = vunpack.c.l.b16 %v5642
      %v6219 = vunpack.c.l.b16 %v5643
      %v6220 = vunpack.c.l.b16 %v5644
      %v6221 = vunpack.c.l.b16 %v5645
      %v6222 = vunpack.c.l.b16 %v5646
      %v6223 = vunpack.c.l.b16 %v5647
      %v6224 = vunpack.c.l.b16 %v5648
      %v6225 = vunpack.c.l.b16 %v5649
      %v6226 = vunpack.c.l.b16 %v5650
      %v6227 = vunpack.c.l.b16 %v5651
      %v6228 = vunpack.c.l.b16 %v5652
      %v6229 = vunpack.c.l.b16 %v5653
      %v6230 = vunpack.c.l.b16 %v5654
      %v6231 = vunpack.c.l.b16 %v5655
      %v6232 = vunpack.c.l.b16 %v5656
      %v6233 = vunpack.c.l.b16 %v5657
      %v6234 = vunpack.c.l.b16 %v5658
      %v6235 = vunpack.c.l.b16 %v5659
      %v6236 = vunpack.c.l.b16 %v5660
      %v6237 = vunpack.c.l.b16 %v5661
      %v6238 = vunpack.c.l.b16 %v5662
      %v6239 = vunpack.c.l.b16 %v5663
      %v6240 = vpack.c.b16 %v6193, %v6192
      %v6241 = vpack.c.b16 %v6194, %v6194
      %v6242 = vpack.c.b16 %v6196, %v6195
      %v6243 = vpack.c.b16 %v6197, %v6197
      %v6244 = vpack.c.b16 %v6199, %v6198
      %v6245 = vpack.c.b16 %v6200, %v6200
      %v6246 = vpack.c.b16 %v6202, %v6201
      %v6247 = vpack.c.b16 %v6203, %v6203
      %v6248 = vpack.c.b16 %v6205, %v6204
      %v6249 = vpack.c.b16 %v6206, %v6206
      %v6250 = vpack.c.b16 %v6208, %v6207
      %v6251 = vpack.c.b16 %v6209, %v6209
      %v6252 = vpack.c.b16 %v6211, %v6210
      %v6253 = vpack.c.b16 %v6212, %v6212
      %v6254 = vpack.c.b16 %v6214, %v6213
      %v6255 = vpack.c.b16 %v6215, %v6215
      %v6256 = vpack.c.b16 %v6217, %v6216
      %v6257 = vpack.c.b16 %v6218, %v6218
      %v6258 = vpack.c.b16 %v6220, %v6219
      %v6259 = vpack.c.b16 %v6221, %v6221
      %v6260 = vpack.c.b16 %v6223, %v6222
      %v6261 = vpack.c.b16 %v6224, %v6224
      %v6262 = vpack.c.b16 %v6226, %v6225
      %v6263 = vpack.c.b16 %v6227, %v6227
      %v6264 = vpack.c.b16 %v6229, %v6228
      %v6265 = vpack.c.b16 %v6230, %v6230
      %v6266 = vpack.c.b16 %v6232, %v6231
      %v6267 = vpack.c.b16 %v6233, %v6233
      %v6268 = vpack.c.b16 %v6235, %v6234
      %v6269 = vpack.c.b16 %v6236, %v6236
      %v6270 = vpack.c.b16 %v6238, %v6237
      %v6271 = vpack.c.b16 %v6239, %v6239
      %6272 = vrot.lane.b32.xlu0 %v6240, 8
      %v6273 = vpop.permute.xlu0 %6272
      %6274 = vrot.lane.b32.xlu0 %v6241, 8
      %v6275 = vpop.permute.xlu0 %6274
      %6276 = vrot.lane.b32.xlu0 %v6242, 8
      %v6277 = vpop.permute.xlu0 %6276
      %6278 = vrot.lane.b32.xlu0 %v6243, 8
      %v6279 = vpop.permute.xlu0 %6278
      %6280 = vrot.lane.b32.xlu0 %v6244, 8
      %v6281 = vpop.permute.xlu0 %6280
      %6282 = vrot.lane.b32.xlu0 %v6245, 8
      %v6283 = vpop.permute.xlu0 %6282
      %6284 = vrot.lane.b32.xlu0 %v6246, 8
      %v6285 = vpop.permute.xlu0 %6284
      %6286 = vrot.lane.b32.xlu0 %v6247, 8
      %v6287 = vpop.permute.xlu0 %6286
      %6288 = vrot.lane.b32.xlu0 %v6248, 8
      %v6289 = vpop.permute.xlu0 %6288
      %6290 = vrot.lane.b32.xlu0 %v6249, 8
      %v6291 = vpop.permute.xlu0 %6290
      %6292 = vrot.lane.b32.xlu0 %v6250, 8
      %v6293 = vpop.permute.xlu0 %6292
      %6294 = vrot.lane.b32.xlu0 %v6251, 8
      %v6295 = vpop.permute.xlu0 %6294
      %6296 = vrot.lane.b32.xlu0 %v6252, 8
      %v6297 = vpop.permute.xlu0 %6296
      %6298 = vrot.lane.b32.xlu0 %v6253, 8
      %v6299 = vpop.permute.xlu0 %6298
      %6300 = vrot.lane.b32.xlu0 %v6254, 8
      %v6301 = vpop.permute.xlu0 %6300
      %6302 = vrot.lane.b32.xlu0 %v6255, 8
      %v6303 = vpop.permute.xlu0 %6302
      %6304 = vrot.lane.b32.xlu0 %v6256, 8
      %v6305 = vpop.permute.xlu0 %6304
      %6306 = vrot.lane.b32.xlu0 %v6257, 8
      %v6307 = vpop.permute.xlu0 %6306
      %6308 = vrot.lane.b32.xlu0 %v6258, 8
      %v6309 = vpop.permute.xlu0 %6308
      %6310 = vrot.lane.b32.xlu0 %v6259, 8
      %v6311 = vpop.permute.xlu0 %6310
      %6312 = vrot.lane.b32.xlu0 %v6260, 8
      %v6313 = vpop.permute.xlu0 %6312
      %6314 = vrot.lane.b32.xlu0 %v6261, 8
      %v6315 = vpop.permute.xlu0 %6314
      %6316 = vrot.lane.b32.xlu0 %v6262, 8
      %v6317 = vpop.permute.xlu0 %6316
      %6318 = vrot.lane.b32.xlu0 %v6263, 8
      %v6319 = vpop.permute.xlu0 %6318
      %6320 = vrot.lane.b32.xlu0 %v6264, 8
      %v6321 = vpop.permute.xlu0 %6320
      %6322 = vrot.lane.b32.xlu0 %v6265, 8
      %v6323 = vpop.permute.xlu0 %6322
      %6324 = vrot.lane.b32.xlu0 %v6266, 8
      %v6325 = vpop.permute.xlu0 %6324
      %6326 = vrot.lane.b32.xlu0 %v6267, 8
      %v6327 = vpop.permute.xlu0 %6326
      %6328 = vrot.lane.b32.xlu0 %v6268, 8
      %v6329 = vpop.permute.xlu0 %6328
      %6330 = vrot.lane.b32.xlu0 %v6269, 8
      %v6331 = vpop.permute.xlu0 %6330
      %6332 = vrot.lane.b32.xlu0 %v6270, 8
      %v6333 = vpop.permute.xlu0 %6332
      %6334 = vrot.lane.b32.xlu0 %v6271, 8
      %v6335 = vpop.permute.xlu0 %6334
      %v6352 = vunpack.c.l.b16 %v5664
      %v6353 = vunpack.c.l.b16 %v5665
      %v6354 = vunpack.c.l.b16 %v5666
      %v6355 = vunpack.c.l.b16 %v5667
      %v6356 = vunpack.c.l.b16 %v5668
      %v6357 = vunpack.c.l.b16 %v5669
      %v6358 = vunpack.c.l.b16 %v5670
      %v6359 = vunpack.c.l.b16 %v5671
      %v6360 = vunpack.c.l.b16 %v5672
      %v6361 = vunpack.c.l.b16 %v5673
      %v6362 = vunpack.c.l.b16 %v5674
      %v6363 = vunpack.c.l.b16 %v5675
      %v6364 = vunpack.c.l.b16 %v5676
      %v6365 = vunpack.c.l.b16 %v5677
      %v6366 = vunpack.c.l.b16 %v5678
      %v6367 = vunpack.c.l.b16 %v5679
      %v6368 = vpack.c.b16 %v6193, %v6352
      %v6369 = vpack.c.b16 %v6196, %v6353
      %v6370 = vpack.c.b16 %v6199, %v6354
      %v6371 = vpack.c.b16 %v6202, %v6355
      %v6372 = vpack.c.b16 %v6205, %v6356
      %v6373 = vpack.c.b16 %v6208, %v6357
      %v6374 = vpack.c.b16 %v6211, %v6358
      %v6375 = vpack.c.b16 %v6214, %v6359
      %v6376 = vpack.c.b16 %v6217, %v6360
      %v6377 = vpack.c.b16 %v6220, %v6361
      %v6378 = vpack.c.b16 %v6223, %v6362
      %v6379 = vpack.c.b16 %v6226, %v6363
      %v6380 = vpack.c.b16 %v6229, %v6364
      %v6381 = vpack.c.b16 %v6232, %v6365
      %v6382 = vpack.c.b16 %v6235, %v6366
      %v6383 = vpack.c.b16 %v6238, %v6367
      %v6385 = vshrl.u32 %v6368, 16
      %v6387 = vshll.u32 %v6368, 16
      %v6389 = vrot.slane %v6387, 1
      %v6390 = vor.u32 %v6385, %v6389
      %v6392 = vshll.u32 %v6241, 16
      %v6394 = vrot.slane %v6392, 1
      %v6395 = vsel %vm1317, %v6390, %v6394
      %v6396 = vshrl.u32 %v6241, 16
      %v6399 = vshrl.u32 %v6369, 16
      %v6401 = vshll.u32 %v6369, 16
      %v6403 = vrot.slane %v6401, 1
      %v6404 = vor.u32 %v6399, %v6403
      %v6406 = vshll.u32 %v6243, 16
      %v6408 = vrot.slane %v6406, 1
      %v6409 = vsel %vm1317, %v6404, %v6408
      %v6410 = vshrl.u32 %v6243, 16
      %v6413 = vshrl.u32 %v6370, 16
      %v6415 = vshll.u32 %v6370, 16
      %v6417 = vrot.slane %v6415, 1
      %v6418 = vor.u32 %v6413, %v6417
      %v6420 = vshll.u32 %v6245, 16
      %v6422 = vrot.slane %v6420, 1
      %v6423 = vsel %vm1317, %v6418, %v6422
      %v6424 = vshrl.u32 %v6245, 16
      %v6427 = vshrl.u32 %v6371, 16
      %v6429 = vshll.u32 %v6371, 16
      %v6431 = vrot.slane %v6429, 1
      %v6432 = vor.u32 %v6427, %v6431
      %v6434 = vshll.u32 %v6247, 16
      %v6436 = vrot.slane %v6434, 1
      %v6437 = vsel %vm1317, %v6432, %v6436
      %v6438 = vshrl.u32 %v6247, 16
      %v6441 = vshrl.u32 %v6372, 16
      %v6443 = vshll.u32 %v6372, 16
      %v6445 = vrot.slane %v6443, 1
      %v6446 = vor.u32 %v6441, %v6445
      %v6448 = vshll.u32 %v6249, 16
      %v6450 = vrot.slane %v6448, 1
      %v6451 = vsel %vm1317, %v6446, %v6450
      %v6452 = vshrl.u32 %v6249, 16
      %v6455 = vshrl.u32 %v6373, 16
      %v6457 = vshll.u32 %v6373, 16
      %v6459 = vrot.slane %v6457, 1
      %v6460 = vor.u32 %v6455, %v6459
      %v6462 = vshll.u32 %v6251, 16
      %v6464 = vrot.slane %v6462, 1
      %v6465 = vsel %vm1317, %v6460, %v6464
      %v6466 = vshrl.u32 %v6251, 16
      %v6469 = vshrl.u32 %v6374, 16
      %v6471 = vshll.u32 %v6374, 16
      %v6473 = vrot.slane %v6471, 1
      %v6474 = vor.u32 %v6469, %v6473
      %v6476 = vshll.u32 %v6253, 16
      %v6478 = vrot.slane %v6476, 1
      %v6479 = vsel %vm1317, %v6474, %v6478
      %v6480 = vshrl.u32 %v6253, 16
      %v6483 = vshrl.u32 %v6375, 16
      %v6485 = vshll.u32 %v6375, 16
      %v6487 = vrot.slane %v6485, 1
      %v6488 = vor.u32 %v6483, %v6487
      %v6490 = vshll.u32 %v6255, 16
      %v6492 = vrot.slane %v6490, 1
      %v6493 = vsel %vm1317, %v6488, %v6492
      %v6494 = vshrl.u32 %v6255, 16
      %v6497 = vshrl.u32 %v6376, 16
      %v6499 = vshll.u32 %v6376, 16
      %v6501 = vrot.slane %v6499, 1
      %v6502 = vor.u32 %v6497, %v6501
      %v6504 = vshll.u32 %v6257, 16
      %v6506 = vrot.slane %v6504, 1
      %v6507 = vsel %vm1317, %v6502, %v6506
      %v6508 = vshrl.u32 %v6257, 16
      %v6511 = vshrl.u32 %v6377, 16
      %v6513 = vshll.u32 %v6377, 16
      %v6515 = vrot.slane %v6513, 1
      %v6516 = vor.u32 %v6511, %v6515
      %v6518 = vshll.u32 %v6259, 16
      %v6520 = vrot.slane %v6518, 1
      %v6521 = vsel %vm1317, %v6516, %v6520
      %v6522 = vshrl.u32 %v6259, 16
      %v6525 = vshrl.u32 %v6378, 16
      %v6527 = vshll.u32 %v6378, 16
      %v6529 = vrot.slane %v6527, 1
      %v6530 = vor.u32 %v6525, %v6529
      %v6532 = vshll.u32 %v6261, 16
      %v6534 = vrot.slane %v6532, 1
      %v6535 = vsel %vm1317, %v6530, %v6534
      %v6536 = vshrl.u32 %v6261, 16
      %v6539 = vshrl.u32 %v6379, 16
      %v6541 = vshll.u32 %v6379, 16
      %v6543 = vrot.slane %v6541, 1
      %v6544 = vor.u32 %v6539, %v6543
      %v6546 = vshll.u32 %v6263, 16
      %v6548 = vrot.slane %v6546, 1
      %v6549 = vsel %vm1317, %v6544, %v6548
      %v6550 = vshrl.u32 %v6263, 16
      %v6553 = vshrl.u32 %v6380, 16
      %v6555 = vshll.u32 %v6380, 16
      %v6557 = vrot.slane %v6555, 1
      %v6558 = vor.u32 %v6553, %v6557
      %v6560 = vshll.u32 %v6265, 16
      %v6562 = vrot.slane %v6560, 1
      %v6563 = vsel %vm1317, %v6558, %v6562
      %v6564 = vshrl.u32 %v6265, 16
      %v6567 = vshrl.u32 %v6381, 16
      %v6569 = vshll.u32 %v6381, 16
      %v6571 = vrot.slane %v6569, 1
      %v6572 = vor.u32 %v6567, %v6571
      %v6574 = vshll.u32 %v6267, 16
      %v6576 = vrot.slane %v6574, 1
      %v6577 = vsel %vm1317, %v6572, %v6576
      %v6578 = vshrl.u32 %v6267, 16
      %v6581 = vshrl.u32 %v6382, 16
      %v6583 = vshll.u32 %v6382, 16
      %v6585 = vrot.slane %v6583, 1
      %v6586 = vor.u32 %v6581, %v6585
      %v6588 = vshll.u32 %v6269, 16
      %v6590 = vrot.slane %v6588, 1
      %v6591 = vsel %vm1317, %v6586, %v6590
      %v6592 = vshrl.u32 %v6269, 16
      %v6595 = vshrl.u32 %v6383, 16
      %v6597 = vshll.u32 %v6383, 16
      %v6599 = vrot.slane %v6597, 1
      %v6600 = vor.u32 %v6595, %v6599
      %v6602 = vshll.u32 %v6271, 16
      %v6604 = vrot.slane %v6602, 1
      %v6605 = vsel %vm1317, %v6600, %v6604
      %v6606 = vshrl.u32 %v6271, 16
      %6608 = vrot.lane.b32.xlu0 %v6395, 12
      %v6609 = vpop.permute.xlu0 %6608
      %6610 = vrot.lane.b32.xlu0 %v6396, 12
      %v6611 = vpop.permute.xlu0 %6610
      %6612 = vrot.lane.b32.xlu0 %v6409, 12
      %v6613 = vpop.permute.xlu0 %6612
      %6614 = vrot.lane.b32.xlu0 %v6410, 12
      %v6615 = vpop.permute.xlu0 %6614
      %6616 = vrot.lane.b32.xlu0 %v6423, 12
      %v6617 = vpop.permute.xlu0 %6616
      %6618 = vrot.lane.b32.xlu0 %v6424, 12
      %v6619 = vpop.permute.xlu0 %6618
      %6620 = vrot.lane.b32.xlu0 %v6437, 12
      %v6621 = vpop.permute.xlu0 %6620
      %6622 = vrot.lane.b32.xlu0 %v6438, 12
      %v6623 = vpop.permute.xlu0 %6622
      %6624 = vrot.lane.b32.xlu0 %v6451, 12
      %v6625 = vpop.permute.xlu0 %6624
      %6626 = vrot.lane.b32.xlu0 %v6452, 12
      %v6627 = vpop.permute.xlu0 %6626
      %6628 = vrot.lane.b32.xlu0 %v6465, 12
      %v6629 = vpop.permute.xlu0 %6628
      %6630 = vrot.lane.b32.xlu0 %v6466, 12
      %v6631 = vpop.permute.xlu0 %6630
      %6632 = vrot.lane.b32.xlu0 %v6479, 12
      %v6633 = vpop.permute.xlu0 %6632
      %6634 = vrot.lane.b32.xlu0 %v6480, 12
      %v6635 = vpop.permute.xlu0 %6634
      %6636 = vrot.lane.b32.xlu0 %v6493, 12
      %v6637 = vpop.permute.xlu0 %6636
      %6638 = vrot.lane.b32.xlu0 %v6494, 12
      %v6639 = vpop.permute.xlu0 %6638
      %6640 = vrot.lane.b32.xlu0 %v6507, 12
      %v6641 = vpop.permute.xlu0 %6640
      %6642 = vrot.lane.b32.xlu0 %v6508, 12
      %v6643 = vpop.permute.xlu0 %6642
      %6644 = vrot.lane.b32.xlu0 %v6521, 12
      %v6645 = vpop.permute.xlu0 %6644
      %6646 = vrot.lane.b32.xlu0 %v6522, 12
      %v6647 = vpop.permute.xlu0 %6646
      %6648 = vrot.lane.b32.xlu0 %v6535, 12
      %v6649 = vpop.permute.xlu0 %6648
      %6650 = vrot.lane.b32.xlu0 %v6536, 12
      %v6651 = vpop.permute.xlu0 %6650
      %6652 = vrot.lane.b32.xlu0 %v6549, 12
      %v6653 = vpop.permute.xlu0 %6652
      %6654 = vrot.lane.b32.xlu0 %v6550, 12
      %v6655 = vpop.permute.xlu0 %6654
      %6656 = vrot.lane.b32.xlu0 %v6563, 12
      %v6657 = vpop.permute.xlu0 %6656
      %6658 = vrot.lane.b32.xlu0 %v6564, 12
      %v6659 = vpop.permute.xlu0 %6658
      %6660 = vrot.lane.b32.xlu0 %v6577, 12
      %v6661 = vpop.permute.xlu0 %6660
      %6662 = vrot.lane.b32.xlu0 %v6578, 12
      %v6663 = vpop.permute.xlu0 %6662
      %6664 = vrot.lane.b32.xlu0 %v6591, 12
      %v6665 = vpop.permute.xlu0 %6664
      %6666 = vrot.lane.b32.xlu0 %v6592, 12
      %v6667 = vpop.permute.xlu0 %6666
      %6668 = vrot.lane.b32.xlu0 %v6605, 12
      %v6669 = vpop.permute.xlu0 %6668
      %6670 = vrot.lane.b32.xlu0 %v6606, 12
      %v6671 = vpop.permute.xlu0 %6670
      %v6674 = vsel %vm1926, %v5776, %v6081
      %v6676 = vsel %vm1926, %v5777, %v6083
      %v6679 = vsel %vm1926, %v5778, %v6085
      %v6681 = vsel %vm1926, %v5779, %v6087
      %v6684 = vsel %vm1926, %v5780, %v6089
      %v6686 = vsel %vm1926, %v5781, %v6091
      %v6689 = vsel %vm1926, %v5782, %v6093
      %v6691 = vsel %vm1926, %v5783, %v6095
      %v6694 = vsel %vm1926, %v5784, %v6097
      %v6696 = vsel %vm1926, %v5785, %v6099
      %v6699 = vsel %vm1926, %v5786, %v6101
      %v6701 = vsel %vm1926, %v5787, %v6103
      %v6704 = vsel %vm1926, %v5788, %v6105
      %v6706 = vsel %vm1926, %v5789, %v6107
      %v6709 = vsel %vm1926, %v5790, %v6109
      %v6711 = vsel %vm1926, %v5791, %v6111
      %v6714 = vsel %vm1926, %v5792, %v6113
      %v6716 = vsel %vm1926, %v5793, %v6115
      %v6719 = vsel %vm1926, %v5794, %v6117
      %v6721 = vsel %vm1926, %v5795, %v6119
      %v6724 = vsel %vm1926, %v5796, %v6121
      %v6726 = vsel %vm1926, %v5797, %v6123
      %v6729 = vsel %vm1926, %v5798, %v6125
      %v6731 = vsel %vm1926, %v5799, %v6127
      %v6734 = vsel %vm1926, %v5800, %v6129
      %v6736 = vsel %vm1926, %v5801, %v6131
      %v6739 = vsel %vm1926, %v5802, %v6133
      %v6741 = vsel %vm1926, %v5803, %v6135
      %v6744 = vsel %vm1926, %v5804, %v6137
      %v6746 = vsel %vm1926, %v5805, %v6139
      %v6749 = vsel %vm1926, %v5806, %v6141
      %v6751 = vsel %vm1926, %v5807, %v6143
      %v6753 = vsel %vm1959, %v6674, %v6273
      %v6755 = vsel %vm1959, %v6676, %v6275
      %v6757 = vsel %vm1959, %v6679, %v6277
      %v6759 = vsel %vm1959, %v6681, %v6279
      %v6761 = vsel %vm1959, %v6684, %v6281
      %v6763 = vsel %vm1959, %v6686, %v6283
      %v6765 = vsel %vm1959, %v6689, %v6285
      %v6767 = vsel %vm1959, %v6691, %v6287
      %v6769 = vsel %vm1959, %v6694, %v6289
      %v6771 = vsel %vm1959, %v6696, %v6291
      %v6773 = vsel %vm1959, %v6699, %v6293
      %v6775 = vsel %vm1959, %v6701, %v6295
      %v6777 = vsel %vm1959, %v6704, %v6297
      %v6779 = vsel %vm1959, %v6706, %v6299
      %v6781 = vsel %vm1959, %v6709, %v6301
      %v6783 = vsel %vm1959, %v6711, %v6303
      %v6785 = vsel %vm1959, %v6714, %v6305
      %v6787 = vsel %vm1959, %v6716, %v6307
      %v6789 = vsel %vm1959, %v6719, %v6309
      %v6791 = vsel %vm1959, %v6721, %v6311
      %v6793 = vsel %vm1959, %v6724, %v6313
      %v6795 = vsel %vm1959, %v6726, %v6315
      %v6797 = vsel %vm1959, %v6729, %v6317
      %v6799 = vsel %vm1959, %v6731, %v6319
      %v6801 = vsel %vm1959, %v6734, %v6321
      %v6803 = vsel %vm1959, %v6736, %v6323
      %v6805 = vsel %vm1959, %v6739, %v6325
      %v6807 = vsel %vm1959, %v6741, %v6327
      %v6809 = vsel %vm1959, %v6744, %v6329
      %v6811 = vsel %vm1959, %v6746, %v6331
      %v6813 = vsel %vm1959, %v6749, %v6333
      %v6815 = vsel %vm1959, %v6751, %v6335
      %v6817 = vsel %vm1992, %v6753, %v6609
      %v6819 = vsel %vm1992, %v6755, %v6611
      %v6821 = vsel %vm1992, %v6757, %v6613
      %v6823 = vsel %vm1992, %v6759, %v6615
      %v6825 = vsel %vm1992, %v6761, %v6617
      %v6827 = vsel %vm1992, %v6763, %v6619
      %v6829 = vsel %vm1992, %v6765, %v6621
      %v6831 = vsel %vm1992, %v6767, %v6623
      %v6833 = vsel %vm1992, %v6769, %v6625
      %v6835 = vsel %vm1992, %v6771, %v6627
      %v6837 = vsel %vm1992, %v6773, %v6629
      %v6839 = vsel %vm1992, %v6775, %v6631
      %v6841 = vsel %vm1992, %v6777, %v6633
      %v6843 = vsel %vm1992, %v6779, %v6635
      %v6845 = vsel %vm1992, %v6781, %v6637
      %v6847 = vsel %vm1992, %v6783, %v6639
      %v6849 = vsel %vm1992, %v6785, %v6641
      %v6851 = vsel %vm1992, %v6787, %v6643
      %v6853 = vsel %vm1992, %v6789, %v6645
      %v6855 = vsel %vm1992, %v6791, %v6647
      %v6857 = vsel %vm1992, %v6793, %v6649
      %v6859 = vsel %vm1992, %v6795, %v6651
      %v6861 = vsel %vm1992, %v6797, %v6653
      %v6863 = vsel %vm1992, %v6799, %v6655
      %v6865 = vsel %vm1992, %v6801, %v6657
      %v6867 = vsel %vm1992, %v6803, %v6659
      %v6869 = vsel %vm1992, %v6805, %v6661
      %v6871 = vsel %vm1992, %v6807, %v6663
      %v6873 = vsel %vm1992, %v6809, %v6665
      %v6875 = vsel %vm1992, %v6811, %v6667
      %v6877 = vsel %vm1992, %v6813, %v6669
      %v6879 = vsel %vm1992, %v6815, %v6671
      %v6880 = vshrl.u32 %v6817, 16
      %v6882 = vshll.u32 %v6817, 16
      %v6884 = vrot.slane %v6882, 1
      %v6885 = vor.u32 %v6880, %v6884
      %v6886 = vshll.u32 %v6819, 16
      %v6888 = vrot.slane %v6886, 1
      %v6889 = vsel %vm1317, %v6885, %v6888
      %v6890 = vshrl.u32 %v6821, 16
      %v6892 = vshll.u32 %v6821, 16
      %v6894 = vrot.slane %v6892, 1
      %v6895 = vor.u32 %v6890, %v6894
      %v6896 = vshll.u32 %v6823, 16
      %v6898 = vrot.slane %v6896, 1
      %v6899 = vsel %vm1317, %v6895, %v6898
      %v6900 = vshrl.u32 %v6825, 16
      %v6902 = vshll.u32 %v6825, 16
      %v6904 = vrot.slane %v6902, 1
      %v6905 = vor.u32 %v6900, %v6904
      %v6906 = vshll.u32 %v6827, 16
      %v6908 = vrot.slane %v6906, 1
      %v6909 = vsel %vm1317, %v6905, %v6908
      %v6910 = vshrl.u32 %v6829, 16
      %v6912 = vshll.u32 %v6829, 16
      %v6914 = vrot.slane %v6912, 1
      %v6915 = vor.u32 %v6910, %v6914
      %v6916 = vshll.u32 %v6831, 16
      %v6918 = vrot.slane %v6916, 1
      %v6919 = vsel %vm1317, %v6915, %v6918
      %v6920 = vshrl.u32 %v6833, 16
      %v6922 = vshll.u32 %v6833, 16
      %v6924 = vrot.slane %v6922, 1
      %v6925 = vor.u32 %v6920, %v6924
      %v6926 = vshll.u32 %v6835, 16
      %v6928 = vrot.slane %v6926, 1
      %v6929 = vsel %vm1317, %v6925, %v6928
      %v6930 = vshrl.u32 %v6837, 16
      %v6932 = vshll.u32 %v6837, 16
      %v6934 = vrot.slane %v6932, 1
      %v6935 = vor.u32 %v6930, %v6934
      %v6936 = vshll.u32 %v6839, 16
      %v6938 = vrot.slane %v6936, 1
      %v6939 = vsel %vm1317, %v6935, %v6938
      %v6940 = vshrl.u32 %v6841, 16
      %v6942 = vshll.u32 %v6841, 16
      %v6944 = vrot.slane %v6942, 1
      %v6945 = vor.u32 %v6940, %v6944
      %v6946 = vshll.u32 %v6843, 16
      %v6948 = vrot.slane %v6946, 1
      %v6949 = vsel %vm1317, %v6945, %v6948
      %v6950 = vshrl.u32 %v6845, 16
      %v6952 = vshll.u32 %v6845, 16
      %v6954 = vrot.slane %v6952, 1
      %v6955 = vor.u32 %v6950, %v6954
      %v6956 = vshll.u32 %v6847, 16
      %v6958 = vrot.slane %v6956, 1
      %v6959 = vsel %vm1317, %v6955, %v6958
      %v6960 = vshrl.u32 %v6849, 16
      %v6962 = vshll.u32 %v6849, 16
      %v6964 = vrot.slane %v6962, 1
      %v6965 = vor.u32 %v6960, %v6964
      %v6966 = vshll.u32 %v6851, 16
      %v6968 = vrot.slane %v6966, 1
      %v6969 = vsel %vm1317, %v6965, %v6968
      %v6970 = vshrl.u32 %v6853, 16
      %v6972 = vshll.u32 %v6853, 16
      %v6974 = vrot.slane %v6972, 1
      %v6975 = vor.u32 %v6970, %v6974
      %v6976 = vshll.u32 %v6855, 16
      %v6978 = vrot.slane %v6976, 1
      %v6979 = vsel %vm1317, %v6975, %v6978
      %v6980 = vshrl.u32 %v6857, 16
      %v6982 = vshll.u32 %v6857, 16
      %v6984 = vrot.slane %v6982, 1
      %v6985 = vor.u32 %v6980, %v6984
      %v6986 = vshll.u32 %v6859, 16
      %v6988 = vrot.slane %v6986, 1
      %v6989 = vsel %vm1317, %v6985, %v6988
      %v6990 = vshrl.u32 %v6861, 16
      %v6992 = vshll.u32 %v6861, 16
      %v6994 = vrot.slane %v6992, 1
      %v6995 = vor.u32 %v6990, %v6994
      %v6996 = vshll.u32 %v6863, 16
      %v6998 = vrot.slane %v6996, 1
      %v6999 = vsel %vm1317, %v6995, %v6998
      %v7000 = vshrl.u32 %v6865, 16
      %v7002 = vshll.u32 %v6865, 16
      %v7004 = vrot.slane %v7002, 1
      %v7005 = vor.u32 %v7000, %v7004
      %v7006 = vshll.u32 %v6867, 16
      %v7008 = vrot.slane %v7006, 1
      %v7009 = vsel %vm1317, %v7005, %v7008
      %v7010 = vshrl.u32 %v6869, 16
      %v7012 = vshll.u32 %v6869, 16
      %v7014 = vrot.slane %v7012, 1
      %v7015 = vor.u32 %v7010, %v7014
      %v7016 = vshll.u32 %v6871, 16
      %v7018 = vrot.slane %v7016, 1
      %v7019 = vsel %vm1317, %v7015, %v7018
      %v7020 = vshrl.u32 %v6873, 16
      %v7022 = vshll.u32 %v6873, 16
      %v7024 = vrot.slane %v7022, 1
      %v7025 = vor.u32 %v7020, %v7024
      %v7026 = vshll.u32 %v6875, 16
      %v7028 = vrot.slane %v7026, 1
      %v7029 = vsel %vm1317, %v7025, %v7028
      %v7030 = vshrl.u32 %v6877, 16
      %v7032 = vshll.u32 %v6877, 16
      %v7034 = vrot.slane %v7032, 1
      %v7035 = vor.u32 %v7030, %v7034
      %v7036 = vshll.u32 %v6879, 16
      %v7038 = vrot.slane %v7036, 1
      %v7039 = vsel %vm1317, %v7035, %v7038
      %s7040 = scalar_lea.vmem %s420, 24
      %v7041 = vld [vmem:[%s7040] sm:$0xf]
      %v7042 = vld [vmem:[%s7040 + $0x4] sm:$0xf]
      %v7045 = vunpack.c.l.b16 %v7041
      %v7046 = vunpack.c.l.b16 %v7042
      %v7047 = vpack.c.b16 %v7046, %v7045
      %v7050 = vsel %vm2039, %v6889, 0
      %v7053 = vsel %vm2039, %v6899, 0
      %v7056 = vsel %vm2039, %v6909, 0
      %v7059 = vsel %vm2039, %v6919, 0
      %v7062 = vsel %vm2039, %v6929, 0
      %v7065 = vsel %vm2039, %v6939, 0
      %v7068 = vsel %vm2039, %v6949, 0
      %v7071 = vsel %vm2039, %v6959, 0
      %v7074 = vsel %vm2039, %v6969, 0
      %v7077 = vsel %vm2039, %v6979, 0
      %v7080 = vsel %vm2039, %v6989, 0
      %v7083 = vsel %vm2039, %v6999, 0
      %v7086 = vsel %vm2039, %v7009, 0
      %v7089 = vsel %vm2039, %v7019, 0
      %v7092 = vsel %vm2039, %v7029, 0
      %v7095 = vsel %vm2039, %v7039, 0
      %7097 = vmatprep.subr.bf16.mxu0 0
      %7098 = vmatpush1.bf16.msra.mxu0 0
      %7099 = vmatprep.subr.bf16.mxu0 0
      %7100 = vmatpush1.bf16.msra.mxu0 0
      %7101 = vmatprep.subr.bf16.mxu0 0
      %7102 = vmatpush1.bf16.msra.mxu0 0
      %7103 = vmatprep.subr.bf16.mxu0 0
      %7104 = vmatpush1.bf16.msra.mxu0 0
      %7105 = vmatprep.subr.bf16.mxu0 0
      %7106 = vmatpush1.bf16.msra.mxu0 0
      %7107 = vmatprep.subr.bf16.mxu0 0
      %7108 = vmatpush1.bf16.msra.mxu0 0
      %7109 = vmatprep.subr.bf16.mxu0 0
      %7110 = vmatpush1.bf16.msra.mxu0 0
      %7111 = vmatprep.subr.bf16.mxu0 0
      %7112 = vmatpush1.bf16.msra.mxu0 %v7047
      %7113 = vmatprep.subr.bf16.mxu0 0
      %7114 = vmatpush2.bf16.msra.mxu0 0
      %7115 = vmatprep.subr.bf16.mxu0 0
      %7116 = vmatpush2.bf16.msra.mxu0 0
      %7117 = vmatprep.subr.bf16.mxu0 0
      %7118 = vmatpush2.bf16.msra.mxu0 0
      %7119 = vmatprep.subr.bf16.mxu0 0
      %7120 = vmatpush2.bf16.msra.mxu0 0
      %7121 = vmatprep.subr.bf16.mxu0 0
      %7122 = vmatpush2.bf16.msra.mxu0 0
      %7123 = vmatprep.subr.bf16.mxu0 0
      %7124 = vmatpush2.bf16.msra.mxu0 0
      %7125 = vmatprep.subr.bf16.mxu0 0
      %7126 = vmatpush2.bf16.msra.mxu0 0
      %7127 = vmatprep.subr.bf16.mxu0 0
      %7128 = vmatpush2.bf16.msra.mxu0 0
      %7129 = vmatprep.mubr.bf16.mxu0 0
      %7130 = vmatmul.mubr.bf16.gmra.mxu0 %v7050
      %v7131 = vpop.f32.mrf.mxu0
      %v7132 = vadd.f32 %v2031, %v7131
      %v7133 = vpop.f32.mrf.mxu0
      %v7134 = vpop.f32.mrf.mxu0
      %v7135 = vadd.f32 %v2031, %v7134
      %v7136 = vpop.f32.mrf.mxu0
      %7137 = vmatprep.mubr.bf16.mxu0 0
      %7138 = vmatmul.mubr.bf16.gmra.mxu0 %v7053
      %v7139 = vpop.f32.mrf.mxu0
      %v7140 = vadd.f32 %v2031, %v7139
      %v7141 = vpop.f32.mrf.mxu0
      %v7142 = vpop.f32.mrf.mxu0
      %v7143 = vadd.f32 %v2031, %v7142
      %v7144 = vpop.f32.mrf.mxu0
      %7145 = vmatprep.mubr.bf16.mxu0 0
      %7146 = vmatmul.mubr.bf16.gmra.mxu0 %v7056
      %v7147 = vpop.f32.mrf.mxu0
      %v7148 = vadd.f32 %v2031, %v7147
      %v7149 = vpop.f32.mrf.mxu0
      %v7150 = vpop.f32.mrf.mxu0
      %v7151 = vadd.f32 %v2031, %v7150
      %v7152 = vpop.f32.mrf.mxu0
      %7153 = vmatprep.mubr.bf16.mxu0 0
      %7154 = vmatmul.mubr.bf16.gmra.mxu0 %v7059
      %v7155 = vpop.f32.mrf.mxu0
      %v7156 = vadd.f32 %v2031, %v7155
      %v7157 = vpop.f32.mrf.mxu0
      %v7158 = vpop.f32.mrf.mxu0
      %v7159 = vadd.f32 %v2031, %v7158
      %v7160 = vpop.f32.mrf.mxu0
      %7161 = vmatprep.mubr.bf16.mxu0 0
      %7162 = vmatmul.mubr.bf16.gmra.mxu0 %v7062
      %v7163 = vpop.f32.mrf.mxu0
      %v7164 = vadd.f32 %v2031, %v7163
      %v7165 = vpop.f32.mrf.mxu0
      %v7166 = vpop.f32.mrf.mxu0
      %v7167 = vadd.f32 %v2031, %v7166
      %v7168 = vpop.f32.mrf.mxu0
      %7169 = vmatprep.mubr.bf16.mxu0 0
      %7170 = vmatmul.mubr.bf16.gmra.mxu0 %v7065
      %v7171 = vpop.f32.mrf.mxu0
      %v7172 = vadd.f32 %v2031, %v7171
      %v7173 = vpop.f32.mrf.mxu0
      %v7174 = vpop.f32.mrf.mxu0
      %v7175 = vadd.f32 %v2031, %v7174
      %v7176 = vpop.f32.mrf.mxu0
      %7177 = vmatprep.mubr.bf16.mxu0 0
      %7178 = vmatmul.mubr.bf16.gmra.mxu0 %v7068
      %v7179 = vpop.f32.mrf.mxu0
      %v7180 = vadd.f32 %v2031, %v7179
      %v7181 = vpop.f32.mrf.mxu0
      %v7182 = vpop.f32.mrf.mxu0
      %v7183 = vadd.f32 %v2031, %v7182
      %v7184 = vpop.f32.mrf.mxu0
      %7185 = vmatprep.mubr.bf16.mxu0 0
      %7186 = vmatmul.mubr.bf16.gmra.mxu0 %v7071
      %v7187 = vpop.f32.mrf.mxu0
      %v7188 = vadd.f32 %v2031, %v7187
      %v7189 = vpop.f32.mrf.mxu0
      %v7190 = vpop.f32.mrf.mxu0
      %v7191 = vadd.f32 %v2031, %v7190
      %v7192 = vpop.f32.mrf.mxu0
      %7193 = vmatprep.mubr.bf16.mxu0 0
      %7194 = vmatmul.mubr.bf16.gmra.mxu0 %v7074
      %v7195 = vpop.f32.mrf.mxu0
      %v7196 = vadd.f32 %v2031, %v7195
      %v7197 = vpop.f32.mrf.mxu0
      %v7198 = vpop.f32.mrf.mxu0
      %v7199 = vadd.f32 %v2031, %v7198
      %v7200 = vpop.f32.mrf.mxu0
      %7201 = vmatprep.mubr.bf16.mxu0 0
      %7202 = vmatmul.mubr.bf16.gmra.mxu0 %v7077
      %v7203 = vpop.f32.mrf.mxu0
      %v7204 = vadd.f32 %v2031, %v7203
      %v7205 = vpop.f32.mrf.mxu0
      %v7206 = vpop.f32.mrf.mxu0
      %v7207 = vadd.f32 %v2031, %v7206
      %v7208 = vpop.f32.mrf.mxu0
      %7209 = vmatprep.mubr.bf16.mxu0 0
      %7210 = vmatmul.mubr.bf16.gmra.mxu0 %v7080
      %v7211 = vpop.f32.mrf.mxu0
      %v7212 = vadd.f32 %v2031, %v7211
      %v7213 = vpop.f32.mrf.mxu0
      %v7214 = vpop.f32.mrf.mxu0
      %v7215 = vadd.f32 %v2031, %v7214
      %v7216 = vpop.f32.mrf.mxu0
      %7217 = vmatprep.mubr.bf16.mxu0 0
      %7218 = vmatmul.mubr.bf16.gmra.mxu0 %v7083
      %v7219 = vpop.f32.mrf.mxu0
      %v7220 = vadd.f32 %v2031, %v7219
      %v7221 = vpop.f32.mrf.mxu0
      %v7222 = vpop.f32.mrf.mxu0
      %v7223 = vadd.f32 %v2031, %v7222
      %v7224 = vpop.f32.mrf.mxu0
      %7225 = vmatprep.mubr.bf16.mxu0 0
      %7226 = vmatmul.mubr.bf16.gmra.mxu0 %v7086
      %v7227 = vpop.f32.mrf.mxu0
      %v7228 = vadd.f32 %v2031, %v7227
      %v7229 = vpop.f32.mrf.mxu0
      %v7230 = vpop.f32.mrf.mxu0
      %v7231 = vadd.f32 %v2031, %v7230
      %v7232 = vpop.f32.mrf.mxu0
      %7233 = vmatprep.mubr.bf16.mxu0 0
      %7234 = vmatmul.mubr.bf16.gmra.mxu0 %v7089
      %v7235 = vpop.f32.mrf.mxu0
      %v7236 = vadd.f32 %v2031, %v7235
      %v7237 = vpop.f32.mrf.mxu0
      %v7238 = vpop.f32.mrf.mxu0
      %v7239 = vadd.f32 %v2031, %v7238
      %v7240 = vpop.f32.mrf.mxu0
      %7241 = vmatprep.mubr.bf16.mxu0 0
      %7242 = vmatmul.mubr.bf16.gmra.mxu0 %v7092
      %v7243 = vpop.f32.mrf.mxu0
      %v7244 = vadd.f32 %v2031, %v7243
      %v7245 = vpop.f32.mrf.mxu0
      %v7246 = vpop.f32.mrf.mxu0
      %v7247 = vadd.f32 %v2031, %v7246
      %v7248 = vpop.f32.mrf.mxu0
      %7249 = vmatprep.mubr.bf16.mxu0 0
      %7250 = vmatmul.mubr.bf16.gmra.mxu0 %v7095
      %v7251 = vpop.f32.mrf.mxu0
      %v7252 = vadd.f32 %v2031, %v7251
      %v7253 = vpop.f32.mrf.mxu0
      %v7254 = vpop.f32.mrf.mxu0
      %v7255 = vadd.f32 %v2031, %v7254
      %v7256 = vpop.f32.mrf.mxu0
      %7257 = vdwg.mxu0
      %v7258 = vpack.c.bf16 %v7135, %v7132
      %v7259 = vpack.c.bf16 %v7143, %v7140
      %v7260 = vpack.c.bf16 %v7151, %v7148
      %v7261 = vpack.c.bf16 %v7159, %v7156
      %v7262 = vpack.c.bf16 %v7167, %v7164
      %v7263 = vpack.c.bf16 %v7175, %v7172
      %v7264 = vpack.c.bf16 %v7183, %v7180
      %v7265 = vpack.c.bf16 %v7191, %v7188
      %v7266 = vpack.c.bf16 %v7199, %v7196
      %v7267 = vpack.c.bf16 %v7207, %v7204
      %v7268 = vpack.c.bf16 %v7215, %v7212
      %v7269 = vpack.c.bf16 %v7223, %v7220
      %v7270 = vpack.c.bf16 %v7231, %v7228
      %v7271 = vpack.c.bf16 %v7239, %v7236
      %v7272 = vpack.c.bf16 %v7247, %v7244
      %v7273 = vpack.c.bf16 %v7255, %v7252
      %v7290 = vunpack.c.l.b16 %v7258
      %v7291 = vunpack.c.h.b16 %v7258
      %v7292 = vunpack.c.l.b16 %v7259
      %v7293 = vunpack.c.h.b16 %v7259
      %v7294 = vunpack.c.l.b16 %v7260
      %v7295 = vunpack.c.h.b16 %v7260
      %v7296 = vunpack.c.l.b16 %v7261
      %v7297 = vunpack.c.h.b16 %v7261
      %v7298 = vunpack.c.l.b16 %v7262
      %v7299 = vunpack.c.h.b16 %v7262
      %v7300 = vunpack.c.l.b16 %v7263
      %v7301 = vunpack.c.h.b16 %v7263
      %v7302 = vunpack.c.l.b16 %v7264
      %v7303 = vunpack.c.h.b16 %v7264
      %v7304 = vunpack.c.l.b16 %v7265
      %v7305 = vunpack.c.h.b16 %v7265
      %v7306 = vunpack.c.l.b16 %v7266
      %v7307 = vunpack.c.h.b16 %v7266
      %v7308 = vunpack.c.l.b16 %v7267
      %v7309 = vunpack.c.h.b16 %v7267
      %v7310 = vunpack.c.l.b16 %v7268
      %v7311 = vunpack.c.h.b16 %v7268
      %v7312 = vunpack.c.l.b16 %v7269
      %v7313 = vunpack.c.h.b16 %v7269
      %v7314 = vunpack.c.l.b16 %v7270
      %v7315 = vunpack.c.h.b16 %v7270
      %v7316 = vunpack.c.l.b16 %v7271
      %v7317 = vunpack.c.h.b16 %v7271
      %v7318 = vunpack.c.l.b16 %v7272
      %v7319 = vunpack.c.h.b16 %v7272
      %v7320 = vunpack.c.l.b16 %v7273
      %v7321 = vunpack.c.h.b16 %v7273
      %v7322 = vpack.c.b16 %v7290, %v7290
      %v7323 = vpack.c.b16 %v7291, %v7291
      %v7324 = vpack.c.b16 %v7292, %v7292
      %v7325 = vpack.c.b16 %v7293, %v7293
      %v7326 = vpack.c.b16 %v7294, %v7294
      %v7327 = vpack.c.b16 %v7295, %v7295
      %v7328 = vpack.c.b16 %v7296, %v7296
      %v7329 = vpack.c.b16 %v7297, %v7297
      %v7330 = vpack.c.b16 %v7298, %v7298
      %v7331 = vpack.c.b16 %v7299, %v7299
      %v7332 = vpack.c.b16 %v7300, %v7300
      %v7333 = vpack.c.b16 %v7301, %v7301
      %v7334 = vpack.c.b16 %v7302, %v7302
      %v7335 = vpack.c.b16 %v7303, %v7303
      %v7336 = vpack.c.b16 %v7304, %v7304
      %v7337 = vpack.c.b16 %v7305, %v7305
      %v7338 = vpack.c.b16 %v7306, %v7306
      %v7339 = vpack.c.b16 %v7307, %v7307
      %v7340 = vpack.c.b16 %v7308, %v7308
      %v7341 = vpack.c.b16 %v7309, %v7309
      %v7342 = vpack.c.b16 %v7310, %v7310
      %v7343 = vpack.c.b16 %v7311, %v7311
      %v7344 = vpack.c.b16 %v7312, %v7312
      %v7345 = vpack.c.b16 %v7313, %v7313
      %v7346 = vpack.c.b16 %v7314, %v7314
      %v7347 = vpack.c.b16 %v7315, %v7315
      %v7348 = vpack.c.b16 %v7316, %v7316
      %v7349 = vpack.c.b16 %v7317, %v7317
      %v7350 = vpack.c.b16 %v7318, %v7318
      %v7351 = vpack.c.b16 %v7319, %v7319
      %v7352 = vpack.c.b16 %v7320, %v7320
      %v7353 = vpack.c.b16 %v7321, %v7321
      %s7386 = scalar_lea.vmem %s435, 384
      %7387 = vst.msk [vmem:[%s7386] sm:$0xf] %vm911, %v7322
      %7388 = vst.msk [vmem:[%s7386 + $0x4] sm:$0xf] %vm911, %v7323
      %7389 = vst.msk [vmem:[%s7386 + $0x8] sm:$0xf] %vm911, %v7324
      %7390 = vst.msk [vmem:[%s7386 + $0xc] sm:$0xf] %vm911, %v7325
      %7391 = vst.msk [vmem:[%s7386 + $0x10] sm:$0xf] %vm911, %v7326
      %7392 = vst.msk [vmem:[%s7386 + $0x14] sm:$0xf] %vm911, %v7327
      %7393 = vst.msk [vmem:[%s7386 + $0x18] sm:$0xf] %vm911, %v7328
      %7394 = vst.msk [vmem:[%s7386 + $0x1c] sm:$0xf] %vm911, %v7329
      %7395 = vst.msk [vmem:[%s7386 + $0x20] sm:$0xf] %vm911, %v7330
      %7396 = vst.msk [vmem:[%s7386 + $0x24] sm:$0xf] %vm911, %v7331
      %7397 = vst.msk [vmem:[%s7386 + $0x28] sm:$0xf] %vm911, %v7332
      %7398 = vst.msk [vmem:[%s7386 + $0x2c] sm:$0xf] %vm911, %v7333
      %7399 = vst.msk [vmem:[%s7386 + $0x30] sm:$0xf] %vm911, %v7334
      %7400 = vst.msk [vmem:[%s7386 + $0x34] sm:$0xf] %vm911, %v7335
      %7401 = vst.msk [vmem:[%s7386 + $0x38] sm:$0xf] %vm911, %v7336
      %7402 = vst.msk [vmem:[%s7386 + $0x3c] sm:$0xf] %vm911, %v7337
      %7403 = vst.msk [vmem:[%s7386 + $0x40] sm:$0xf] %vm911, %v7338
      %7404 = vst.msk [vmem:[%s7386 + $0x44] sm:$0xf] %vm911, %v7339
      %7405 = vst.msk [vmem:[%s7386 + $0x48] sm:$0xf] %vm911, %v7340
      %7406 = vst.msk [vmem:[%s7386 + $0x4c] sm:$0xf] %vm911, %v7341
      %7407 = vst.msk [vmem:[%s7386 + $0x50] sm:$0xf] %vm911, %v7342
      %7408 = vst.msk [vmem:[%s7386 + $0x54] sm:$0xf] %vm911, %v7343
      %7409 = vst.msk [vmem:[%s7386 + $0x58] sm:$0xf] %vm911, %v7344
      %7410 = vst.msk [vmem:[%s7386 + $0x5c] sm:$0xf] %vm911, %v7345
      %7411 = vst.msk [vmem:[%s7386 + $0x60] sm:$0xf] %vm911, %v7346
      %7412 = vst.msk [vmem:[%s7386 + $0x64] sm:$0xf] %vm911, %v7347
      %7413 = vst.msk [vmem:[%s7386 + $0x68] sm:$0xf] %vm911, %v7348
      %7414 = vst.msk [vmem:[%s7386 + $0x6c] sm:$0xf] %vm911, %v7349
      %7415 = vst.msk [vmem:[%s7386 + $0x70] sm:$0xf] %vm911, %v7350
      %7416 = vst.msk [vmem:[%s7386 + $0x74] sm:$0xf] %vm911, %v7351
      %7417 = vst.msk [vmem:[%s7386 + $0x78] sm:$0xf] %vm911, %v7352
      %7418 = vst.msk [vmem:[%s7386 + $0x7c] sm:$0xf] %vm911, %v7353
      %s7419 = smul.u32 32, %s23
      %p7420 = scmp.lt.s32.totalorder %s21, 1
      %s7421 = scalar_select %p7420, %s21, 1
      %p7422 = scmp.lt.s32.totalorder %s7419, 31
      %s7423 = scalar_select %p7422, %s7419, 31
      %p7424 = scmp.lt.s32.totalorder %s22, 0
      %s7425 = scalar_select %p7424, %s22, 0
      %s7426 = sadd.s32 %s7425, %s7423
      %s7427 = smul.addr %s7421, 128
      %s7428 = sadd.s32 %s7426, %s7427
      %s7429 = smul.addr %s7428, 4
      %s7430 = scalar_lea.vmem %s5, %s7429
      // Predicated region
      $region41: #{tpu_custom_call.1} parent=39 // pred_check
        %p7431 = pneg %p209
      $region42: #{tpu_custom_call.1} parent=39 // pred_check_branch
        %7433 = sbr.rel (%p7431) target = $region44
      $region43: #{tpu_custom_call.1} parent=39 // pred_region
        %s7434 = smul.u32 32, %s23
      $region44: #{tpu_custom_call.1} parent=39 // pred_fallthru
        _
    $region40: #{tpu_custom_call.1} parent=5 // pred_fallthru
      _
    %p7435 = scmp.le.s32.totalorder 2, %s11
    // Predicated region
    $region45: #{tpu_custom_call.1} parent=5 // pred_check
      %p7436 = pneg %p7435
    $region46: #{tpu_custom_call.1} parent=5 // pred_check_branch
      %7438 = sbr.rel (%p7436) target = $region48
    $region47: #{tpu_custom_call.1} parent=5 // pred_region
      %s7439 = ssub.s32 %s11, 2
      // Predicated region
      $region49: #{tpu_custom_call.1} parent=47 // pred_check
        %p7440 = pneg %p215
      $region50: #{tpu_custom_call.1} parent=47 // pred_check_branch
        %7442 = sbr.rel (%p7440) target = $region52
      $region51: #{tpu_custom_call.1} parent=47 // pred_region
        %s7443 = smul.u32 32, %s26
        %p7444 = scmp.lt.s32.totalorder %s24, 1
        %s7445 = scalar_select %p7444, %s24, 1
        %p7446 = scmp.lt.s32.totalorder %s7443, 31
        %s7447 = scalar_select %p7446, %s7443, 31
        %p7448 = scmp.lt.s32.totalorder %s25, 0
        %s7449 = scalar_select %p7448, %s25, 0
        %s7450 = sadd.s32 %s7449, %s7447
        %s7451 = smul.addr %s7445, 128
        %s7452 = sadd.s32 %s7450, %s7451
        %s7453 = smul.addr %s7452, 4
        %s7454 = scalar_lea.vmem %s5, %s7453
      $region52: #{tpu_custom_call.1} parent=47 // pred_fallthru
        _
    $region48: #{tpu_custom_call.1} parent=5 // pred_fallthru
      _
  $region6: #{tpu_custom_call.1} parent=0 // loop_footer
    %s15 = sadd.s32 1, %s11
  $region7: #{tpu_custom_call.1} parent=0 // loop_footer_branch
    %10 = sbr.rel target = $region3
  $region8: #{tpu_custom_call.1} parent=0 // loop_exit
    _

</llo_original>
